<compile_context>
chip_gen: v7x
topology: tpu7x:2x2x1
jax: 0.10.0
libtpu: 0.0.40
codegen_flags: <defaults>
</compile_context>

<pallas_src>
import functools
import math

import jax
import jax.numpy as jnp
from jax.experimental import pallas as pl
from jax.experimental.pallas import tpu as pltpu

_LANE = 128
_SUBLANE = 8


def _round_up(x, m):
    return ((x + m - 1) // m) * m


def _pad_to(a, shape):
    pads = [(0, s - d) for d, s in zip(a.shape, shape)]
    if all(p == (0, 0) for p in pads):
        return a
    return jnp.pad(a, pads)


def _crop(a, rows, cols):
    # Post-kernel slice only when the dim was actually padded (a slice is a
    # full HBM read+rewrite of the output slab; skip it when it's a no-op).
    if a.shape == (rows, cols):
        return a
    return a[:rows, :cols]


def _pick_tm(n, tm_max, min_steps=4):
    """Batch tile: multiple of 8, <= tm_max, aiming for >= min_steps grid steps."""
    tm_max = max(_SUBLANE, _round_up(int(tm_max), _SUBLANE))
    tm = _round_up(max(1, -(-n // min_steps)), _SUBLANE)
    return max(_SUBLANE, min(tm, tm_max))


def _default_vmem_limit():
    """~80% of per-core VMEM (generation-aware; leaves compiler headroom)."""
    try:
        cap = pltpu.get_tpu_info().vmem_capacity_bytes
    except Exception:
        cap = 128 * 1024 * 1024
    return int(cap * 0.8)


def _fused_kernel(img_ref, txt_ref,
                  w_img_ref, b_img_ref, w_txt_ref, b_txt_ref,
                  wl_ref, bl_ref, wm_ref, bm_ref, w2_ref, b2_ref,
                  view1_ref, view2_ref, pred1_ref, pred2_ref,
                  mid1_ref, mid2_ref,
                  h1_scratch):
    tm = img_ref.shape[0]
    f32 = jnp.float32

    # --- layer 1 (ImgNN / TextNN denseL1): bf16 MXU matmul, f32 bias + ReLU.
    # bf16 halves are written directly into the shared (2*tm, d1) scratch
    # (no f32 concat intermediate -> fewer vld/vst and less vreg pressure).
    h1_img = jnp.dot(img_ref[...], w_img_ref[...],
                     preferred_element_type=f32) + b_img_ref[...]
    h1_scratch[:tm, :] = jnp.maximum(h1_img, 0.0).astype(h1_scratch.dtype)
    h1_txt = jnp.dot(txt_ref[...], w_txt_ref[...],
                     preferred_element_type=f32) + b_txt_ref[...]
    h1_scratch[tm:, :] = jnp.maximum(h1_txt, 0.0).astype(h1_scratch.dtype)

    # --- shared trunk, once, on the concatenated (2*tm) rows.
    h1 = h1_scratch[...]
    mid = jnp.dot(h1, wl_ref[...],
                  preferred_element_type=f32) + bl_ref[...]                # linearLayer
    view = jnp.dot(mid.astype(jnp.bfloat16), wm_ref[...],
                   preferred_element_type=f32) + bm_ref[...]               # linearLayer_m
    pred = jnp.dot(view.astype(jnp.bfloat16), w2_ref[...],
                   preferred_element_type=f32) + b2_ref[...]               # linearLayer2

    # Lane-dense full-width stores (output widths are padded to 128 multiples).
    mid1_ref[...] = mid[:tm].astype(mid1_ref.dtype)
    mid2_ref[...] = mid[tm:].astype(mid2_ref.dtype)
    view1_ref[...] = view[:tm].astype(view1_ref.dtype)
    view2_ref[...] = view[tm:].astype(view2_ref.dtype)
    pred1_ref[...] = pred[:tm].astype(pred1_ref.dtype)
    pred2_ref[...] = pred[tm:].astype(pred2_ref.dtype)


def prepare_params(params):
    """One-time pad + cast of weights/biases to lane-dense kernel layout.

    Call this OUTSIDE the jitted forward so the padding/casting is not
    re-emitted on every step.  Returns (prepared_arrays, dims) where `dims`
    holds the original (unpadded) output widths used for final slicing.
    """
    bf16, f32 = jnp.bfloat16, jnp.float32
    w_img, b_img = params["w_img"], params["b_img"]
    w_txt, b_txt = params["w_txt"], params["b_txt"]
    wl, bl = params["wl"], params["bl"]
    wm, bm = params["wm"], params["bm"]
    w2, b2 = params["w2"], params["b2"]

    d1 = w_img.shape[1]
    assert w_txt.shape[1] == d1, \
        "shared trunk requires text_output_dim == img_output_dim"

    k_img_p = _round_up(w_img.shape[0], _LANE)
    k_txt_p = _round_up(w_txt.shape[0], _LANE)
    d1_p = _round_up(d1, _LANE)
    d_mid_p = _round_up(wl.shape[1], _LANE)
    d_view_p = _round_up(wm.shape[1], _LANE)
    d_out_p = _round_up(w2.shape[1], _LANE)

    prepared = dict(
        w_img=_pad_to(w_img, (k_img_p, d1_p)).astype(bf16),
        b_img=_pad_to(b_img, (1, d1_p)).astype(f32),
        w_txt=_pad_to(w_txt, (k_txt_p, d1_p)).astype(bf16),
        b_txt=_pad_to(b_txt, (1, d1_p)).astype(f32),
        wl=_pad_to(wl, (d1_p, d_mid_p)).astype(bf16),
        bl=_pad_to(bl, (1, d_mid_p)).astype(f32),
        wm=_pad_to(wm, (d_mid_p, d_view_p)).astype(bf16),
        bm=_pad_to(bm, (1, d_view_p)).astype(f32),
        w2=_pad_to(w2, (d_view_p, d_out_p)).astype(bf16),
        b2=_pad_to(b2, (1, d_out_p)).astype(f32),
    )
    dims = dict(d_mid=int(wl.shape[1]), d_view=int(wm.shape[1]),
                d_out=int(w2.shape[1]))
    return prepared, dims


def drsc_nn_forward(img, text, prepared, *, dims, tm_max=256,
                    single_buffer_weights=True, out_dtype=jnp.float32):
    """Fused DRSC_NN forward.

    Returns (view1_feature, view2_feature, view1_predict, view2_predict,
             mid1_feature, mid2_feature) — same order as DRSC_NN.forward.
    `out_dtype=jnp.bfloat16` halves output HBM writeback (useful on v5e) if
    the caller tolerates bf16 outputs.
    """
    n, k_img = img.shape
    n_txt, k_txt = text.shape
    assert n == n_txt, "img and text must share the batch dimension"

    bf16 = jnp.bfloat16
    k_img_p, d1_p = prepared["w_img"].shape
    k_txt_p = prepared["w_txt"].shape[0]
    d_mid_p = prepared["wl"].shape[1]
    d_view_p = prepared["wm"].shape[1]
    d_out_p = prepared["w2"].shape[1]
    d_mid, d_view, d_out = dims["d_mid"], dims["d_view"], dims["d_out"]

    # Batch tile: multiple of 8, <= tm_max (256 fills the v6e/v7x MXU),
    # shrunk for small batches so the grid keeps >= 4 steps (pipelining +
    # two-TensorCore sharding on v7x).  Remainder rows are zero-padded and
    # sliced off below (exact).
    tm = _pick_tm(n, tm_max)
    n_pad = _round_up(n, tm)
    grid = (n_pad // tm,)

    # Activations: cast to bf16 BEFORE padding; skip padding when aligned.
    img_b = img if img.dtype == bf16 else img.astype(bf16)
    txt_b = text if text.dtype == bf16 else text.astype(bf16)
    img_b = _pad_to(img_b, (n_pad, k_img_p))
    txt_b = _pad_to(txt_b, (n_pad, k_txt_p))

    def row_spec(cols):
        return pl.BlockSpec((tm, cols), lambda i: (i, 0))

    def full_spec(shape):
        # Constant block index -> stays VMEM-resident across all grid steps.
        # Single-buffered: nothing changes across steps, so double-buffering
        # would just double the VMEM footprint.
        idx = lambda i: (0,) * len(shape)
        if single_buffer_weights:
            return pl.BlockSpec(shape, idx, pipeline_mode=pl.Buffered(buffer_count=1))
        return pl.BlockSpec(shape, idx)

    out_shapes = (
        jax.ShapeDtypeStruct((n_pad, d_view_p), out_dtype),   # view1
        jax.ShapeDtypeStruct((n_pad, d_view_p), out_dtype),   # view2
        jax.ShapeDtypeStruct((n_pad, d_out_p), out_dtype),    # pred1
        jax.ShapeDtypeStruct((n_pad, d_out_p), out_dtype),    # pred2
        jax.ShapeDtypeStruct((n_pad, d_mid_p), out_dtype),    # mid1
        jax.ShapeDtypeStruct((n_pad, d_mid_p), out_dtype),    # mid2
    )
    out_specs = [
        row_spec(d_view_p), row_spec(d_view_p),
        row_spec(d_out_p), row_spec(d_out_p),
        row_spec(d_mid_p), row_spec(d_mid_p),
    ]

    # Advisory cost for XLA scheduling of surrounding pad/cast/slice ops.
    flops = (2 * n_pad * (k_img_p + k_txt_p) * d1_p
             + 2 * (2 * n_pad) * (d1_p * d_mid_p
                                  + d_mid_p * d_view_p
                                  + d_view_p * d_out_p))
    weight_bytes = sum(int(v.size) * v.dtype.itemsize for v in prepared.values())
    out_bytes = 2 * n_pad * (d_view_p + d_out_p + d_mid_p) * jnp.dtype(out_dtype).itemsize
    in_bytes = (img_b.size + txt_b.size) * 2
    cost = pl.CostEstimate(flops=int(flops), transcendentals=0,
                           bytes_accessed=int(weight_bytes + out_bytes + in_bytes))

    # TODO(synk): for very large img_input_dim / text_input_dim (>~8K) add an
    # inner K-chunk pipeline for layer 1 (extra "arbitrary" grid axis with a
    # VMEM f32 accumulator) instead of the full (tm, K) tile + full KxD1 weight
    # — matters mainly on v7x's 64 MiB VMEM.
    outs = pl.pallas_call(
        _fused_kernel,
        out_shape=out_shapes,
        grid_spec=pltpu.PrefetchScalarGridSpec(
            num_scalar_prefetch=0,
            grid=grid,
            in_specs=[
                row_spec(k_img_p), row_spec(k_txt_p),
                full_spec(prepared["w_img"].shape), full_spec(prepared["b_img"].shape),
                full_spec(prepared["w_txt"].shape), full_spec(prepared["b_txt"].shape),
                full_spec(prepared["wl"].shape), full_spec(prepared["bl"].shape),
                full_spec(prepared["wm"].shape), full_spec(prepared["bm"].shape),
                full_spec(prepared["w2"].shape), full_spec(prepared["b2"].shape),
            ],
            out_specs=out_specs,
            scratch_shapes=[pltpu.VMEM((2 * tm, d1_p), bf16)],
        ),
        compiler_params=pltpu.CompilerParams(
            dimension_semantics=("parallel",),
            vmem_limit_bytes=_default_vmem_limit(),
        ),
        cost_estimate=cost,
    )(img_b, txt_b,
      prepared["w_img"], prepared["b_img"], prepared["w_txt"], prepared["b_txt"],
      prepared["wl"], prepared["bl"], prepared["wm"], prepared["bm"],
      prepared["w2"], prepared["b2"])

    view1_p, view2_p, pred1_p, pred2_p, mid1_p, mid2_p = outs
    return (_crop(view1_p, n, d_view), _crop(view2_p, n, d_view),
            _crop(pred1_p, n, d_out), _crop(pred2_p, n, d_out),
            _crop(mid1_p, n, d_mid), _crop(mid2_p, n, d_mid))


def _init_linear(key, in_dim, out_dim):
    """Deterministic nn.Linear-style init; weight returned as [in, out]."""
    kw, kb = jax.random.split(key)
    bound = 1.0 / math.sqrt(in_dim)
    w = jax.random.uniform(kw, (in_dim, out_dim), jnp.float32, -bound, bound)
    b = jax.random.uniform(kb, (1, out_dim), jnp.float32, -bound, bound)
    return w, b


def make_drsc_params(key, img_input_dim, img_output_dim, text_input_dim,
                     text_output_dim, minus_one_dim, output_dim):
    assert img_output_dim == text_output_dim, "shared trunk requires equal dims"
    keys = jax.random.split(key, 5)
    w_img, b_img = _init_linear(keys[0], img_input_dim, img_output_dim)
    w_txt, b_txt = _init_linear(keys[1], text_input_dim, text_output_dim)
    wl, bl = _init_linear(keys[2], img_output_dim, minus_one_dim)
    wm, bm = _init_linear(keys[3], minus_one_dim, minus_one_dim)
    w2, b2 = _init_linear(keys[4], minus_one_dim, output_dim)
    return dict(w_img=w_img, b_img=b_img, w_txt=w_txt, b_txt=b_txt,
                wl=wl, bl=bl, wm=wm, bm=bm, w2=w2, b2=b2)


def _reference_forward(img, text, p, *, mxu_bf16):
    """Pure-JAX reference mirroring the PyTorch module.

    mxu_bf16=True replicates the kernel's bf16-operand / f32-accumulate
    quantization exactly; mxu_bf16=False is the full-f32 module semantics.
    """
    def mm(a, b):
        if mxu_bf16:
            a = a.astype(jnp.bfloat16)
            b = b.astype(jnp.bfloat16)
        return jnp.dot(a, b, preferred_element_type=jnp.float32)

    def chain(x, w1, b1):
        h1 = jnp.maximum(mm(x, w1) + b1, 0.0)
        mid = mm(h1, p["wl"]) + p["bl"]
        view = mm(mid, p["wm"]) + p["bm"]
        pred = mm(view, p["w2"]) + p["b2"]
        return mid, view, pred

    mid1, view1, pred1 = chain(img, p["w_img"], p["b_img"])
    mid2, view2, pred2 = chain(text, p["w_txt"], p["b_txt"])
    return view1, view2, pred1, pred2, mid1, mid2


if __name__ == "__main__":
    # Small demo shapes (exercise batch remainder + non-128 feature padding).
    batch = 200
    img_input_dim, img_output_dim = 96, 160
    text_input_dim, text_output_dim = 48, 160
    minus_one_dim, output_dim = 96, 10

    key = jax.random.PRNGKey(0)
    k_img, k_txt, k_par = jax.random.split(key, 3)
    img = jax.random.normal(k_img, (batch, img_input_dim), jnp.float32)
    text = jax.random.normal(k_txt, (batch, text_input_dim), jnp.float32)
    params = make_drsc_params(k_par, img_input_dim, img_output_dim,
                              text_input_dim, text_output_dim,
                              minus_one_dim, output_dim)

    # One-time weight padding / bf16 cast, outside the jitted hot path.
    prepared, dims = prepare_params(params)

    def run(single_buffer):
        fwd = jax.jit(functools.partial(
            drsc_nn_forward, dims=dims, tm_max=256,
            single_buffer_weights=single_buffer))
        return jax.block_until_ready(fwd(img, text, prepared))

    try:
        outs = run(True)
    except Exception:
        # Fallback if this JAX build rejects single-buffered BlockSpecs.
        outs = run(False)

    refs_q = _reference_forward(img, text, params, mxu_bf16=True)
    refs_f = _reference_forward(img, text, params, mxu_bf16=False)
    names = ("view1", "view2", "pred1", "pred2", "mid1", "mid2")
    for name, o, rq, rf in zip(names, outs, refs_q, refs_f):
        assert o.shape == rf.shape, (name, o.shape, rf.shape)
        assert jnp.allclose(o, rq, atol=2e-3, rtol=2e-3), \
            f"{name}: mismatch vs bf16-quantized reference"
        assert jnp.allclose(o, rf, atol=5e-2, rtol=5e-2), \
            f"{name}: drift vs full-f32 reference"

    print("KERNEL_OK")
</pallas_src>

<mosaic_0001>
module attributes {stable_mosaic.version = 11 : i64} {
  func.func @_fused_kernel(%arg0: i32, %arg1: memref<56x128xbf16, #tpu.memory_space<vmem>>, %arg2: memref<56x128xbf16, #tpu.memory_space<vmem>>, %arg3: memref<128x256xbf16, #tpu.memory_space<vmem>>, %arg4: memref<1x256xf32, #tpu.memory_space<vmem>>, %arg5: memref<128x256xbf16, #tpu.memory_space<vmem>>, %arg6: memref<1x256xf32, #tpu.memory_space<vmem>>, %arg7: memref<256x128xbf16, #tpu.memory_space<vmem>>, %arg8: memref<1x128xf32, #tpu.memory_space<vmem>>, %arg9: memref<128x128xbf16, #tpu.memory_space<vmem>>, %arg10: memref<1x128xf32, #tpu.memory_space<vmem>>, %arg11: memref<128x128xbf16, #tpu.memory_space<vmem>>, %arg12: memref<1x128xf32, #tpu.memory_space<vmem>>, %arg13: memref<56x128xf32, #tpu.memory_space<vmem>>, %arg14: memref<56x128xf32, #tpu.memory_space<vmem>>, %arg15: memref<56x128xf32, #tpu.memory_space<vmem>>, %arg16: memref<56x128xf32, #tpu.memory_space<vmem>>, %arg17: memref<56x128xf32, #tpu.memory_space<vmem>>, %arg18: memref<56x128xf32, #tpu.memory_space<vmem>>, %arg19: memref<112x256xbf16, #tpu.memory_space<vmem>>) attributes {dimension_semantics = [#tpu.dimension_semantics<parallel>], iteration_bounds = array<i64: 4>, scalar_prefetch = 0 : i64, scratch_operands = 1 : i64, tpu.core_type = #tpu.core_type<tc>, window_params = [{transform_indices = @transform_0, window_bounds = array<i64: 56, 128>}, {transform_indices = @transform_1, window_bounds = array<i64: 56, 128>}, {pipeline_mode = #tpu.pipeline_mode<synchronous>, transform_indices = @transform_2, window_bounds = array<i64: 128, 256>}, {pipeline_mode = #tpu.pipeline_mode<synchronous>, transform_indices = @transform_3, window_bounds = array<i64: 1, 256>}, {pipeline_mode = #tpu.pipeline_mode<synchronous>, transform_indices = @transform_4, window_bounds = array<i64: 128, 256>}, {pipeline_mode = #tpu.pipeline_mode<synchronous>, transform_indices = @transform_5, window_bounds = array<i64: 1, 256>}, {pipeline_mode = #tpu.pipeline_mode<synchronous>, transform_indices = @transform_6, window_bounds = array<i64: 256, 128>}, {pipeline_mode = #tpu.pipeline_mode<synchronous>, transform_indices = @transform_7, window_bounds = array<i64: 1, 128>}, {pipeline_mode = #tpu.pipeline_mode<synchronous>, transform_indices = @transform_8, window_bounds = array<i64: 128, 128>}, {pipeline_mode = #tpu.pipeline_mode<synchronous>, transform_indices = @transform_9, window_bounds = array<i64: 1, 128>}, {pipeline_mode = #tpu.pipeline_mode<synchronous>, transform_indices = @transform_10, window_bounds = array<i64: 128, 128>}, {pipeline_mode = #tpu.pipeline_mode<synchronous>, transform_indices = @transform_11, window_bounds = array<i64: 1, 128>}, {transform_indices = @transform_12, window_bounds = array<i64: 56, 128>}, {transform_indices = @transform_13, window_bounds = array<i64: 56, 128>}, {transform_indices = @transform_14, window_bounds = array<i64: 56, 128>}, {transform_indices = @transform_15, window_bounds = array<i64: 56, 128>}, {transform_indices = @transform_16, window_bounds = array<i64: 56, 128>}, {transform_indices = @transform_17, window_bounds = array<i64: 56, 128>}]} {
    %c0 = arith.constant 0 : index
    %c0_0 = arith.constant 0 : index
    %0 = vector.load %arg1[%c0, %c0_0] : memref<56x128xbf16, #tpu.memory_space<vmem>>, vector<56x128xbf16>
    %c0_1 = arith.constant 0 : index
    %c0_2 = arith.constant 0 : index
    %1 = vector.load %arg3[%c0_1, %c0_2] : memref<128x256xbf16, #tpu.memory_space<vmem>>, vector<128x256xbf16>
    %cst = arith.constant dense<0.000000e+00> : vector<56x256xf32>
    %2 = tpu.matmul %0, %1, %cst {dimension_numbers = #tpu.dot_dimension_numbers<[1], [0], [0], [1], [0, 0, 1, 1], [], []>} : vector<56x128xbf16>, vector<128x256xbf16>, vector<56x256xf32> -> vector<56x256xf32>
    %c0_3 = arith.constant 0 : index
    %c0_4 = arith.constant 0 : index
    %3 = vector.load %arg4[%c0_3, %c0_4] : memref<1x256xf32, #tpu.memory_space<vmem>>, vector<1x256xf32>
    %4 = vector.broadcast %3 : vector<1x256xf32> to vector<56x256xf32>
    %5 = arith.addf %2, %4 : vector<56x256xf32>
    %cst_5 = arith.constant 0.000000e+00 : f32
    %6 = vector.broadcast %cst_5 : f32 to vector<56x256xf32>
    %7 = arith.maximumf %5, %6 : vector<56x256xf32>
    %8 = arith.truncf %7 : vector<56x256xf32> to vector<56x256xbf16>
    %c0_6 = arith.constant 0 : index
    %c0_7 = arith.constant 0 : index
    %9 = vector.load %arg19[%c0_6, %c0_7] : memref<112x256xbf16, #tpu.memory_space<vmem>>, vector<56x256xbf16>
    tpu.vector_store %arg19[%c0_6, %c0_7], %8 {strides = array<i32>} : memref<112x256xbf16, #tpu.memory_space<vmem>>, vector<56x256xbf16>,
    %c0_8 = arith.constant 0 : index
    %c0_9 = arith.constant 0 : index
    %10 = vector.load %arg2[%c0_8, %c0_9] : memref<56x128xbf16, #tpu.memory_space<vmem>>, vector<56x128xbf16>
    %c0_10 = arith.constant 0 : index
    %c0_11 = arith.constant 0 : index
    %11 = vector.load %arg5[%c0_10, %c0_11] : memref<128x256xbf16, #tpu.memory_space<vmem>>, vector<128x256xbf16>
    %cst_12 = arith.constant dense<0.000000e+00> : vector<56x256xf32>
    %12 = tpu.matmul %10, %11, %cst_12 {dimension_numbers = #tpu.dot_dimension_numbers<[1], [0], [0], [1], [0, 0, 1, 1], [], []>} : vector<56x128xbf16>, vector<128x256xbf16>, vector<56x256xf32> -> vector<56x256xf32>
    %c0_13 = arith.constant 0 : index
    %c0_14 = arith.constant 0 : index
    %13 = vector.load %arg6[%c0_13, %c0_14] : memref<1x256xf32, #tpu.memory_space<vmem>>, vector<1x256xf32>
    %14 = vector.broadcast %13 : vector<1x256xf32> to vector<56x256xf32>
    %15 = arith.addf %12, %14 : vector<56x256xf32>
    %cst_15 = arith.constant 0.000000e+00 : f32
    %16 = vector.broadcast %cst_15 : f32 to vector<56x256xf32>
    %17 = arith.maximumf %15, %16 : vector<56x256xf32>
    %18 = arith.truncf %17 : vector<56x256xf32> to vector<56x256xbf16>
    %c56 = arith.constant 56 : index
    %c0_16 = arith.constant 0 : index
    %19 = vector.load %arg19[%c56, %c0_16] : memref<112x256xbf16, #tpu.memory_space<vmem>>, vector<56x256xbf16>
    tpu.vector_store %arg19[%c56, %c0_16], %18 {strides = array<i32>} : memref<112x256xbf16, #tpu.memory_space<vmem>>, vector<56x256xbf16>,
    %c0_17 = arith.constant 0 : index
    %c0_18 = arith.constant 0 : index
    %20 = vector.load %arg19[%c0_17, %c0_18] : memref<112x256xbf16, #tpu.memory_space<vmem>>, vector<112x256xbf16>
    %c0_19 = arith.constant 0 : index
    %c0_20 = arith.constant 0 : index
    %21 = vector.load %arg7[%c0_19, %c0_20] : memref<256x128xbf16, #tpu.memory_space<vmem>>, vector<256x128xbf16>
    %cst_21 = arith.constant dense<0.000000e+00> : vector<112x128xf32>
    %22 = tpu.matmul %20, %21, %cst_21 {dimension_numbers = #tpu.dot_dimension_numbers<[1], [0], [0], [1], [0, 0, 1, 1], [], []>} : vector<112x256xbf16>, vector<256x128xbf16>, vector<112x128xf32> -> vector<112x128xf32>
    %c0_22 = arith.constant 0 : index
    %c0_23 = arith.constant 0 : index
    %23 = vector.load %arg8[%c0_22, %c0_23] : memref<1x128xf32, #tpu.memory_space<vmem>>, vector<1x128xf32>
    %24 = vector.broadcast %23 : vector<1x128xf32> to vector<112x128xf32>
    %25 = arith.addf %22, %24 : vector<112x128xf32>
    %26 = arith.truncf %25 : vector<112x128xf32> to vector<112x128xbf16>
    %c0_24 = arith.constant 0 : index
    %c0_25 = arith.constant 0 : index
    %27 = vector.load %arg9[%c0_24, %c0_25] : memref<128x128xbf16, #tpu.memory_space<vmem>>, vector<128x128xbf16>
    %cst_26 = arith.constant dense<0.000000e+00> : vector<112x128xf32>
    %28 = tpu.matmul %26, %27, %cst_26 {dimension_numbers = #tpu.dot_dimension_numbers<[1], [0], [0], [1], [0, 0, 1, 1], [], []>} : vector<112x128xbf16>, vector<128x128xbf16>, vector<112x128xf32> -> vector<112x128xf32>
    %c0_27 = arith.constant 0 : index
    %c0_28 = arith.constant 0 : index
    %29 = vector.load %arg10[%c0_27, %c0_28] : memref<1x128xf32, #tpu.memory_space<vmem>>, vector<1x128xf32>
    %30 = vector.broadcast %29 : vector<1x128xf32> to vector<112x128xf32>
    %31 = arith.addf %28, %30 : vector<112x128xf32>
    %32 = arith.truncf %31 : vector<112x128xf32> to vector<112x128xbf16>
    %c0_29 = arith.constant 0 : index
    %c0_30 = arith.constant 0 : index
    %33 = vector.load %arg11[%c0_29, %c0_30] : memref<128x128xbf16, #tpu.memory_space<vmem>>, vector<128x128xbf16>
    %cst_31 = arith.constant dense<0.000000e+00> : vector<112x128xf32>
    %34 = tpu.matmul %32, %33, %cst_31 {dimension_numbers = #tpu.dot_dimension_numbers<[1], [0], [0], [1], [0, 0, 1, 1], [], []>} : vector<112x128xbf16>, vector<128x128xbf16>, vector<112x128xf32> -> vector<112x128xf32>
    %c0_32 = arith.constant 0 : index
    %c0_33 = arith.constant 0 : index
    %35 = vector.load %arg12[%c0_32, %c0_33] : memref<1x128xf32, #tpu.memory_space<vmem>>, vector<1x128xf32>
    %36 = vector.broadcast %35 : vector<1x128xf32> to vector<112x128xf32>
    %37 = arith.addf %34, %36 : vector<112x128xf32>
    %38 = vector.extract_strided_slice %25 {offsets = [0, 0], sizes = [56, 128], strides = [1, 1]} : vector<112x128xf32> to vector<56x128xf32>
    %c0_34 = arith.constant 0 : index
    %c0_35 = arith.constant 0 : index
    %39 = vector.load %arg17[%c0_34, %c0_35] : memref<56x128xf32, #tpu.memory_space<vmem>>, vector<56x128xf32>
    tpu.vector_store %arg17[%c0_34, %c0_35], %38 {strides = array<i32>} : memref<56x128xf32, #tpu.memory_space<vmem>>, vector<56x128xf32>,
    %40 = vector.extract_strided_slice %25 {offsets = [56, 0], sizes = [56, 128], strides = [1, 1]} : vector<112x128xf32> to vector<56x128xf32>
    %c0_36 = arith.constant 0 : index
    %c0_37 = arith.constant 0 : index
    %41 = vector.load %arg18[%c0_36, %c0_37] : memref<56x128xf32, #tpu.memory_space<vmem>>, vector<56x128xf32>
    tpu.vector_store %arg18[%c0_36, %c0_37], %40 {strides = array<i32>} : memref<56x128xf32, #tpu.memory_space<vmem>>, vector<56x128xf32>,
    %42 = vector.extract_strided_slice %31 {offsets = [0, 0], sizes = [56, 128], strides = [1, 1]} : vector<112x128xf32> to vector<56x128xf32>
    %c0_38 = arith.constant 0 : index
    %c0_39 = arith.constant 0 : index
    %43 = vector.load %arg13[%c0_38, %c0_39] : memref<56x128xf32, #tpu.memory_space<vmem>>, vector<56x128xf32>
    tpu.vector_store %arg13[%c0_38, %c0_39], %42 {strides = array<i32>} : memref<56x128xf32, #tpu.memory_space<vmem>>, vector<56x128xf32>,
    %44 = vector.extract_strided_slice %31 {offsets = [56, 0], sizes = [56, 128], strides = [1, 1]} : vector<112x128xf32> to vector<56x128xf32>
    %c0_40 = arith.constant 0 : index
    %c0_41 = arith.constant 0 : index
    %45 = vector.load %arg14[%c0_40, %c0_41] : memref<56x128xf32, #tpu.memory_space<vmem>>, vector<56x128xf32>
    tpu.vector_store %arg14[%c0_40, %c0_41], %44 {strides = array<i32>} : memref<56x128xf32, #tpu.memory_space<vmem>>, vector<56x128xf32>,
    %46 = vector.extract_strided_slice %37 {offsets = [0, 0], sizes = [56, 128], strides = [1, 1]} : vector<112x128xf32> to vector<56x128xf32>
    %c0_42 = arith.constant 0 : index
    %c0_43 = arith.constant 0 : index
    %47 = vector.load %arg15[%c0_42, %c0_43] : memref<56x128xf32, #tpu.memory_space<vmem>>, vector<56x128xf32>
    tpu.vector_store %arg15[%c0_42, %c0_43], %46 {strides = array<i32>} : memref<56x128xf32, #tpu.memory_space<vmem>>, vector<56x128xf32>,
    %48 = vector.extract_strided_slice %37 {offsets = [56, 0], sizes = [56, 128], strides = [1, 1]} : vector<112x128xf32> to vector<56x128xf32>
    %c0_44 = arith.constant 0 : index
    %c0_45 = arith.constant 0 : index
    %49 = vector.load %arg16[%c0_44, %c0_45] : memref<56x128xf32, #tpu.memory_space<vmem>>, vector<56x128xf32>
    tpu.vector_store %arg16[%c0_44, %c0_45], %48 {strides = array<i32>} : memref<56x128xf32, #tpu.memory_space<vmem>>, vector<56x128xf32>,
    return
  }
  func.func @transform_0(%arg0: i32) -> (i32, i32) {
    %c0_i32 = arith.constant 0 : i32
    %c0_i32_0 = arith.constant 0 : i32
    return %arg0, %c0_i32 : i32, i32
  }
  func.func @transform_1(%arg0: i32) -> (i32, i32) {
    %c0_i32 = arith.constant 0 : i32
    %c0_i32_0 = arith.constant 0 : i32
    return %arg0, %c0_i32 : i32, i32
  }
  func.func @transform_2(%arg0: i32) -> (i32, i32) {
    %c0_i32 = arith.constant 0 : i32
    %c0_i32_0 = arith.constant 0 : i32
    %c0_i32_1 = arith.constant 0 : i32
    return %c0_i32, %c0_i32_0 : i32, i32
  }
  func.func @transform_3(%arg0: i32) -> (i32, i32) {
    %c0_i32 = arith.constant 0 : i32
    %c0_i32_0 = arith.constant 0 : i32
    %c0_i32_1 = arith.constant 0 : i32
    return %c0_i32, %c0_i32_0 : i32, i32
  }
  func.func @transform_4(%arg0: i32) -> (i32, i32) {
    %c0_i32 = arith.constant 0 : i32
    %c0_i32_0 = arith.constant 0 : i32
    %c0_i32_1 = arith.constant 0 : i32
    return %c0_i32, %c0_i32_0 : i32, i32
  }
  func.func @transform_5(%arg0: i32) -> (i32, i32) {
    %c0_i32 = arith.constant 0 : i32
    %c0_i32_0 = arith.constant 0 : i32
    %c0_i32_1 = arith.constant 0 : i32
    return %c0_i32, %c0_i32_0 : i32, i32
  }
  func.func @transform_6(%arg0: i32) -> (i32, i32) {
    %c0_i32 = arith.constant 0 : i32
    %c0_i32_0 = arith.constant 0 : i32
    %c0_i32_1 = arith.constant 0 : i32
    return %c0_i32, %c0_i32_0 : i32, i32
  }
  func.func @transform_7(%arg0: i32) -> (i32, i32) {
    %c0_i32 = arith.constant 0 : i32
    %c0_i32_0 = arith.constant 0 : i32
    %c0_i32_1 = arith.constant 0 : i32
    return %c0_i32, %c0_i32_0 : i32, i32
  }
  func.func @transform_8(%arg0: i32) -> (i32, i32) {
    %c0_i32 = arith.constant 0 : i32
    %c0_i32_0 = arith.constant 0 : i32
    %c0_i32_1 = arith.constant 0 : i32
    return %c0_i32, %c0_i32_0 : i32, i32
  }
  func.func @transform_9(%arg0: i32) -> (i32, i32) {
    %c0_i32 = arith.constant 0 : i32
    %c0_i32_0 = arith.constant 0 : i32
    %c0_i32_1 = arith.constant 0 : i32
    return %c0_i32, %c0_i32_0 : i32, i32
  }
  func.func @transform_10(%arg0: i32) -> (i32, i32) {
    %c0_i32 = arith.constant 0 : i32
    %c0_i32_0 = arith.constant 0 : i32
    %c0_i32_1 = arith.constant 0 : i32
    return %c0_i32, %c0_i32_0 : i32, i32
  }
  func.func @transform_11(%arg0: i32) -> (i32, i32) {
    %c0_i32 = arith.constant 0 : i32
    %c0_i32_0 = arith.constant 0 : i32
    %c0_i32_1 = arith.constant 0 : i32
    return %c0_i32, %c0_i32_0 : i32, i32
  }
  func.func @transform_12(%arg0: i32) -> (i32, i32) {
    %c0_i32 = arith.constant 0 : i32
    %c0_i32_0 = arith.constant 0 : i32
    return %arg0, %c0_i32 : i32, i32
  }
  func.func @transform_13(%arg0: i32) -> (i32, i32) {
    %c0_i32 = arith.constant 0 : i32
    %c0_i32_0 = arith.constant 0 : i32
    return %arg0, %c0_i32 : i32, i32
  }
  func.func @transform_14(%arg0: i32) -> (i32, i32) {
    %c0_i32 = arith.constant 0 : i32
    %c0_i32_0 = arith.constant 0 : i32
    return %arg0, %c0_i32 : i32, i32
  }
  func.func @transform_15(%arg0: i32) -> (i32, i32) {
    %c0_i32 = arith.constant 0 : i32
    %c0_i32_0 = arith.constant 0 : i32
    return %arg0, %c0_i32 : i32, i32
  }
  func.func @transform_16(%arg0: i32) -> (i32, i32) {
    %c0_i32 = arith.constant 0 : i32
    %c0_i32_0 = arith.constant 0 : i32
    return %arg0, %c0_i32 : i32, i32
  }
  func.func @transform_17(%arg0: i32) -> (i32, i32) {
    %c0_i32 = arith.constant 0 : i32
    %c0_i32_0 = arith.constant 0 : i32
    return %arg0, %c0_i32 : i32, i32
  }
}

module attributes {stable_mosaic.version = 11 : i64} {
  func.func @_fused_kernel(%arg0: i32, %arg1: memref<56x128xbf16, #tpu.memory_space<vmem>>, %arg2: memref<56x128xbf16, #tpu.memory_space<vmem>>, %arg3: memref<128x256xbf16, #tpu.memory_space<vmem>>, %arg4: memref<1x256xf32, #tpu.memory_space<vmem>>, %arg5: memref<128x256xbf16, #tpu.memory_space<vmem>>, %arg6: memref<1x256xf32, #tpu.memory_space<vmem>>, %arg7: memref<256x128xbf16, #tpu.memory_space<vmem>>, %arg8: memref<1x128xf32, #tpu.memory_space<vmem>>, %arg9: memref<128x128xbf16, #tpu.memory_space<vmem>>, %arg10: memref<1x128xf32, #tpu.memory_space<vmem>>, %arg11: memref<128x128xbf16, #tpu.memory_space<vmem>>, %arg12: memref<1x128xf32, #tpu.memory_space<vmem>>, %arg13: memref<56x128xf32, #tpu.memory_space<vmem>>, %arg14: memref<56x128xf32, #tpu.memory_space<vmem>>, %arg15: memref<56x128xf32, #tpu.memory_space<vmem>>, %arg16: memref<56x128xf32, #tpu.memory_space<vmem>>, %arg17: memref<56x128xf32, #tpu.memory_space<vmem>>, %arg18: memref<56x128xf32, #tpu.memory_space<vmem>>, %arg19: memref<112x256xbf16, #tpu.memory_space<vmem>>) attributes {dimension_semantics = [#tpu.dimension_semantics<parallel>], iteration_bounds = array<i64: 4>, scalar_prefetch = 0 : i64, scratch_operands = 1 : i64, tpu.core_type = #tpu.core_type<tc>, window_params = [{transform_indices = @transform_0, window_bounds = array<i64: 56, 128>}, {transform_indices = @transform_1, window_bounds = array<i64: 56, 128>}, {pipeline_mode = #tpu.pipeline_mode<synchronous>, transform_indices = @transform_2, window_bounds = array<i64: 128, 256>}, {pipeline_mode = #tpu.pipeline_mode<synchronous>, transform_indices = @transform_3, window_bounds = array<i64: 1, 256>}, {pipeline_mode = #tpu.pipeline_mode<synchronous>, transform_indices = @transform_4, window_bounds = array<i64: 128, 256>}, {pipeline_mode = #tpu.pipeline_mode<synchronous>, transform_indices = @transform_5, window_bounds = array<i64: 1, 256>}, {pipeline_mode = #tpu.pipeline_mode<synchronous>, transform_indices = @transform_6, window_bounds = array<i64: 256, 128>}, {pipeline_mode = #tpu.pipeline_mode<synchronous>, transform_indices = @transform_7, window_bounds = array<i64: 1, 128>}, {pipeline_mode = #tpu.pipeline_mode<synchronous>, transform_indices = @transform_8, window_bounds = array<i64: 128, 128>}, {pipeline_mode = #tpu.pipeline_mode<synchronous>, transform_indices = @transform_9, window_bounds = array<i64: 1, 128>}, {pipeline_mode = #tpu.pipeline_mode<synchronous>, transform_indices = @transform_10, window_bounds = array<i64: 128, 128>}, {pipeline_mode = #tpu.pipeline_mode<synchronous>, transform_indices = @transform_11, window_bounds = array<i64: 1, 128>}, {transform_indices = @transform_12, window_bounds = array<i64: 56, 128>}, {transform_indices = @transform_13, window_bounds = array<i64: 56, 128>}, {transform_indices = @transform_14, window_bounds = array<i64: 56, 128>}, {transform_indices = @transform_15, window_bounds = array<i64: 56, 128>}, {transform_indices = @transform_16, window_bounds = array<i64: 56, 128>}, {transform_indices = @transform_17, window_bounds = array<i64: 56, 128>}]} {
    %c0 = arith.constant 0 : index
    %c0_0 = arith.constant 0 : index
    %0 = vector.load %arg1[%c0, %c0_0] : memref<56x128xbf16, #tpu.memory_space<vmem>>, vector<56x128xbf16>
    %c0_1 = arith.constant 0 : index
    %c0_2 = arith.constant 0 : index
    %1 = vector.load %arg3[%c0_1, %c0_2] : memref<128x256xbf16, #tpu.memory_space<vmem>>, vector<128x256xbf16>
    %cst = arith.constant dense<0.000000e+00> : vector<56x256xf32>
    %2 = tpu.matmul %0, %1, %cst {dimension_numbers = #tpu.dot_dimension_numbers<[1], [0], [0], [1], [0, 0, 1, 1], [], []>} : vector<56x128xbf16>, vector<128x256xbf16>, vector<56x256xf32> -> vector<56x256xf32>
    %c0_3 = arith.constant 0 : index
    %c0_4 = arith.constant 0 : index
    %3 = vector.load %arg4[%c0_3, %c0_4] : memref<1x256xf32, #tpu.memory_space<vmem>>, vector<1x256xf32>
    %4 = vector.broadcast %3 : vector<1x256xf32> to vector<56x256xf32>
    %5 = arith.addf %2, %4 : vector<56x256xf32>
    %cst_5 = arith.constant 0.000000e+00 : f32
    %6 = vector.broadcast %cst_5 : f32 to vector<56x256xf32>
    %7 = arith.maximumf %5, %6 : vector<56x256xf32>
    %8 = arith.truncf %7 : vector<56x256xf32> to vector<56x256xbf16>
    %c0_6 = arith.constant 0 : index
    %c0_7 = arith.constant 0 : index
    %9 = vector.load %arg19[%c0_6, %c0_7] : memref<112x256xbf16, #tpu.memory_space<vmem>>, vector<56x256xbf16>
    tpu.vector_store %arg19[%c0_6, %c0_7], %8 {strides = array<i32>} : memref<112x256xbf16, #tpu.memory_space<vmem>>, vector<56x256xbf16>,
    %c0_8 = arith.constant 0 : index
    %c0_9 = arith.constant 0 : index
    %10 = vector.load %arg2[%c0_8, %c0_9] : memref<56x128xbf16, #tpu.memory_space<vmem>>, vector<56x128xbf16>
    %c0_10 = arith.constant 0 : index
    %c0_11 = arith.constant 0 : index
    %11 = vector.load %arg5[%c0_10, %c0_11] : memref<128x256xbf16, #tpu.memory_space<vmem>>, vector<128x256xbf16>
    %cst_12 = arith.constant dense<0.000000e+00> : vector<56x256xf32>
    %12 = tpu.matmul %10, %11, %cst_12 {dimension_numbers = #tpu.dot_dimension_numbers<[1], [0], [0], [1], [0, 0, 1, 1], [], []>} : vector<56x128xbf16>, vector<128x256xbf16>, vector<56x256xf32> -> vector<56x256xf32>
    %c0_13 = arith.constant 0 : index
    %c0_14 = arith.constant 0 : index
    %13 = vector.load %arg6[%c0_13, %c0_14] : memref<1x256xf32, #tpu.memory_space<vmem>>, vector<1x256xf32>
    %14 = vector.broadcast %13 : vector<1x256xf32> to vector<56x256xf32>
    %15 = arith.addf %12, %14 : vector<56x256xf32>
    %cst_15 = arith.constant 0.000000e+00 : f32
    %16 = vector.broadcast %cst_15 : f32 to vector<56x256xf32>
    %17 = arith.maximumf %15, %16 : vector<56x256xf32>
    %18 = arith.truncf %17 : vector<56x256xf32> to vector<56x256xbf16>
    %c56 = arith.constant 56 : index
    %c0_16 = arith.constant 0 : index
    %19 = vector.load %arg19[%c56, %c0_16] : memref<112x256xbf16, #tpu.memory_space<vmem>>, vector<56x256xbf16>
    tpu.vector_store %arg19[%c56, %c0_16], %18 {strides = array<i32>} : memref<112x256xbf16, #tpu.memory_space<vmem>>, vector<56x256xbf16>,
    %c0_17 = arith.constant 0 : index
    %c0_18 = arith.constant 0 : index
    %20 = vector.load %arg19[%c0_17, %c0_18] : memref<112x256xbf16, #tpu.memory_space<vmem>>, vector<112x256xbf16>
    %c0_19 = arith.constant 0 : index
    %c0_20 = arith.constant 0 : index
    %21 = vector.load %arg7[%c0_19, %c0_20] : memref<256x128xbf16, #tpu.memory_space<vmem>>, vector<256x128xbf16>
    %cst_21 = arith.constant dense<0.000000e+00> : vector<112x128xf32>
    %22 = tpu.matmul %20, %21, %cst_21 {dimension_numbers = #tpu.dot_dimension_numbers<[1], [0], [0], [1], [0, 0, 1, 1], [], []>} : vector<112x256xbf16>, vector<256x128xbf16>, vector<112x128xf32> -> vector<112x128xf32>
    %c0_22 = arith.constant 0 : index
    %c0_23 = arith.constant 0 : index
    %23 = vector.load %arg8[%c0_22, %c0_23] : memref<1x128xf32, #tpu.memory_space<vmem>>, vector<1x128xf32>
    %24 = vector.broadcast %23 : vector<1x128xf32> to vector<112x128xf32>
    %25 = arith.addf %22, %24 : vector<112x128xf32>
    %26 = arith.truncf %25 : vector<112x128xf32> to vector<112x128xbf16>
    %c0_24 = arith.constant 0 : index
    %c0_25 = arith.constant 0 : index
    %27 = vector.load %arg9[%c0_24, %c0_25] : memref<128x128xbf16, #tpu.memory_space<vmem>>, vector<128x128xbf16>
    %cst_26 = arith.constant dense<0.000000e+00> : vector<112x128xf32>
    %28 = tpu.matmul %26, %27, %cst_26 {dimension_numbers = #tpu.dot_dimension_numbers<[1], [0], [0], [1], [0, 0, 1, 1], [], []>} : vector<112x128xbf16>, vector<128x128xbf16>, vector<112x128xf32> -> vector<112x128xf32>
    %c0_27 = arith.constant 0 : index
    %c0_28 = arith.constant 0 : index
    %29 = vector.load %arg10[%c0_27, %c0_28] : memref<1x128xf32, #tpu.memory_space<vmem>>, vector<1x128xf32>
    %30 = vector.broadcast %29 : vector<1x128xf32> to vector<112x128xf32>
    %31 = arith.addf %28, %30 : vector<112x128xf32>
    %32 = arith.truncf %31 : vector<112x128xf32> to vector<112x128xbf16>
    %c0_29 = arith.constant 0 : index
    %c0_30 = arith.constant 0 : index
    %33 = vector.load %arg11[%c0_29, %c0_30] : memref<128x128xbf16, #tpu.memory_space<vmem>>, vector<128x128xbf16>
    %cst_31 = arith.constant dense<0.000000e+00> : vector<112x128xf32>
    %34 = tpu.matmul %32, %33, %cst_31 {dimension_numbers = #tpu.dot_dimension_numbers<[1], [0], [0], [1], [0, 0, 1, 1], [], []>} : vector<112x128xbf16>, vector<128x128xbf16>, vector<112x128xf32> -> vector<112x128xf32>
    %c0_32 = arith.constant 0 : index
    %c0_33 = arith.constant 0 : index
    %35 = vector.load %arg12[%c0_32, %c0_33] : memref<1x128xf32, #tpu.memory_space<vmem>>, vector<1x128xf32>
    %36 = vector.broadcast %35 : vector<1x128xf32> to vector<112x128xf32>
    %37 = arith.addf %34, %36 : vector<112x128xf32>
    %38 = vector.extract_strided_slice %25 {offsets = [0, 0], sizes = [56, 128], strides = [1, 1]} : vector<112x128xf32> to vector<56x128xf32>
    %c0_34 = arith.constant 0 : index
    %c0_35 = arith.constant 0 : index
    %39 = vector.load %arg17[%c0_34, %c0_35] : memref<56x128xf32, #tpu.memory_space<vmem>>, vector<56x128xf32>
    tpu.vector_store %arg17[%c0_34, %c0_35], %38 {strides = array<i32>} : memref<56x128xf32, #tpu.memory_space<vmem>>, vector<56x128xf32>,
    %40 = vector.extract_strided_slice %25 {offsets = [56, 0], sizes = [56, 128], strides = [1, 1]} : vector<112x128xf32> to vector<56x128xf32>
    %c0_36 = arith.constant 0 : index
    %c0_37 = arith.constant 0 : index
    %41 = vector.load %arg18[%c0_36, %c0_37] : memref<56x128xf32, #tpu.memory_space<vmem>>, vector<56x128xf32>
    tpu.vector_store %arg18[%c0_36, %c0_37], %40 {strides = array<i32>} : memref<56x128xf32, #tpu.memory_space<vmem>>, vector<56x128xf32>,
    %42 = vector.extract_strided_slice %31 {offsets = [0, 0], sizes = [56, 128], strides = [1, 1]} : vector<112x128xf32> to vector<56x128xf32>
    %c0_38 = arith.constant 0 : index
    %c0_39 = arith.constant 0 : index
    %43 = vector.load %arg13[%c0_38, %c0_39] : memref<56x128xf32, #tpu.memory_space<vmem>>, vector<56x128xf32>
    tpu.vector_store %arg13[%c0_38, %c0_39], %42 {strides = array<i32>} : memref<56x128xf32, #tpu.memory_space<vmem>>, vector<56x128xf32>,
    %44 = vector.extract_strided_slice %31 {offsets = [56, 0], sizes = [56, 128], strides = [1, 1]} : vector<112x128xf32> to vector<56x128xf32>
    %c0_40 = arith.constant 0 : index
    %c0_41 = arith.constant 0 : index
    %45 = vector.load %arg14[%c0_40, %c0_41] : memref<56x128xf32, #tpu.memory_space<vmem>>, vector<56x128xf32>
    tpu.vector_store %arg14[%c0_40, %c0_41], %44 {strides = array<i32>} : memref<56x128xf32, #tpu.memory_space<vmem>>, vector<56x128xf32>,
    %46 = vector.extract_strided_slice %37 {offsets = [0, 0], sizes = [56, 128], strides = [1, 1]} : vector<112x128xf32> to vector<56x128xf32>
    %c0_42 = arith.constant 0 : index
    %c0_43 = arith.constant 0 : index
    %47 = vector.load %arg15[%c0_42, %c0_43] : memref<56x128xf32, #tpu.memory_space<vmem>>, vector<56x128xf32>
    tpu.vector_store %arg15[%c0_42, %c0_43], %46 {strides = array<i32>} : memref<56x128xf32, #tpu.memory_space<vmem>>, vector<56x128xf32>,
    %48 = vector.extract_strided_slice %37 {offsets = [56, 0], sizes = [56, 128], strides = [1, 1]} : vector<112x128xf32> to vector<56x128xf32>
    %c0_44 = arith.constant 0 : index
    %c0_45 = arith.constant 0 : index
    %49 = vector.load %arg16[%c0_44, %c0_45] : memref<56x128xf32, #tpu.memory_space<vmem>>, vector<56x128xf32>
    tpu.vector_store %arg16[%c0_44, %c0_45], %48 {strides = array<i32>} : memref<56x128xf32, #tpu.memory_space<vmem>>, vector<56x128xf32>,
    return
  }
  func.func @transform_0(%arg0: i32) -> (i32, i32) {
    %c0_i32 = arith.constant 0 : i32
    %c0_i32_0 = arith.constant 0 : i32
    return %arg0, %c0_i32 : i32, i32
  }
  func.func @transform_1(%arg0: i32) -> (i32, i32) {
    %c0_i32 = arith.constant 0 : i32
    %c0_i32_0 = arith.constant 0 : i32
    return %arg0, %c0_i32 : i32, i32
  }
  func.func @transform_2(%arg0: i32) -> (i32, i32) {
    %c0_i32 = arith.constant 0 : i32
    %c0_i32_0 = arith.constant 0 : i32
    %c0_i32_1 = arith.constant 0 : i32
    return %c0_i32, %c0_i32_0 : i32, i32
  }
  func.func @transform_3(%arg0: i32) -> (i32, i32) {
    %c0_i32 = arith.constant 0 : i32
    %c0_i32_0 = arith.constant 0 : i32
    %c0_i32_1 = arith.constant 0 : i32
    return %c0_i32, %c0_i32_0 : i32, i32
  }
  func.func @transform_4(%arg0: i32) -> (i32, i32) {
    %c0_i32 = arith.constant 0 : i32
    %c0_i32_0 = arith.constant 0 : i32
    %c0_i32_1 = arith.constant 0 : i32
    return %c0_i32, %c0_i32_0 : i32, i32
  }
  func.func @transform_5(%arg0: i32) -> (i32, i32) {
    %c0_i32 = arith.constant 0 : i32
    %c0_i32_0 = arith.constant 0 : i32
    %c0_i32_1 = arith.constant 0 : i32
    return %c0_i32, %c0_i32_0 : i32, i32
  }
  func.func @transform_6(%arg0: i32) -> (i32, i32) {
    %c0_i32 = arith.constant 0 : i32
    %c0_i32_0 = arith.constant 0 : i32
    %c0_i32_1 = arith.constant 0 : i32
    return %c0_i32, %c0_i32_0 : i32, i32
  }
  func.func @transform_7(%arg0: i32) -> (i32, i32) {
    %c0_i32 = arith.constant 0 : i32
    %c0_i32_0 = arith.constant 0 : i32
    %c0_i32_1 = arith.constant 0 : i32
    return %c0_i32, %c0_i32_0 : i32, i32
  }
  func.func @transform_8(%arg0: i32) -> (i32, i32) {
    %c0_i32 = arith.constant 0 : i32
    %c0_i32_0 = arith.constant 0 : i32
    %c0_i32_1 = arith.constant 0 : i32
    return %c0_i32, %c0_i32_0 : i32, i32
  }
  func.func @transform_9(%arg0: i32) -> (i32, i32) {
    %c0_i32 = arith.constant 0 : i32
    %c0_i32_0 = arith.constant 0 : i32
    %c0_i32_1 = arith.constant 0 : i32
    return %c0_i32, %c0_i32_0 : i32, i32
  }
  func.func @transform_10(%arg0: i32) -> (i32, i32) {
    %c0_i32 = arith.constant 0 : i32
    %c0_i32_0 = arith.constant 0 : i32
    %c0_i32_1 = arith.constant 0 : i32
    return %c0_i32, %c0_i32_0 : i32, i32
  }
  func.func @transform_11(%arg0: i32) -> (i32, i32) {
    %c0_i32 = arith.constant 0 : i32
    %c0_i32_0 = arith.constant 0 : i32
    %c0_i32_1 = arith.constant 0 : i32
    return %c0_i32, %c0_i32_0 : i32, i32
  }
  func.func @transform_12(%arg0: i32) -> (i32, i32) {
    %c0_i32 = arith.constant 0 : i32
    %c0_i32_0 = arith.constant 0 : i32
    return %arg0, %c0_i32 : i32, i32
  }
  func.func @transform_13(%arg0: i32) -> (i32, i32) {
    %c0_i32 = arith.constant 0 : i32
    %c0_i32_0 = arith.constant 0 : i32
    return %arg0, %c0_i32 : i32, i32
  }
  func.func @transform_14(%arg0: i32) -> (i32, i32) {
    %c0_i32 = arith.constant 0 : i32
    %c0_i32_0 = arith.constant 0 : i32
    return %arg0, %c0_i32 : i32, i32
  }
  func.func @transform_15(%arg0: i32) -> (i32, i32) {
    %c0_i32 = arith.constant 0 : i32
    %c0_i32_0 = arith.constant 0 : i32
    return %arg0, %c0_i32 : i32, i32
  }
  func.func @transform_16(%arg0: i32) -> (i32, i32) {
    %c0_i32 = arith.constant 0 : i32
    %c0_i32_0 = arith.constant 0 : i32
    return %arg0, %c0_i32 : i32, i32
  }
  func.func @transform_17(%arg0: i32) -> (i32, i32) {
    %c0_i32 = arith.constant 0 : i32
    %c0_i32_0 = arith.constant 0 : i32
    return %arg0, %c0_i32 : i32, i32
  }
}

</mosaic_0001>

<llo_original>
// kernel: drsc_nn_forward.1
$region0: #{drsc_nn_forward.1}
  #allocation0 [shape = 'u32[]', space=smem, size = 0x4, offset = 0x4, fixed_abs, tag = 'smem constant byte address 0x4 - core index']
  #allocation1 [shape = 'u32[144,128]{1,0:T(1,128)}', space=vmem, size = 0x12000, scoped, tag = 'internal scratch']
  #allocation2 [shape = 'bf16[112,256]{1,0:T(16,128)(2,1)}', space=vmem, size = 0xe000, scoped, tag = 'scratch operand']
  %s0 = inlined_call_operand.hbm [shape: bf16[224,128], index: 0, kind: input, shape index: {}]
  %s1 = inlined_call_operand.hbm [shape: bf16[224,128], index: 1, kind: input, shape index: {}]
  %s2 = inlined_call_operand.hbm [shape: bf16[128,256], index: 2, kind: input, shape index: {}]
  %s3 = inlined_call_operand.hbm [shape: f32[1,256], index: 3, kind: input, shape index: {}]
  %s4 = inlined_call_operand.hbm [shape: bf16[128,256], index: 4, kind: input, shape index: {}]
  %s5 = inlined_call_operand.hbm [shape: f32[1,256], index: 5, kind: input, shape index: {}]
  %s6 = inlined_call_operand.hbm [shape: bf16[256,128], index: 6, kind: input, shape index: {}]
  %s7 = inlined_call_operand.hbm [shape: f32[1,128], index: 7, kind: input, shape index: {}]
  %s8 = inlined_call_operand.hbm [shape: bf16[128,128], index: 8, kind: input, shape index: {}]
  %s9 = inlined_call_operand.hbm [shape: f32[1,128], index: 9, kind: input, shape index: {}]
  %s10 = inlined_call_operand.hbm [shape: bf16[128,128], index: 10, kind: input, shape index: {}]
  %s11 = inlined_call_operand.hbm [shape: f32[1,128], index: 11, kind: input, shape index: {}]
  %s12 = inlined_call_operand.hbm [shape: f32[224,128], index: 12, kind: output, shape index: {0}]
  %s13 = inlined_call_operand.hbm [shape: f32[224,128], index: 13, kind: output, shape index: {1}]
  %s14 = inlined_call_operand.hbm [shape: f32[224,128], index: 14, kind: output, shape index: {2}]
  %s15 = inlined_call_operand.hbm [shape: f32[224,128], index: 15, kind: output, shape index: {3}]
  %s16 = inlined_call_operand.hbm [shape: f32[224,128], index: 16, kind: output, shape index: {4}]
  %s17 = inlined_call_operand.hbm [shape: f32[224,128], index: 17, kind: output, shape index: {5}]
  %18 = xla_tuple %s12, %s13, %s14, %s15, %s16, %s17
  %s19 = sld [smem:[#allocation0]]
  $region169: #{drsc_nn_forward.1} parent=0
    _
  %s21 = ssub.s32 1, %s19
  %s22 = scalar_select 0, %s21, %s19
  $region1: #{drsc_nn_forward.1} parent=0
    #allocation3 [shape = 'u8[28672]{0}', space=vmem, size = 0x7000, scoped, tag = 'input window, operand 0']
    #allocation4 [shape = 's32[2]{0}', space=sflag, size = 0x8, scoped, tag = 'scoped memory for drsc_nn_forward.1']
    #allocation5 [shape = 's32[2]{0}', space=sflag, size = 0x8, scoped, tag = 'scoped memory for drsc_nn_forward.1']
    #allocation6 [shape = 'u8[28672]{0}', space=vmem, size = 0x7000, scoped, tag = 'input window, operand 1']
    #allocation7 [shape = 's32[2]{0}', space=sflag, size = 0x8, scoped, tag = 'scoped memory for drsc_nn_forward.1']
    #allocation8 [shape = 'u8[65536]{0}', space=vmem, size = 0x10000, scoped, tag = 'input window, operand 2, single buffered']
    #allocation9 [shape = 'u8[1024]{0}', space=vmem, size = 0x400, scoped, tag = 'input window, operand 3, single buffered']
    #allocation10 [shape = 's32[1]{0}', space=sflag, size = 0x4, scoped, tag = 'scoped memory for drsc_nn_forward.1']
    #allocation11 [shape = 'u8[65536]{0}', space=vmem, size = 0x10000, scoped, tag = 'input window, operand 4, single buffered']
    #allocation12 [shape = 'u8[1024]{0}', space=vmem, size = 0x400, scoped, tag = 'input window, operand 5, single buffered']
    #allocation13 [shape = 's32[1]{0}', space=sflag, size = 0x4, scoped, tag = 'scoped memory for drsc_nn_forward.1']
    #allocation14 [shape = 'u8[65536]{0}', space=vmem, size = 0x10000, scoped, tag = 'input window, operand 6, single buffered']
    #allocation15 [shape = 'u8[512]{0}', space=vmem, size = 0x400, scoped, tag = 'input window, operand 7, single buffered']
    #allocation16 [shape = 's32[1]{0}', space=sflag, size = 0x4, scoped, tag = 'scoped memory for drsc_nn_forward.1']
    #allocation17 [shape = 'u8[32768]{0}', space=vmem, size = 0x8000, scoped, tag = 'input window, operand 8, single buffered']
    #allocation18 [shape = 'u8[512]{0}', space=vmem, size = 0x400, scoped, tag = 'input window, operand 9, single buffered']
    #allocation19 [shape = 's32[1]{0}', space=sflag, size = 0x4, scoped, tag = 'scoped memory for drsc_nn_forward.1']
    #allocation20 [shape = 'u8[32768]{0}', space=vmem, size = 0x8000, scoped, tag = 'input window, operand 10, single buffered']
    #allocation21 [shape = 'u8[512]{0}', space=vmem, size = 0x400, scoped, tag = 'input window, operand 11, single buffered']
    #allocation22 [shape = 's32[1]{0}', space=sflag, size = 0x4, scoped, tag = 'scoped memory for drsc_nn_forward.1']
    #allocation23 [shape = 'u8[57344]{0}', space=vmem, size = 0xe000, scoped, tag = 'output window, operand 0']
    #allocation24 [shape = 'u8[57344]{0}', space=vmem, size = 0xe000, scoped, tag = 'output window, operand 1']
    #allocation25 [shape = 's32[2]{0}', space=sflag, size = 0x8, scoped, tag = 'scoped memory for drsc_nn_forward.1']
    #allocation26 [shape = 'u8[57344]{0}', space=vmem, size = 0xe000, scoped, tag = 'output window, operand 2']
    #allocation27 [shape = 'u8[57344]{0}', space=vmem, size = 0xe000, scoped, tag = 'output window, operand 3']
    #allocation28 [shape = 's32[2]{0}', space=sflag, size = 0x8, scoped, tag = 'scoped memory for drsc_nn_forward.1']
    #allocation29 [shape = 'u8[57344]{0}', space=vmem, size = 0xe000, scoped, tag = 'output window, operand 4']
    #allocation30 [shape = 'u8[57344]{0}', space=vmem, size = 0xe000, scoped, tag = 'output window, operand 5']
    #allocation31 [shape = 's32[2]{0}', space=sflag, size = 0x8, scoped, tag = 'scoped memory for drsc_nn_forward.1']
    %23 = vsyncpa [#allocation4], 0
    %s24 = scalar_lea.sflag [#allocation4], 1
    %25 = vsyncpa %s24, 0
    %26 = vsyncpa [#allocation7], 0
    %s27 = scalar_lea.sflag [#allocation7], 1
    %28 = vsyncpa %s27, 0
    %29 = vsyncpa [#allocation10], 0
    %30 = vsyncpa [#allocation13], 0
    %31 = vsyncpa [#allocation16], 0
    %32 = vsyncpa [#allocation19], 0
    %33 = vsyncpa [#allocation22], 0
    %34 = vsyncpa [#allocation5], 0
    %s35 = scalar_lea.sflag [#allocation5], 1
    %36 = vsyncpa %s35, 0
    %37 = vsyncpa [#allocation25], 0
    %s38 = scalar_lea.sflag [#allocation25], 1
    %39 = vsyncpa %s38, 0
    %40 = vsyncpa [#allocation28], 0
    %s41 = scalar_lea.sflag [#allocation28], 1
    %42 = vsyncpa %s41, 0
    %43 = vsyncpa [#allocation31], 0
    %s44 = scalar_lea.sflag [#allocation31], 1
    %45 = vsyncpa %s44, 0
    loop: start=0, step=1, limit=6
    $region2: #{drsc_nn_forward.1} parent=1 // loop_pre_header
      _
    $region3: #{drsc_nn_forward.1} parent=1 // loop_header
      %s47 = sphi 0, %s51
      %p48 = scmp.ge.s32.totalorder %s47, 6
      %s57 = sphi 0, %s59
      %s60 = sphi 0, %s57
      %s61 = sphi 0, %s60
      %s77 = sphi 0, %s61
      %s83 = sphi 0, %s85
      %s86 = sphi 0, %s83
      %s87 = sphi 0, %s86
      %s103 = sphi 0, %s87
      %s107 = sphi 0, %s107
      %s109 = sphi 0, %s107
      %s110 = sphi 0, %s109
      %s124 = sphi 0, %s110
      %s128 = sphi 0, %s128
      %s130 = sphi 0, %s128
      %s131 = sphi 0, %s130
      %s145 = sphi 0, %s131
      %s149 = sphi 0, %s149
      %s151 = sphi 0, %s149
      %s152 = sphi 0, %s151
      %s166 = sphi 0, %s152
      %s170 = sphi 0, %s170
      %s172 = sphi 0, %s170
      %s173 = sphi 0, %s172
      %s187 = sphi 0, %s173
      %s191 = sphi 0, %s191
      %s193 = sphi 0, %s191
      %s194 = sphi 0, %s193
      %s208 = sphi 0, %s194
      %s212 = sphi 0, %s212
      %s214 = sphi 0, %s212
      %s215 = sphi 0, %s214
      %s229 = sphi 0, %s215
      %s233 = sphi 0, %s233
      %s235 = sphi 0, %s233
      %s236 = sphi 0, %s235
      %s250 = sphi 0, %s236
      %s254 = sphi 0, %s254
      %s256 = sphi 0, %s254
      %s257 = sphi 0, %s256
      %s271 = sphi 0, %s257
      %s275 = sphi 0, %s275
      %s277 = sphi 0, %s275
      %s278 = sphi 0, %s277
      %s292 = sphi 0, %s278
      %s296 = sphi 0, %s296
      %s298 = sphi 0, %s296
      %s299 = sphi 0, %s298
      %s313 = sphi 0, %s299
      %s319 = sphi 0, %s321
      %s322 = sphi 0, %s319
      %s323 = sphi 0, %s322
      %s339 = sphi 0, %s323
      %s345 = sphi 0, %s347
      %s348 = sphi 0, %s345
      %s349 = sphi 0, %s348
      %s365 = sphi 0, %s349
      %s371 = sphi 0, %s373
      %s374 = sphi 0, %s371
      %s375 = sphi 0, %s374
      %s391 = sphi 0, %s375
      %s397 = sphi 0, %s399
      %s400 = sphi 0, %s397
      %s401 = sphi 0, %s400
      %s417 = sphi 0, %s401
      %s423 = sphi 0, %s425
      %s426 = sphi 0, %s423
      %s427 = sphi 0, %s426
      %s443 = sphi 0, %s427
      %s449 = sphi 0, %s451
      %s452 = sphi 0, %s449
      %s453 = sphi 0, %s452
      %s469 = sphi 0, %s453
    $region4: #{drsc_nn_forward.1} parent=1 // loop_header_branch
      %50 = sbr.rel (%p48) target = $region8
    $region5: #{drsc_nn_forward.1} parent=1 // loop_body
      %s52 = ssub.s32 %s47, 1
      %s53 = ssub.s32 %s47, 2
      %s54 = sadd.s32 %s47, 1
      %s55 = ssub.s32 %s47, %s54
      %p56 = scmp.eq.s32.totalorder %s55, 0
      %s58 = sadd.s32 %s57, 1
      %s59 = scalar_select %p56, %s57, %s58
      %p62 = pneg %p56
      %p63 = scmp.eq.s32.totalorder %s47, 3
      %p64 = por %p62, %p63
      %p65 = scmp.ne.s32.totalorder %s57, %s60
      %p66 = scmp.eq.s32.totalorder %s47, 0
      %p67 = por %p65, %p66
      %p68 = scmp.ne.s32.totalorder %s57, %s60
      %p69 = scmp.eq.s32.totalorder %s52, 3
      %p70 = por %p68, %p69
      %p71 = scmp.ne.s32.totalorder %s60, %s61
      %p72 = scmp.eq.s32.totalorder %s52, 0
      %p73 = por %p71, %p72
      %p74 = scmp.ne.s32.totalorder %s60, %s61
      %p75 = scmp.eq.s32.totalorder %s53, 3
      %p76 = por %p74, %p75
      %p78 = scmp.ne.s32.totalorder %s61, %s77
      %p79 = scmp.eq.s32.totalorder %s53, 0
      %p80 = por %p78, %p79
      %s81 = ssub.s32 %s47, %s54
      %p82 = scmp.eq.s32.totalorder %s81, 0
      %s84 = sadd.s32 %s83, 1
      %s85 = scalar_select %p82, %s83, %s84
      %p88 = pneg %p82
      %p89 = scmp.eq.s32.totalorder %s47, 3
      %p90 = por %p88, %p89
      %p91 = scmp.ne.s32.totalorder %s83, %s86
      %p92 = scmp.eq.s32.totalorder %s47, 0
      %p93 = por %p91, %p92
      %p94 = scmp.ne.s32.totalorder %s83, %s86
      %p95 = scmp.eq.s32.totalorder %s52, 3
      %p96 = por %p94, %p95
      %p97 = scmp.ne.s32.totalorder %s86, %s87
      %p98 = scmp.eq.s32.totalorder %s52, 0
      %p99 = por %p97, %p98
      %p100 = scmp.ne.s32.totalorder %s86, %s87
      %p101 = scmp.eq.s32.totalorder %s53, 3
      %p102 = por %p100, %p101
      %p104 = scmp.ne.s32.totalorder %s87, %s103
      %p105 = scmp.eq.s32.totalorder %s53, 0
      %p106 = por %p104, %p105
      %s108 = sadd.s32 %s107, 1
      %p111 = scmp.eq.s32.totalorder %s47, 3
      %p112 = scmp.ne.s32.totalorder %s107, %s109
      %p113 = scmp.eq.s32.totalorder %s47, 0
      %p114 = por %p112, %p113
      %p115 = scmp.ne.s32.totalorder %s107, %s109
      %p116 = scmp.eq.s32.totalorder %s52, 3
      %p117 = por %p115, %p116
      %p118 = scmp.ne.s32.totalorder %s109, %s110
      %p119 = scmp.eq.s32.totalorder %s52, 0
      %p120 = por %p118, %p119
      %p121 = scmp.ne.s32.totalorder %s109, %s110
      %p122 = scmp.eq.s32.totalorder %s53, 3
      %p123 = por %p121, %p122
      %p125 = scmp.ne.s32.totalorder %s110, %s124
      %p126 = scmp.eq.s32.totalorder %s53, 0
      %p127 = por %p125, %p126
      %s129 = sadd.s32 %s128, 1
      %p132 = scmp.eq.s32.totalorder %s47, 3
      %p133 = scmp.ne.s32.totalorder %s128, %s130
      %p134 = scmp.eq.s32.totalorder %s47, 0
      %p135 = por %p133, %p134
      %p136 = scmp.ne.s32.totalorder %s128, %s130
      %p137 = scmp.eq.s32.totalorder %s52, 3
      %p138 = por %p136, %p137
      %p139 = scmp.ne.s32.totalorder %s130, %s131
      %p140 = scmp.eq.s32.totalorder %s52, 0
      %p141 = por %p139, %p140
      %p142 = scmp.ne.s32.totalorder %s130, %s131
      %p143 = scmp.eq.s32.totalorder %s53, 3
      %p144 = por %p142, %p143
      %p146 = scmp.ne.s32.totalorder %s131, %s145
      %p147 = scmp.eq.s32.totalorder %s53, 0
      %p148 = por %p146, %p147
      %s150 = sadd.s32 %s149, 1
      %p153 = scmp.eq.s32.totalorder %s47, 3
      %p154 = scmp.ne.s32.totalorder %s149, %s151
      %p155 = scmp.eq.s32.totalorder %s47, 0
      %p156 = por %p154, %p155
      %p157 = scmp.ne.s32.totalorder %s149, %s151
      %p158 = scmp.eq.s32.totalorder %s52, 3
      %p159 = por %p157, %p158
      %p160 = scmp.ne.s32.totalorder %s151, %s152
      %p161 = scmp.eq.s32.totalorder %s52, 0
      %p162 = por %p160, %p161
      %p163 = scmp.ne.s32.totalorder %s151, %s152
      %p164 = scmp.eq.s32.totalorder %s53, 3
      %p165 = por %p163, %p164
      %p167 = scmp.ne.s32.totalorder %s152, %s166
      %p168 = scmp.eq.s32.totalorder %s53, 0
      %p169 = por %p167, %p168
      %s171 = sadd.s32 %s170, 1
      %p174 = scmp.eq.s32.totalorder %s47, 3
      %p175 = scmp.ne.s32.totalorder %s170, %s172
      %p176 = scmp.eq.s32.totalorder %s47, 0
      %p177 = por %p175, %p176
      %p178 = scmp.ne.s32.totalorder %s170, %s172
      %p179 = scmp.eq.s32.totalorder %s52, 3
      %p180 = por %p178, %p179
      %p181 = scmp.ne.s32.totalorder %s172, %s173
      %p182 = scmp.eq.s32.totalorder %s52, 0
      %p183 = por %p181, %p182
      %p184 = scmp.ne.s32.totalorder %s172, %s173
      %p185 = scmp.eq.s32.totalorder %s53, 3
      %p186 = por %p184, %p185
      %p188 = scmp.ne.s32.totalorder %s173, %s187
      %p189 = scmp.eq.s32.totalorder %s53, 0
      %p190 = por %p188, %p189
      %s192 = sadd.s32 %s191, 1
      %p195 = scmp.eq.s32.totalorder %s47, 3
      %p196 = scmp.ne.s32.totalorder %s191, %s193
      %p197 = scmp.eq.s32.totalorder %s47, 0
      %p198 = por %p196, %p197
      %p199 = scmp.ne.s32.totalorder %s191, %s193
      %p200 = scmp.eq.s32.totalorder %s52, 3
      %p201 = por %p199, %p200
      %p202 = scmp.ne.s32.totalorder %s193, %s194
      %p203 = scmp.eq.s32.totalorder %s52, 0
      %p204 = por %p202, %p203
      %p205 = scmp.ne.s32.totalorder %s193, %s194
      %p206 = scmp.eq.s32.totalorder %s53, 3
      %p207 = por %p205, %p206
      %p209 = scmp.ne.s32.totalorder %s194, %s208
      %p210 = scmp.eq.s32.totalorder %s53, 0
      %p211 = por %p209, %p210
      %s213 = sadd.s32 %s212, 1
      %p216 = scmp.eq.s32.totalorder %s47, 3
      %p217 = scmp.ne.s32.totalorder %s212, %s214
      %p218 = scmp.eq.s32.totalorder %s47, 0
      %p219 = por %p217, %p218
      %p220 = scmp.ne.s32.totalorder %s212, %s214
      %p221 = scmp.eq.s32.totalorder %s52, 3
      %p222 = por %p220, %p221
      %p223 = scmp.ne.s32.totalorder %s214, %s215
      %p224 = scmp.eq.s32.totalorder %s52, 0
      %p225 = por %p223, %p224
      %p226 = scmp.ne.s32.totalorder %s214, %s215
      %p227 = scmp.eq.s32.totalorder %s53, 3
      %p228 = por %p226, %p227
      %p230 = scmp.ne.s32.totalorder %s215, %s229
      %p231 = scmp.eq.s32.totalorder %s53, 0
      %p232 = por %p230, %p231
      %s234 = sadd.s32 %s233, 1
      %p237 = scmp.eq.s32.totalorder %s47, 3
      %p238 = scmp.ne.s32.totalorder %s233, %s235
      %p239 = scmp.eq.s32.totalorder %s47, 0
      %p240 = por %p238, %p239
      %p241 = scmp.ne.s32.totalorder %s233, %s235
      %p242 = scmp.eq.s32.totalorder %s52, 3
      %p243 = por %p241, %p242
      %p244 = scmp.ne.s32.totalorder %s235, %s236
      %p245 = scmp.eq.s32.totalorder %s52, 0
      %p246 = por %p244, %p245
      %p247 = scmp.ne.s32.totalorder %s235, %s236
      %p248 = scmp.eq.s32.totalorder %s53, 3
      %p249 = por %p247, %p248
      %p251 = scmp.ne.s32.totalorder %s236, %s250
      %p252 = scmp.eq.s32.totalorder %s53, 0
      %p253 = por %p251, %p252
      %s255 = sadd.s32 %s254, 1
      %p258 = scmp.eq.s32.totalorder %s47, 3
      %p259 = scmp.ne.s32.totalorder %s254, %s256
      %p260 = scmp.eq.s32.totalorder %s47, 0
      %p261 = por %p259, %p260
      %p262 = scmp.ne.s32.totalorder %s254, %s256
      %p263 = scmp.eq.s32.totalorder %s52, 3
      %p264 = por %p262, %p263
      %p265 = scmp.ne.s32.totalorder %s256, %s257
      %p266 = scmp.eq.s32.totalorder %s52, 0
      %p267 = por %p265, %p266
      %p268 = scmp.ne.s32.totalorder %s256, %s257
      %p269 = scmp.eq.s32.totalorder %s53, 3
      %p270 = por %p268, %p269
      %p272 = scmp.ne.s32.totalorder %s257, %s271
      %p273 = scmp.eq.s32.totalorder %s53, 0
      %p274 = por %p272, %p273
      %s276 = sadd.s32 %s275, 1
      %p279 = scmp.eq.s32.totalorder %s47, 3
      %p280 = scmp.ne.s32.totalorder %s275, %s277
      %p281 = scmp.eq.s32.totalorder %s47, 0
      %p282 = por %p280, %p281
      %p283 = scmp.ne.s32.totalorder %s275, %s277
      %p284 = scmp.eq.s32.totalorder %s52, 3
      %p285 = por %p283, %p284
      %p286 = scmp.ne.s32.totalorder %s277, %s278
      %p287 = scmp.eq.s32.totalorder %s52, 0
      %p288 = por %p286, %p287
      %p289 = scmp.ne.s32.totalorder %s277, %s278
      %p290 = scmp.eq.s32.totalorder %s53, 3
      %p291 = por %p289, %p290
      %p293 = scmp.ne.s32.totalorder %s278, %s292
      %p294 = scmp.eq.s32.totalorder %s53, 0
      %p295 = por %p293, %p294
      %s297 = sadd.s32 %s296, 1
      %p300 = scmp.eq.s32.totalorder %s47, 3
      %p301 = scmp.ne.s32.totalorder %s296, %s298
      %p302 = scmp.eq.s32.totalorder %s47, 0
      %p303 = por %p301, %p302
      %p304 = scmp.ne.s32.totalorder %s296, %s298
      %p305 = scmp.eq.s32.totalorder %s52, 3
      %p306 = por %p304, %p305
      %p307 = scmp.ne.s32.totalorder %s298, %s299
      %p308 = scmp.eq.s32.totalorder %s52, 0
      %p309 = por %p307, %p308
      %p310 = scmp.ne.s32.totalorder %s298, %s299
      %p311 = scmp.eq.s32.totalorder %s53, 3
      %p312 = por %p310, %p311
      %p314 = scmp.ne.s32.totalorder %s299, %s313
      %p315 = scmp.eq.s32.totalorder %s53, 0
      %p316 = por %p314, %p315
      %s317 = ssub.s32 %s47, %s54
      %p318 = scmp.eq.s32.totalorder %s317, 0
      %s320 = sadd.s32 %s319, 1
      %s321 = scalar_select %p318, %s319, %s320
      %p324 = pneg %p318
      %p325 = scmp.eq.s32.totalorder %s47, 3
      %p326 = por %p324, %p325
      %p327 = scmp.ne.s32.totalorder %s319, %s322
      %p328 = scmp.eq.s32.totalorder %s47, 0
      %p329 = por %p327, %p328
      %p330 = scmp.ne.s32.totalorder %s319, %s322
      %p331 = scmp.eq.s32.totalorder %s52, 3
      %p332 = por %p330, %p331
      %p333 = scmp.ne.s32.totalorder %s322, %s323
      %p334 = scmp.eq.s32.totalorder %s52, 0
      %p335 = por %p333, %p334
      %p336 = scmp.ne.s32.totalorder %s322, %s323
      %p337 = scmp.eq.s32.totalorder %s53, 3
      %p338 = por %p336, %p337
      %p340 = scmp.ne.s32.totalorder %s323, %s339
      %p341 = scmp.eq.s32.totalorder %s53, 0
      %p342 = por %p340, %p341
      %s343 = ssub.s32 %s47, %s54
      %p344 = scmp.eq.s32.totalorder %s343, 0
      %s346 = sadd.s32 %s345, 1
      %s347 = scalar_select %p344, %s345, %s346
      %p350 = pneg %p344
      %p351 = scmp.eq.s32.totalorder %s47, 3
      %p352 = por %p350, %p351
      %p353 = scmp.ne.s32.totalorder %s345, %s348
      %p354 = scmp.eq.s32.totalorder %s47, 0
      %p355 = por %p353, %p354
      %p356 = scmp.ne.s32.totalorder %s345, %s348
      %p357 = scmp.eq.s32.totalorder %s52, 3
      %p358 = por %p356, %p357
      %p359 = scmp.ne.s32.totalorder %s348, %s349
      %p360 = scmp.eq.s32.totalorder %s52, 0
      %p361 = por %p359, %p360
      %p362 = scmp.ne.s32.totalorder %s348, %s349
      %p363 = scmp.eq.s32.totalorder %s53, 3
      %p364 = por %p362, %p363
      %p366 = scmp.ne.s32.totalorder %s349, %s365
      %p367 = scmp.eq.s32.totalorder %s53, 0
      %p368 = por %p366, %p367
      %s369 = ssub.s32 %s47, %s54
      %p370 = scmp.eq.s32.totalorder %s369, 0
      %s372 = sadd.s32 %s371, 1
      %s373 = scalar_select %p370, %s371, %s372
      %p376 = pneg %p370
      %p377 = scmp.eq.s32.totalorder %s47, 3
      %p378 = por %p376, %p377
      %p379 = scmp.ne.s32.totalorder %s371, %s374
      %p380 = scmp.eq.s32.totalorder %s47, 0
      %p381 = por %p379, %p380
      %p382 = scmp.ne.s32.totalorder %s371, %s374
      %p383 = scmp.eq.s32.totalorder %s52, 3
      %p384 = por %p382, %p383
      %p385 = scmp.ne.s32.totalorder %s374, %s375
      %p386 = scmp.eq.s32.totalorder %s52, 0
      %p387 = por %p385, %p386
      %p388 = scmp.ne.s32.totalorder %s374, %s375
      %p389 = scmp.eq.s32.totalorder %s53, 3
      %p390 = por %p388, %p389
      %p392 = scmp.ne.s32.totalorder %s375, %s391
      %p393 = scmp.eq.s32.totalorder %s53, 0
      %p394 = por %p392, %p393
      %s395 = ssub.s32 %s47, %s54
      %p396 = scmp.eq.s32.totalorder %s395, 0
      %s398 = sadd.s32 %s397, 1
      %s399 = scalar_select %p396, %s397, %s398
      %p402 = pneg %p396
      %p403 = scmp.eq.s32.totalorder %s47, 3
      %p404 = por %p402, %p403
      %p405 = scmp.ne.s32.totalorder %s397, %s400
      %p406 = scmp.eq.s32.totalorder %s47, 0
      %p407 = por %p405, %p406
      %p408 = scmp.ne.s32.totalorder %s397, %s400
      %p409 = scmp.eq.s32.totalorder %s52, 3
      %p410 = por %p408, %p409
      %p411 = scmp.ne.s32.totalorder %s400, %s401
      %p412 = scmp.eq.s32.totalorder %s52, 0
      %p413 = por %p411, %p412
      %p414 = scmp.ne.s32.totalorder %s400, %s401
      %p415 = scmp.eq.s32.totalorder %s53, 3
      %p416 = por %p414, %p415
      %p418 = scmp.ne.s32.totalorder %s401, %s417
      %p419 = scmp.eq.s32.totalorder %s53, 0
      %p420 = por %p418, %p419
      %s421 = ssub.s32 %s47, %s54
      %p422 = scmp.eq.s32.totalorder %s421, 0
      %s424 = sadd.s32 %s423, 1
      %s425 = scalar_select %p422, %s423, %s424
      %p428 = pneg %p422
      %p429 = scmp.eq.s32.totalorder %s47, 3
      %p430 = por %p428, %p429
      %p431 = scmp.ne.s32.totalorder %s423, %s426
      %p432 = scmp.eq.s32.totalorder %s47, 0
      %p433 = por %p431, %p432
      %p434 = scmp.ne.s32.totalorder %s423, %s426
      %p435 = scmp.eq.s32.totalorder %s52, 3
      %p436 = por %p434, %p435
      %p437 = scmp.ne.s32.totalorder %s426, %s427
      %p438 = scmp.eq.s32.totalorder %s52, 0
      %p439 = por %p437, %p438
      %p440 = scmp.ne.s32.totalorder %s426, %s427
      %p441 = scmp.eq.s32.totalorder %s53, 3
      %p442 = por %p440, %p441
      %p444 = scmp.ne.s32.totalorder %s427, %s443
      %p445 = scmp.eq.s32.totalorder %s53, 0
      %p446 = por %p444, %p445
      %s447 = ssub.s32 %s47, %s54
      %p448 = scmp.eq.s32.totalorder %s447, 0
      %s450 = sadd.s32 %s449, 1
      %s451 = scalar_select %p448, %s449, %s450
      %p454 = pneg %p448
      %p455 = scmp.eq.s32.totalorder %s47, 3
      %p456 = por %p454, %p455
      %p457 = scmp.ne.s32.totalorder %s449, %s452
      %p458 = scmp.eq.s32.totalorder %s47, 0
      %p459 = por %p457, %p458
      %p460 = scmp.ne.s32.totalorder %s449, %s452
      %p461 = scmp.eq.s32.totalorder %s52, 3
      %p462 = por %p460, %p461
      %p463 = scmp.ne.s32.totalorder %s452, %s453
      %p464 = scmp.eq.s32.totalorder %s52, 0
      %p465 = por %p463, %p464
      %p466 = scmp.ne.s32.totalorder %s452, %s453
      %p467 = scmp.eq.s32.totalorder %s53, 3
      %p468 = por %p466, %p467
      %p470 = scmp.ne.s32.totalorder %s453, %s469
      %p471 = scmp.eq.s32.totalorder %s53, 0
      %p472 = por %p470, %p471
      %p473 = scmp.le.s32.totalorder 1, %s47
      %p474 = scmp.lt.s32.totalorder %s47, 5
      %p475 = pnand %p473, %p474
      %p476 = pneg %p475
      // Predicated region
      $region9: #{drsc_nn_forward.1} parent=5 // pred_check
        _
      $region10: #{drsc_nn_forward.1} parent=5 // pred_check_branch
        %478 = sbr.rel (%p475) target = $region12
      $region11: #{drsc_nn_forward.1} parent=5 // pred_region
        %s479 = ssub.s32 %s47, 1
        // Predicated region
        $region13: #{drsc_nn_forward.1} parent=11 // pred_check
          %p480 = pneg %p120
        $region14: #{drsc_nn_forward.1} parent=11 // pred_check_branch
          %482 = sbr.rel (%p480) target = $region16
        $region15: #{drsc_nn_forward.1} parent=11 // pred_region
          %s484 = ssub.s32 2048, 2048
          %485 = vsyncadd [#allocation7], %s484
          %s486 = sshll.u32 [#allocation8], 4
          %s487 = int_to_ptr.vmem [resolvable:$true] %s486
          %492 = dma.hbm_to_vmem [thread:$0]  %s2, 2048, %s487, [#allocation7], 128, 128, 8
        $region16: #{drsc_nn_forward.1} parent=11 // pred_fallthru
          _
        // Predicated region
        $region17: #{drsc_nn_forward.1} parent=11 // pred_check
          %p493 = pneg %p141
        $region18: #{drsc_nn_forward.1} parent=11 // pred_check_branch
          %495 = sbr.rel (%p493) target = $region20
        $region19: #{drsc_nn_forward.1} parent=11 // pred_region
          %s497 = ssub.s32 32, 32
          %498 = vsyncadd [#allocation10], %s497
          %s500 = sshll.u32 [#allocation9], 4
          %s501 = int_to_ptr.vmem [resolvable:$true] %s500
          %503 = dma.hbm_to_vmem [thread:$0]  %s3, 32, %s501, [#allocation10]
        $region20: #{drsc_nn_forward.1} parent=11 // pred_fallthru
          _
        // Predicated region
        $region21: #{drsc_nn_forward.1} parent=11 // pred_check
          %p504 = pneg %p162
        $region22: #{drsc_nn_forward.1} parent=11 // pred_check_branch
          %506 = sbr.rel (%p504) target = $region24
        $region23: #{drsc_nn_forward.1} parent=11 // pred_region
          %s508 = ssub.s32 2048, 2048
          %509 = vsyncadd [#allocation10], %s508
          %s510 = sshll.u32 [#allocation11], 4
          %s511 = int_to_ptr.vmem [resolvable:$true] %s510
          %516 = dma.hbm_to_vmem [thread:$0]  %s4, 2048, %s511, [#allocation10], 128, 128, 8
        $region24: #{drsc_nn_forward.1} parent=11 // pred_fallthru
          _
        // Predicated region
        $region25: #{drsc_nn_forward.1} parent=11 // pred_check
          %p517 = pneg %p183
        $region26: #{drsc_nn_forward.1} parent=11 // pred_check_branch
          %519 = sbr.rel (%p517) target = $region28
        $region27: #{drsc_nn_forward.1} parent=11 // pred_region
          %s521 = ssub.s32 32, 32
          %522 = vsyncadd [#allocation13], %s521
          %s524 = sshll.u32 [#allocation12], 4
          %s525 = int_to_ptr.vmem [resolvable:$true] %s524
          %527 = dma.hbm_to_vmem [thread:$0]  %s5, 32, %s525, [#allocation13]
        $region28: #{drsc_nn_forward.1} parent=11 // pred_fallthru
          _
        // Predicated region
        $region29: #{drsc_nn_forward.1} parent=11 // pred_check
          %p528 = pneg %p204
        $region30: #{drsc_nn_forward.1} parent=11 // pred_check_branch
          %530 = sbr.rel (%p528) target = $region32
        $region31: #{drsc_nn_forward.1} parent=11 // pred_region
          %s532 = ssub.s32 2048, 2048
          %533 = vsyncadd [#allocation13], %s532
          %s534 = sshll.u32 [#allocation14], 4
          %s535 = int_to_ptr.vmem [resolvable:$true] %s534
          %540 = dma.hbm_to_vmem [thread:$0]  %s6, 2048, %s535, [#allocation13], 64, 64, 4
        $region32: #{drsc_nn_forward.1} parent=11 // pred_fallthru
          _
        // Predicated region
        $region33: #{drsc_nn_forward.1} parent=11 // pred_check
          %p541 = pneg %p225
        $region34: #{drsc_nn_forward.1} parent=11 // pred_check_branch
          %543 = sbr.rel (%p541) target = $region36
        $region35: #{drsc_nn_forward.1} parent=11 // pred_region
          %s545 = ssub.s32 16, 16
          %546 = vsyncadd [#allocation16], %s545
          %s548 = sshll.u32 [#allocation15], 4
          %s549 = int_to_ptr.vmem [resolvable:$true] %s548
          %551 = dma.hbm_to_vmem [thread:$0]  %s7, 16, %s549, [#allocation16]
        $region36: #{drsc_nn_forward.1} parent=11 // pred_fallthru
          _
        // Predicated region
        $region37: #{drsc_nn_forward.1} parent=11 // pred_check
          %p552 = pneg %p246
        $region38: #{drsc_nn_forward.1} parent=11 // pred_check_branch
          %554 = sbr.rel (%p552) target = $region40
        $region39: #{drsc_nn_forward.1} parent=11 // pred_region
          %s556 = ssub.s32 1024, 1024
          %557 = vsyncadd [#allocation16], %s556
          %s558 = sshll.u32 [#allocation17], 4
          %s559 = int_to_ptr.vmem [resolvable:$true] %s558
          %564 = dma.hbm_to_vmem [thread:$0]  %s8, 1024, %s559, [#allocation16], 64, 64, 4
        $region40: #{drsc_nn_forward.1} parent=11 // pred_fallthru
          _
        // Predicated region
        $region41: #{drsc_nn_forward.1} parent=11 // pred_check
          %p565 = pneg %p267
        $region42: #{drsc_nn_forward.1} parent=11 // pred_check_branch
          %567 = sbr.rel (%p565) target = $region44
        $region43: #{drsc_nn_forward.1} parent=11 // pred_region
          %s569 = ssub.s32 16, 16
          %570 = vsyncadd [#allocation19], %s569
          %s572 = sshll.u32 [#allocation18], 4
          %s573 = int_to_ptr.vmem [resolvable:$true] %s572
          %575 = dma.hbm_to_vmem [thread:$0]  %s9, 16, %s573, [#allocation19]
        $region44: #{drsc_nn_forward.1} parent=11 // pred_fallthru
          _
        // Predicated region
        $region45: #{drsc_nn_forward.1} parent=11 // pred_check
          %p576 = pneg %p288
        $region46: #{drsc_nn_forward.1} parent=11 // pred_check_branch
          %578 = sbr.rel (%p576) target = $region48
        $region47: #{drsc_nn_forward.1} parent=11 // pred_region
          %s580 = ssub.s32 1024, 1024
          %581 = vsyncadd [#allocation19], %s580
          %s582 = sshll.u32 [#allocation20], 4
          %s583 = int_to_ptr.vmem [resolvable:$true] %s582
          %588 = dma.hbm_to_vmem [thread:$0]  %s10, 1024, %s583, [#allocation19], 64, 64, 4
        $region48: #{drsc_nn_forward.1} parent=11 // pred_fallthru
          _
        // Predicated region
        $region49: #{drsc_nn_forward.1} parent=11 // pred_check
          %p589 = pneg %p309
        $region50: #{drsc_nn_forward.1} parent=11 // pred_check_branch
          %591 = sbr.rel (%p589) target = $region52
        $region51: #{drsc_nn_forward.1} parent=11 // pred_region
          %s593 = ssub.s32 16, 16
          %594 = vsyncadd [#allocation22], %s593
          %s596 = sshll.u32 [#allocation21], 4
          %s597 = int_to_ptr.vmem [resolvable:$true] %s596
          %599 = dma.hbm_to_vmem [thread:$0]  %s11, 16, %s597, [#allocation22]
        $region52: #{drsc_nn_forward.1} parent=11 // pred_fallthru
          _
      $region12: #{drsc_nn_forward.1} parent=5 // pred_fallthru
        _
      %p600 = scmp.lt.s32.totalorder %s47, 4
      // Predicated region
      $region53: #{drsc_nn_forward.1} parent=5 // pred_check
        %p601 = pneg %p600
      $region54: #{drsc_nn_forward.1} parent=5 // pred_check_branch
        %603 = sbr.rel (%p601) target = $region56
      $region55: #{drsc_nn_forward.1} parent=5 // pred_region
        // Predicated region
        $region57: #{drsc_nn_forward.1} parent=55 // pred_check
          %p604 = pneg %p67
        $region58: #{drsc_nn_forward.1} parent=55 // pred_check_branch
          %606 = sbr.rel (%p604) target = $region60
        $region59: #{drsc_nn_forward.1} parent=55 // pred_region
          %s607 = sand.u32 %s57, 1
          %s608 = scalar_lea.sflag [#allocation4], %s607
          %s609 = sand.u32 %s57, 1
          %s610 = smul.addr %s609, 28
          %s611 = scalar_lea.vmem [#allocation3], %s610
          %s612 = smul.u32 7, %s47
          %s614 = ssub.s32 448, 448
          %615 = vsyncadd %s608, %s614
          %s616 = smul.addr %s612, 64
          %s617 = scalar_lea.hbm %s0, %s616
          %s618 = sshll.u32 %s611, 4
          %s619 = int_to_ptr.vmem [resolvable:$true] %s618
          %624 = dma.hbm_to_vmem [thread:$0]  %s617, 448, %s619, %s608, 64, 64, 4
        $region60: #{drsc_nn_forward.1} parent=55 // pred_fallthru
          _
        // Predicated region
        $region61: #{drsc_nn_forward.1} parent=55 // pred_check
          %p625 = pneg %p93
        $region62: #{drsc_nn_forward.1} parent=55 // pred_check_branch
          %627 = sbr.rel (%p625) target = $region64
        $region63: #{drsc_nn_forward.1} parent=55 // pred_region
          %s628 = sand.u32 %s47, 1
          %s629 = scalar_lea.sflag [#allocation7], %s628
          %s630 = sand.u32 %s83, 1
          %s631 = smul.addr %s630, 28
          %s632 = scalar_lea.vmem [#allocation6], %s631
          %s633 = smul.u32 7, %s47
          %s635 = ssub.s32 448, 448
          %636 = vsyncadd %s629, %s635
          %s637 = smul.addr %s633, 64
          %s638 = scalar_lea.hbm %s1, %s637
          %s639 = sshll.u32 %s632, 4
          %s640 = int_to_ptr.vmem [resolvable:$true] %s639
          %645 = dma.hbm_to_vmem [thread:$0]  %s638, 448, %s640, %s629, 64, 64, 4
        $region64: #{drsc_nn_forward.1} parent=55 // pred_fallthru
          _
      $region56: #{drsc_nn_forward.1} parent=5 // pred_fallthru
        _
      %p646 = scmp.le.s32.totalorder 1, %s47
      %p647 = scmp.lt.s32.totalorder %s47, 5
      %p648 = pnand %p646, %p647
      %p649 = pneg %p648
      // Predicated region
      $region65: #{drsc_nn_forward.1} parent=5 // pred_check
        _
      $region66: #{drsc_nn_forward.1} parent=5 // pred_check_branch
        %651 = sbr.rel (%p648) target = $region68
      $region67: #{drsc_nn_forward.1} parent=5 // pred_region
        %s652 = ssub.s32 %s47, 1
        %s653 = sand.u32 %s60, 1
        %s654 = scalar_lea.sflag [#allocation4], %s653
        %s655 = sand.u32 %s60, 1
        %s656 = smul.addr %s655, 28
        %s657 = scalar_lea.vmem [#allocation3], %s656
        // Predicated region
        $region69: #{drsc_nn_forward.1} parent=67 // pred_check
          %p658 = pneg %p73
        $region70: #{drsc_nn_forward.1} parent=67 // pred_check_branch
          %660 = sbr.rel (%p658) target = $region72
        $region71: #{drsc_nn_forward.1} parent=67 // pred_region
          %661 = dma.done %s654, 448
        $region72: #{drsc_nn_forward.1} parent=67 // pred_fallthru
          _
        %s662 = sand.u32 %s52, 1
        %s663 = scalar_lea.sflag [#allocation7], %s662
        %s664 = sand.u32 %s86, 1
        %s665 = smul.addr %s664, 28
        %s666 = scalar_lea.vmem [#allocation6], %s665
        // Predicated region
        $region73: #{drsc_nn_forward.1} parent=67 // pred_check
          %p667 = pneg %p99
        $region74: #{drsc_nn_forward.1} parent=67 // pred_check_branch
          %669 = sbr.rel (%p667) target = $region76
        $region75: #{drsc_nn_forward.1} parent=67 // pred_region
          %670 = dma.done %s663, 448
        $region76: #{drsc_nn_forward.1} parent=67 // pred_fallthru
          _
        // Predicated region
        $region77: #{drsc_nn_forward.1} parent=67 // pred_check
          %p671 = pneg %p120
        $region78: #{drsc_nn_forward.1} parent=67 // pred_check_branch
          %673 = sbr.rel (%p671) target = $region80
        $region79: #{drsc_nn_forward.1} parent=67 // pred_region
          %674 = dma.done [#allocation7], 2048
        $region80: #{drsc_nn_forward.1} parent=67 // pred_fallthru
          _
        // Predicated region
        $region81: #{drsc_nn_forward.1} parent=67 // pred_check
          %p675 = pneg %p141
        $region82: #{drsc_nn_forward.1} parent=67 // pred_check_branch
          %677 = sbr.rel (%p675) target = $region84
        $region83: #{drsc_nn_forward.1} parent=67 // pred_region
          %678 = dma.done [#allocation10], 32
        $region84: #{drsc_nn_forward.1} parent=67 // pred_fallthru
          _
        // Predicated region
        $region85: #{drsc_nn_forward.1} parent=67 // pred_check
          %p679 = pneg %p162
        $region86: #{drsc_nn_forward.1} parent=67 // pred_check_branch
          %681 = sbr.rel (%p679) target = $region88
        $region87: #{drsc_nn_forward.1} parent=67 // pred_region
          %682 = dma.done [#allocation10], 2048
        $region88: #{drsc_nn_forward.1} parent=67 // pred_fallthru
          _
        // Predicated region
        $region89: #{drsc_nn_forward.1} parent=67 // pred_check
          %p683 = pneg %p183
        $region90: #{drsc_nn_forward.1} parent=67 // pred_check_branch
          %685 = sbr.rel (%p683) target = $region92
        $region91: #{drsc_nn_forward.1} parent=67 // pred_region
          %686 = dma.done [#allocation13], 32
        $region92: #{drsc_nn_forward.1} parent=67 // pred_fallthru
          _
        // Predicated region
        $region93: #{drsc_nn_forward.1} parent=67 // pred_check
          %p687 = pneg %p204
        $region94: #{drsc_nn_forward.1} parent=67 // pred_check_branch
          %689 = sbr.rel (%p687) target = $region96
        $region95: #{drsc_nn_forward.1} parent=67 // pred_region
          %690 = dma.done [#allocation13], 2048
        $region96: #{drsc_nn_forward.1} parent=67 // pred_fallthru
          _
        // Predicated region
        $region97: #{drsc_nn_forward.1} parent=67 // pred_check
          %p691 = pneg %p225
        $region98: #{drsc_nn_forward.1} parent=67 // pred_check_branch
          %693 = sbr.rel (%p691) target = $region100
        $region99: #{drsc_nn_forward.1} parent=67 // pred_region
          %694 = dma.done [#allocation16], 16
        $region100: #{drsc_nn_forward.1} parent=67 // pred_fallthru
          _
        // Predicated region
        $region101: #{drsc_nn_forward.1} parent=67 // pred_check
          %p695 = pneg %p246
        $region102: #{drsc_nn_forward.1} parent=67 // pred_check_branch
          %697 = sbr.rel (%p695) target = $region104
        $region103: #{drsc_nn_forward.1} parent=67 // pred_region
          %698 = dma.done [#allocation16], 1024
        $region104: #{drsc_nn_forward.1} parent=67 // pred_fallthru
          _
        // Predicated region
        $region105: #{drsc_nn_forward.1} parent=67 // pred_check
          %p699 = pneg %p267
        $region106: #{drsc_nn_forward.1} parent=67 // pred_check_branch
          %701 = sbr.rel (%p699) target = $region108
        $region107: #{drsc_nn_forward.1} parent=67 // pred_region
          %702 = dma.done [#allocation19], 16
        $region108: #{drsc_nn_forward.1} parent=67 // pred_fallthru
          _
        // Predicated region
        $region109: #{drsc_nn_forward.1} parent=67 // pred_check
          %p703 = pneg %p288
        $region110: #{drsc_nn_forward.1} parent=67 // pred_check_branch
          %705 = sbr.rel (%p703) target = $region112
        $region111: #{drsc_nn_forward.1} parent=67 // pred_region
          %706 = dma.done [#allocation19], 1024
        $region112: #{drsc_nn_forward.1} parent=67 // pred_fallthru
          _
        // Predicated region
        $region113: #{drsc_nn_forward.1} parent=67 // pred_check
          %p707 = pneg %p309
        $region114: #{drsc_nn_forward.1} parent=67 // pred_check_branch
          %709 = sbr.rel (%p707) target = $region116
        $region115: #{drsc_nn_forward.1} parent=67 // pred_region
          %710 = dma.done [#allocation22], 16
        $region116: #{drsc_nn_forward.1} parent=67 // pred_fallthru
          _
        %s711 = sand.u32 %s60, 1
        %s712 = scalar_lea.sflag [#allocation4], %s711
        %s713 = sand.u32 %s60, 1
        %s714 = smul.addr %s713, 28
        %s715 = scalar_lea.vmem [#allocation3], %s714
        %p716 = pneg %p73
        %p717 = pneg %p70
        %s718 = sand.u32 %s52, 1
        %s719 = scalar_lea.sflag [#allocation7], %s718
        %s720 = sand.u32 %s86, 1
        %s721 = smul.addr %s720, 28
        %s722 = scalar_lea.vmem [#allocation6], %s721
        %p723 = pneg %p99
        %p724 = pneg %p96
        %p725 = pneg %p120
        %p726 = pneg %p117
        %p727 = pneg %p141
        %p728 = pneg %p138
        %p729 = pneg %p162
        %p730 = pneg %p159
        %p731 = pneg %p183
        %p732 = pneg %p180
        %p733 = pneg %p204
        %p734 = pneg %p201
        %p735 = pneg %p225
        %p736 = pneg %p222
        %p737 = pneg %p246
        %p738 = pneg %p243
        %p739 = pneg %p267
        %p740 = pneg %p264
        %p741 = pneg %p288
        %p742 = pneg %p285
        %p743 = pneg %p309
        %p744 = pneg %p306
        %p745 = pneg %p335
        %p746 = pneg %p332
        %s747 = sand.u32 %s322, 1
        %s748 = scalar_lea.sflag [#allocation5], %s747
        %s749 = sand.u32 %s322, 1
        %s750 = smul.addr %s749, 56
        %s751 = scalar_lea.vmem [#allocation23], %s750
        %p752 = pneg %p361
        %p753 = pneg %p358
        %s754 = sand.u32 %s52, 1
        %s755 = scalar_lea.sflag [#allocation25], %s754
        %s756 = sand.u32 %s348, 1
        %s757 = smul.addr %s756, 56
        %s758 = scalar_lea.vmem [#allocation24], %s757
        %p759 = pneg %p387
        %p760 = pneg %p384
        %s761 = sand.u32 %s52, 1
        %s762 = scalar_lea.sflag [#allocation25], %s761
        %s763 = sand.u32 %s374, 1
        %s764 = smul.addr %s763, 56
        %s765 = scalar_lea.vmem [#allocation26], %s764
        %p766 = pneg %p413
        %p767 = pneg %p410
        %s768 = sand.u32 %s52, 1
        %s769 = scalar_lea.sflag [#allocation28], %s768
        %s770 = sand.u32 %s400, 1
        %s771 = smul.addr %s770, 56
        %s772 = scalar_lea.vmem [#allocation27], %s771
        %p773 = pneg %p439
        %p774 = pneg %p436
        %s775 = sand.u32 %s52, 1
        %s776 = scalar_lea.sflag [#allocation28], %s775
        %s777 = sand.u32 %s426, 1
        %s778 = smul.addr %s777, 56
        %s779 = scalar_lea.vmem [#allocation29], %s778
        %p780 = pneg %p465
        %p781 = pneg %p462
        %s782 = sand.u32 %s452, 1
        %s783 = scalar_lea.sflag [#allocation31], %s782
        %s784 = sand.u32 %s452, 1
        %s785 = smul.addr %s784, 56
        %s786 = scalar_lea.vmem [#allocation30], %s785
        %s787 = smul.u32 7, %s52
        %s788 = smul.u32 7, %s52
        %s789 = smul.u32 7, %s52
        %s790 = smul.u32 7, %s52
        %s791 = smul.u32 7, %s52
        %s792 = smul.u32 7, %s52
        %s793 = smul.u32 7, %s52
        %s794 = smul.u32 7, %s52
        %v796 = vld [vmem:[%s657] sm:$0xf]
        %v797 = vld [vmem:[%s657 + $0x4] sm:$0xf]
        %v798 = vld [vmem:[%s657 + $0x8] sm:$0xf]
        %v799 = vld [vmem:[%s657 + $0xc] sm:$0xf]
        %v800 = vld [vmem:[%s657 + $0x10] sm:$0xf]
        %v801 = vld [vmem:[%s657 + $0x14] sm:$0xf]
        %v802 = vld [vmem:[%s657 + $0x18] sm:$0xf]
        %v803 = vld [vmem:[#allocation8] sm:$0xff]
        %v804 = vld [vmem:[#allocation8 + $0x8] sm:$0xff]
        %v805 = vld [vmem:[#allocation8 + $0x10] sm:$0xff]
        %v806 = vld [vmem:[#allocation8 + $0x18] sm:$0xff]
        %v807 = vld [vmem:[#allocation8 + $0x20] sm:$0xff]
        %v808 = vld [vmem:[#allocation8 + $0x28] sm:$0xff]
        %v809 = vld [vmem:[#allocation8 + $0x30] sm:$0xff]
        %v810 = vld [vmem:[#allocation8 + $0x38] sm:$0xff]
        %v811 = vld [vmem:[#allocation8 + $0x40] sm:$0xff]
        %v812 = vld [vmem:[#allocation8 + $0x48] sm:$0xff]
        %v813 = vld [vmem:[#allocation8 + $0x50] sm:$0xff]
        %v814 = vld [vmem:[#allocation8 + $0x58] sm:$0xff]
        %v815 = vld [vmem:[#allocation8 + $0x60] sm:$0xff]
        %v816 = vld [vmem:[#allocation8 + $0x68] sm:$0xff]
        %v817 = vld [vmem:[#allocation8 + $0x70] sm:$0xff]
        %v818 = vld [vmem:[#allocation8 + $0x78] sm:$0xff]
        %v819 = vld [vmem:[#allocation9] sm:$0x3]
        %v821 = vlaneseq
        %v822 = vshrl.u32 %v821, 7
        %v823 = vsub.s32 0, %v822
        %v824 = vrot.slane %v819, %v823
        %v825 = vlaneseq
        %v826 = vshrl.u32 %v825, 7
        %v827 = vsub.s32 1, %v826
        %v828 = vrot.slane %v819, %v827
        %v838 = vunpack.c.l.b16 %v796
        %v839 = vunpack.c.l.b16 %v797
        %v840 = vunpack.c.l.b16 %v798
        %v841 = vunpack.c.l.b16 %v799
        %v842 = vunpack.c.l.b16 %v800
        %v843 = vunpack.c.l.b16 %v801
        %v844 = vunpack.c.l.b16 %v802
        %v845 = vpack.c.b16 %v839, %v838
        %v846 = vpack.c.b16 %v841, %v840
        %v847 = vpack.c.b16 %v843, %v842
        %v848 = vpack.c.b16 %v844, %v844
        %v869 = vunpack.c.l.b16 %v803
        %v870 = vunpack.c.h.b16 %v803
        %v871 = vunpack.c.l.b16 %v804
        %v872 = vunpack.c.h.b16 %v804
        %v873 = vunpack.c.l.b16 %v805
        %v874 = vunpack.c.h.b16 %v805
        %v875 = vunpack.c.l.b16 %v806
        %v876 = vunpack.c.h.b16 %v806
        %v877 = vunpack.c.l.b16 %v807
        %v878 = vunpack.c.h.b16 %v807
        %v879 = vunpack.c.l.b16 %v808
        %v880 = vunpack.c.h.b16 %v808
        %v881 = vunpack.c.l.b16 %v809
        %v882 = vunpack.c.h.b16 %v809
        %v883 = vunpack.c.l.b16 %v810
        %v884 = vunpack.c.h.b16 %v810
        %v885 = vunpack.c.l.b16 %v811
        %v886 = vunpack.c.h.b16 %v811
        %v887 = vunpack.c.l.b16 %v812
        %v888 = vunpack.c.h.b16 %v812
        %v889 = vunpack.c.l.b16 %v813
        %v890 = vunpack.c.h.b16 %v813
        %v891 = vunpack.c.l.b16 %v814
        %v892 = vunpack.c.h.b16 %v814
        %v893 = vunpack.c.l.b16 %v815
        %v894 = vunpack.c.h.b16 %v815
        %v895 = vunpack.c.l.b16 %v816
        %v896 = vunpack.c.h.b16 %v816
        %v897 = vunpack.c.l.b16 %v817
        %v898 = vunpack.c.h.b16 %v817
        %v899 = vunpack.c.l.b16 %v818
        %v900 = vunpack.c.h.b16 %v818
        %v901 = vpack.c.b16 %v871, %v869
        %v902 = vpack.c.b16 %v872, %v870
        %v903 = vpack.c.b16 %v875, %v873
        %v904 = vpack.c.b16 %v876, %v874
        %v905 = vpack.c.b16 %v879, %v877
        %v906 = vpack.c.b16 %v880, %v878
        %v907 = vpack.c.b16 %v883, %v881
        %v908 = vpack.c.b16 %v884, %v882
        %v909 = vpack.c.b16 %v887, %v885
        %v910 = vpack.c.b16 %v888, %v886
        %v911 = vpack.c.b16 %v891, %v889
        %v912 = vpack.c.b16 %v892, %v890
        %v913 = vpack.c.b16 %v895, %v893
        %v914 = vpack.c.b16 %v896, %v894
        %v915 = vpack.c.b16 %v899, %v897
        %v916 = vpack.c.b16 %v900, %v898
        %933 = vmatprep.subr.bf16.mxu0 %v902
        %934 = vmatpush1.bf16.msra.mxu0 %v901
        %935 = vmatprep.subr.bf16.mxu0 %v904
        %936 = vmatpush1.bf16.msra.mxu0 %v903
        %937 = vmatprep.subr.bf16.mxu0 %v906
        %938 = vmatpush1.bf16.msra.mxu0 %v905
        %939 = vmatprep.subr.bf16.mxu0 %v908
        %940 = vmatpush1.bf16.msra.mxu0 %v907
        %941 = vmatprep.subr.bf16.mxu0 %v910
        %942 = vmatpush1.bf16.msra.mxu0 %v909
        %943 = vmatprep.subr.bf16.mxu0 %v912
        %944 = vmatpush1.bf16.msra.mxu0 %v911
        %945 = vmatprep.subr.bf16.mxu0 %v914
        %946 = vmatpush1.bf16.msra.mxu0 %v913
        %947 = vmatprep.subr.bf16.mxu0 %v916
        %948 = vmatpush1.bf16.msra.mxu0 %v915
        %949 = vmatprep.subr.bf16.mxu0 0
        %950 = vmatpush1.bf16.msra.mxu0 0
        %951 = vmatprep.subr.bf16.mxu0 0
        %952 = vmatpush1.bf16.msra.mxu0 0
        %953 = vmatprep.subr.bf16.mxu0 0
        %954 = vmatpush1.bf16.msra.mxu0 0
        %955 = vmatprep.subr.bf16.mxu0 0
        %956 = vmatpush1.bf16.msra.mxu0 0
        %957 = vmatprep.subr.bf16.mxu0 0
        %958 = vmatpush1.bf16.msra.mxu0 0
        %959 = vmatprep.subr.bf16.mxu0 0
        %960 = vmatpush1.bf16.msra.mxu0 0
        %961 = vmatprep.subr.bf16.mxu0 0
        %962 = vmatpush1.bf16.msra.mxu0 0
        %963 = vmatprep.subr.bf16.mxu0 0
        %964 = vmatpush1.bf16.msra.mxu0 0
        %965 = vmatprep.mubr.bf16.mxu0 0
        %966 = vmatmul.mubr.bf16.gmra.mrb[0].mxu0 %v845
        %v967 = vpop.f32.mrb[0].mxu0
        %v968 = vadd.f32 %v824, %v967
        %v969 = vpop.f32.mrb[0].mxu0
        %v970 = vadd.f32 %v828, %v969
        %v971 = vpop.f32.mrb[0].mxu0
        %v972 = vadd.f32 %v824, %v971
        %v973 = vpop.f32.mrb[0].mxu0
        %v974 = vadd.f32 %v828, %v973
        %975 = vmatprep.mubr.bf16.mxu0 0
        %976 = vmatmul.mubr.bf16.gmra.mrb[0].mxu0 %v846
        %v977 = vpop.f32.mrb[0].mxu0
        %v978 = vadd.f32 %v824, %v977
        %v979 = vpop.f32.mrb[0].mxu0
        %v980 = vadd.f32 %v828, %v979
        %v981 = vpop.f32.mrb[0].mxu0
        %v982 = vadd.f32 %v824, %v981
        %v983 = vpop.f32.mrb[0].mxu0
        %v984 = vadd.f32 %v828, %v983
        %985 = vmatprep.mubr.bf16.mxu0 0
        %986 = vmatmul.mubr.bf16.gmra.mrb[0].mxu0 %v847
        %v987 = vpop.f32.mrb[0].mxu0
        %v988 = vadd.f32 %v824, %v987
        %v989 = vpop.f32.mrb[0].mxu0
        %v990 = vadd.f32 %v828, %v989
        %v991 = vpop.f32.mrb[0].mxu0
        %v992 = vadd.f32 %v824, %v991
        %v993 = vpop.f32.mrb[0].mxu0
        %v994 = vadd.f32 %v828, %v993
        %995 = vmatprep.mubr.bf16.mxu0 0
        %996 = vmatmul.mubr.bf16.gmra.mrb[0].mxu0 %v848
        %v997 = vpop.f32.mrb[0].mxu0
        %v998 = vadd.f32 %v824, %v997
        %v999 = vpop.f32.mrb[0].mxu0
        %v1000 = vadd.f32 %v828, %v999
        %v1001 = vpop.f32.mrb[0].mxu0
        %v1002 = vpop.f32.mrb[0].mxu0
        %1003 = vdwg.mxu0
        %v1004 = vmax.f32 %v968, 0.0
        %v1005 = vmax.f32 %v970, 0.0
        %v1006 = vmax.f32 %v972, 0.0
        %v1007 = vmax.f32 %v974, 0.0
        %v1008 = vmax.f32 %v978, 0.0
        %v1009 = vmax.f32 %v980, 0.0
        %v1010 = vmax.f32 %v982, 0.0
        %v1011 = vmax.f32 %v984, 0.0
        %v1012 = vmax.f32 %v988, 0.0
        %v1013 = vmax.f32 %v990, 0.0
        %v1014 = vmax.f32 %v992, 0.0
        %v1015 = vmax.f32 %v994, 0.0
        %v1016 = vmax.f32 %v998, 0.0
        %v1017 = vmax.f32 %v1000, 0.0
        %v1018 = vpack.c.bf16 %v1006, %v1004
        %v1019 = vpack.c.bf16 %v1007, %v1005
        %v1020 = vpack.c.bf16 %v1010, %v1008
        %v1021 = vpack.c.bf16 %v1011, %v1009
        %v1022 = vpack.c.bf16 %v1014, %v1012
        %v1023 = vpack.c.bf16 %v1015, %v1013
        %v1024 = vpack.c.bf16 %v1016, %v1016
        %v1025 = vpack.c.bf16 %v1017, %v1017
        %1026 = vst [vmem:[#allocation2] sm:$0xff] %v1018
        %1027 = vst [vmem:[#allocation2 + $0x8] sm:$0xff] %v1019
        %1028 = vst [vmem:[#allocation2 + $0x10] sm:$0xff] %v1020
        %1029 = vst [vmem:[#allocation2 + $0x18] sm:$0xff] %v1021
        %1030 = vst [vmem:[#allocation2 + $0x20] sm:$0xff] %v1022
        %1031 = vst [vmem:[#allocation2 + $0x28] sm:$0xff] %v1023
        %1032 = vst [vmem:[#allocation2 + $0x30] sm:$0xf] %v1024
        %1033 = vst [vmem:[#allocation2 + $0x38] sm:$0xf] %v1025
        %v1034 = vld [vmem:[%s666] sm:$0xf]
        %v1035 = vld [vmem:[%s666 + $0x4] sm:$0xf]
        %v1036 = vld [vmem:[%s666 + $0x8] sm:$0xf]
        %v1037 = vld [vmem:[%s666 + $0xc] sm:$0xf]
        %v1038 = vld [vmem:[%s666 + $0x10] sm:$0xf]
        %v1039 = vld [vmem:[%s666 + $0x14] sm:$0xf]
        %v1040 = vld [vmem:[%s666 + $0x18] sm:$0xf]
        %v1041 = vld [vmem:[#allocation11] sm:$0xff]
        %v1042 = vld [vmem:[#allocation11 + $0x8] sm:$0xff]
        %v1043 = vld [vmem:[#allocation11 + $0x10] sm:$0xff]
        %v1044 = vld [vmem:[#allocation11 + $0x18] sm:$0xff]
        %v1045 = vld [vmem:[#allocation11 + $0x20] sm:$0xff]
        %v1046 = vld [vmem:[#allocation11 + $0x28] sm:$0xff]
        %v1047 = vld [vmem:[#allocation11 + $0x30] sm:$0xff]
        %v1048 = vld [vmem:[#allocation11 + $0x38] sm:$0xff]
        %v1049 = vld [vmem:[#allocation11 + $0x40] sm:$0xff]
        %v1050 = vld [vmem:[#allocation11 + $0x48] sm:$0xff]
        %v1051 = vld [vmem:[#allocation11 + $0x50] sm:$0xff]
        %v1052 = vld [vmem:[#allocation11 + $0x58] sm:$0xff]
        %v1053 = vld [vmem:[#allocation11 + $0x60] sm:$0xff]
        %v1054 = vld [vmem:[#allocation11 + $0x68] sm:$0xff]
        %v1055 = vld [vmem:[#allocation11 + $0x70] sm:$0xff]
        %v1056 = vld [vmem:[#allocation11 + $0x78] sm:$0xff]
        %v1057 = vld [vmem:[#allocation12] sm:$0x3]
        %v1059 = vlaneseq
        %v1060 = vshrl.u32 %v1059, 7
        %v1061 = vsub.s32 0, %v1060
        %v1062 = vrot.slane %v1057, %v1061
        %v1063 = vlaneseq
        %v1064 = vshrl.u32 %v1063, 7
        %v1065 = vsub.s32 1, %v1064
        %v1066 = vrot.slane %v1057, %v1065
        %v1076 = vunpack.c.l.b16 %v1034
        %v1077 = vunpack.c.l.b16 %v1035
        %v1078 = vunpack.c.l.b16 %v1036
        %v1079 = vunpack.c.l.b16 %v1037
        %v1080 = vunpack.c.l.b16 %v1038
        %v1081 = vunpack.c.l.b16 %v1039
        %v1082 = vunpack.c.l.b16 %v1040
        %v1083 = vpack.c.b16 %v1077, %v1076
        %v1084 = vpack.c.b16 %v1079, %v1078
        %v1085 = vpack.c.b16 %v1081, %v1080
        %v1086 = vpack.c.b16 %v1082, %v1082
        %v1107 = vunpack.c.l.b16 %v1041
        %v1108 = vunpack.c.h.b16 %v1041
        %v1109 = vunpack.c.l.b16 %v1042
        %v1110 = vunpack.c.h.b16 %v1042
        %v1111 = vunpack.c.l.b16 %v1043
        %v1112 = vunpack.c.h.b16 %v1043
        %v1113 = vunpack.c.l.b16 %v1044
        %v1114 = vunpack.c.h.b16 %v1044
        %v1115 = vunpack.c.l.b16 %v1045
        %v1116 = vunpack.c.h.b16 %v1045
        %v1117 = vunpack.c.l.b16 %v1046
        %v1118 = vunpack.c.h.b16 %v1046
        %v1119 = vunpack.c.l.b16 %v1047
        %v1120 = vunpack.c.h.b16 %v1047
        %v1121 = vunpack.c.l.b16 %v1048
        %v1122 = vunpack.c.h.b16 %v1048
        %v1123 = vunpack.c.l.b16 %v1049
        %v1124 = vunpack.c.h.b16 %v1049
        %v1125 = vunpack.c.l.b16 %v1050
        %v1126 = vunpack.c.h.b16 %v1050
        %v1127 = vunpack.c.l.b16 %v1051
        %v1128 = vunpack.c.h.b16 %v1051
        %v1129 = vunpack.c.l.b16 %v1052
        %v1130 = vunpack.c.h.b16 %v1052
        %v1131 = vunpack.c.l.b16 %v1053
        %v1132 = vunpack.c.h.b16 %v1053
        %v1133 = vunpack.c.l.b16 %v1054
        %v1134 = vunpack.c.h.b16 %v1054
        %v1135 = vunpack.c.l.b16 %v1055
        %v1136 = vunpack.c.h.b16 %v1055
        %v1137 = vunpack.c.l.b16 %v1056
        %v1138 = vunpack.c.h.b16 %v1056
        %v1139 = vpack.c.b16 %v1109, %v1107
        %v1140 = vpack.c.b16 %v1110, %v1108
        %v1141 = vpack.c.b16 %v1113, %v1111
        %v1142 = vpack.c.b16 %v1114, %v1112
        %v1143 = vpack.c.b16 %v1117, %v1115
        %v1144 = vpack.c.b16 %v1118, %v1116
        %v1145 = vpack.c.b16 %v1121, %v1119
        %v1146 = vpack.c.b16 %v1122, %v1120
        %v1147 = vpack.c.b16 %v1125, %v1123
        %v1148 = vpack.c.b16 %v1126, %v1124
        %v1149 = vpack.c.b16 %v1129, %v1127
        %v1150 = vpack.c.b16 %v1130, %v1128
        %v1151 = vpack.c.b16 %v1133, %v1131
        %v1152 = vpack.c.b16 %v1134, %v1132
        %v1153 = vpack.c.b16 %v1137, %v1135
        %v1154 = vpack.c.b16 %v1138, %v1136
        %1171 = vmatprep.subr.bf16.mxu0 %v1140
        %1172 = vmatpush1.bf16.msra.mxu0 %v1139
        %1173 = vmatprep.subr.bf16.mxu0 %v1142
        %1174 = vmatpush1.bf16.msra.mxu0 %v1141
        %1175 = vmatprep.subr.bf16.mxu0 %v1144
        %1176 = vmatpush1.bf16.msra.mxu0 %v1143
        %1177 = vmatprep.subr.bf16.mxu0 %v1146
        %1178 = vmatpush1.bf16.msra.mxu0 %v1145
        %1179 = vmatprep.subr.bf16.mxu0 %v1148
        %1180 = vmatpush1.bf16.msra.mxu0 %v1147
        %1181 = vmatprep.subr.bf16.mxu0 %v1150
        %1182 = vmatpush1.bf16.msra.mxu0 %v1149
        %1183 = vmatprep.subr.bf16.mxu0 %v1152
        %1184 = vmatpush1.bf16.msra.mxu0 %v1151
        %1185 = vmatprep.subr.bf16.mxu0 %v1154
        %1186 = vmatpush1.bf16.msra.mxu0 %v1153
        %1187 = vmatprep.subr.bf16.mxu0 0
        %1188 = vmatpush1.bf16.msra.mxu0 0
        %1189 = vmatprep.subr.bf16.mxu0 0
        %1190 = vmatpush1.bf16.msra.mxu0 0
        %1191 = vmatprep.subr.bf16.mxu0 0
        %1192 = vmatpush1.bf16.msra.mxu0 0
        %1193 = vmatprep.subr.bf16.mxu0 0
        %1194 = vmatpush1.bf16.msra.mxu0 0
        %1195 = vmatprep.subr.bf16.mxu0 0
        %1196 = vmatpush1.bf16.msra.mxu0 0
        %1197 = vmatprep.subr.bf16.mxu0 0
        %1198 = vmatpush1.bf16.msra.mxu0 0
        %1199 = vmatprep.subr.bf16.mxu0 0
        %1200 = vmatpush1.bf16.msra.mxu0 0
        %1201 = vmatprep.subr.bf16.mxu0 0
        %1202 = vmatpush1.bf16.msra.mxu0 0
        %1203 = vmatprep.mubr.bf16.mxu0 0
        %1204 = vmatmul.mubr.bf16.gmra.mrb[0].mxu0 %v1083
        %v1205 = vpop.f32.mrb[0].mxu0
        %v1206 = vadd.f32 %v1062, %v1205
        %v1207 = vpop.f32.mrb[0].mxu0
        %v1208 = vadd.f32 %v1066, %v1207
        %v1209 = vpop.f32.mrb[0].mxu0
        %v1210 = vadd.f32 %v1062, %v1209
        %v1211 = vpop.f32.mrb[0].mxu0
        %v1212 = vadd.f32 %v1066, %v1211
        %1213 = vmatprep.mubr.bf16.mxu0 0
        %1214 = vmatmul.mubr.bf16.gmra.mrb[0].mxu0 %v1084
        %v1215 = vpop.f32.mrb[0].mxu0
        %v1216 = vadd.f32 %v1062, %v1215
        %v1217 = vpop.f32.mrb[0].mxu0
        %v1218 = vadd.f32 %v1066, %v1217
        %v1219 = vpop.f32.mrb[0].mxu0
        %v1220 = vadd.f32 %v1062, %v1219
        %v1221 = vpop.f32.mrb[0].mxu0
        %v1222 = vadd.f32 %v1066, %v1221
        %1223 = vmatprep.mubr.bf16.mxu0 0
        %1224 = vmatmul.mubr.bf16.gmra.mrb[0].mxu0 %v1085
        %v1225 = vpop.f32.mrb[0].mxu0
        %v1226 = vadd.f32 %v1062, %v1225
        %v1227 = vpop.f32.mrb[0].mxu0
        %v1228 = vadd.f32 %v1066, %v1227
        %v1229 = vpop.f32.mrb[0].mxu0
        %v1230 = vadd.f32 %v1062, %v1229
        %v1231 = vpop.f32.mrb[0].mxu0
        %v1232 = vadd.f32 %v1066, %v1231
        %1233 = vmatprep.mubr.bf16.mxu0 0
        %1234 = vmatmul.mubr.bf16.gmra.mrb[0].mxu0 %v1086
        %v1235 = vpop.f32.mrb[0].mxu0
        %v1236 = vadd.f32 %v1062, %v1235
        %v1237 = vpop.f32.mrb[0].mxu0
        %v1238 = vadd.f32 %v1066, %v1237
        %v1239 = vpop.f32.mrb[0].mxu0
        %v1240 = vpop.f32.mrb[0].mxu0
        %1241 = vdwg.mxu0
        %v1242 = vmax.f32 %v1206, 0.0
        %v1243 = vmax.f32 %v1208, 0.0
        %v1244 = vmax.f32 %v1210, 0.0
        %v1245 = vmax.f32 %v1212, 0.0
        %v1246 = vmax.f32 %v1216, 0.0
        %v1247 = vmax.f32 %v1218, 0.0
        %v1248 = vmax.f32 %v1220, 0.0
        %v1249 = vmax.f32 %v1222, 0.0
        %v1250 = vmax.f32 %v1226, 0.0
        %v1251 = vmax.f32 %v1228, 0.0
        %v1252 = vmax.f32 %v1230, 0.0
        %v1253 = vmax.f32 %v1232, 0.0
        %v1254 = vmax.f32 %v1236, 0.0
        %v1255 = vmax.f32 %v1238, 0.0
        %v1256 = vpack.c.bf16 %v1244, %v1242
        %v1257 = vpack.c.bf16 %v1245, %v1243
        %v1258 = vpack.c.bf16 %v1248, %v1246
        %v1259 = vpack.c.bf16 %v1249, %v1247
        %v1260 = vpack.c.bf16 %v1252, %v1250
        %v1261 = vpack.c.bf16 %v1253, %v1251
        %v1262 = vpack.c.bf16 %v1254, %v1254
        %v1263 = vpack.c.bf16 %v1255, %v1255
        %vm1272 = vcmask 1043456
        %v1273 = vrot.slane %v1256, 4
        %v1274 = vrot.slane %v1257, 4
        %v1275 = vrot.slane %v1258, 4
        %v1276 = vsel %vm1272, %v1273, %v1275
        %v1277 = vrot.slane %v1259, 4
        %v1278 = vsel %vm1272, %v1274, %v1277
        %v1279 = vrot.slane %v1260, 4
        %v1280 = vsel %vm1272, %v1275, %v1279
        %v1281 = vrot.slane %v1261, 4
        %v1282 = vsel %vm1272, %v1277, %v1281
        %v1283 = vrot.slane %v1262, 4
        %v1284 = vsel %vm1272, %v1279, %v1283
        %v1285 = vrot.slane %v1263, 4
        %v1286 = vsel %vm1272, %v1281, %v1285
        %1295 = vst [vmem:[#allocation2 + $0x30] sm:$0xf0] %v1273
        %1296 = vst [vmem:[#allocation2 + $0x38] sm:$0xf0] %v1274
        %1297 = vst [vmem:[#allocation2 + $0x40] sm:$0xff] %v1276
        %1298 = vst [vmem:[#allocation2 + $0x48] sm:$0xff] %v1278
        %1299 = vst [vmem:[#allocation2 + $0x50] sm:$0xff] %v1280
        %1300 = vst [vmem:[#allocation2 + $0x58] sm:$0xff] %v1282
        %1301 = vst [vmem:[#allocation2 + $0x60] sm:$0xff] %v1284
        %1302 = vst [vmem:[#allocation2 + $0x68] sm:$0xff] %v1286
        %v1303 = vld [vmem:[#allocation2] sm:$0xff]
        %v1304 = vld [vmem:[#allocation2 + $0x8] sm:$0xff]
        %v1305 = vld [vmem:[#allocation2 + $0x10] sm:$0xff]
        %v1306 = vld [vmem:[#allocation2 + $0x18] sm:$0xff]
        %v1307 = vld [vmem:[#allocation2 + $0x20] sm:$0xff]
        %v1308 = vld [vmem:[#allocation2 + $0x28] sm:$0xff]
        %v1309 = vld [vmem:[#allocation2 + $0x30] sm:$0xff]
        %v1310 = vld [vmem:[#allocation2 + $0x38] sm:$0xff]
        %v1311 = vld [vmem:[#allocation2 + $0x40] sm:$0xff]
        %v1312 = vld [vmem:[#allocation2 + $0x48] sm:$0xff]
        %v1313 = vld [vmem:[#allocation2 + $0x50] sm:$0xff]
        %v1314 = vld [vmem:[#allocation2 + $0x58] sm:$0xff]
        %v1315 = vld [vmem:[#allocation2 + $0x60] sm:$0xff]
        %v1316 = vld [vmem:[#allocation2 + $0x68] sm:$0xff]
        %v1317 = vld [vmem:[#allocation14] sm:$0xf]
        %v1318 = vld [vmem:[#allocation14 + $0x4] sm:$0xf]
        %v1319 = vld [vmem:[#allocation14 + $0x8] sm:$0xf]
        %v1320 = vld [vmem:[#allocation14 + $0xc] sm:$0xf]
        %v1321 = vld [vmem:[#allocation14 + $0x10] sm:$0xf]
        %v1322 = vld [vmem:[#allocation14 + $0x14] sm:$0xf]
        %v1323 = vld [vmem:[#allocation14 + $0x18] sm:$0xf]
        %v1324 = vld [vmem:[#allocation14 + $0x1c] sm:$0xf]
        %v1325 = vld [vmem:[#allocation14 + $0x20] sm:$0xf]
        %v1326 = vld [vmem:[#allocation14 + $0x24] sm:$0xf]
        %v1327 = vld [vmem:[#allocation14 + $0x28] sm:$0xf]
        %v1328 = vld [vmem:[#allocation14 + $0x2c] sm:$0xf]
        %v1329 = vld [vmem:[#allocation14 + $0x30] sm:$0xf]
        %v1330 = vld [vmem:[#allocation14 + $0x34] sm:$0xf]
        %v1331 = vld [vmem:[#allocation14 + $0x38] sm:$0xf]
        %v1332 = vld [vmem:[#allocation14 + $0x3c] sm:$0xf]
        %v1333 = vld [vmem:[#allocation14 + $0x40] sm:$0xf]
        %v1334 = vld [vmem:[#allocation14 + $0x44] sm:$0xf]
        %v1335 = vld [vmem:[#allocation14 + $0x48] sm:$0xf]
        %v1336 = vld [vmem:[#allocation14 + $0x4c] sm:$0xf]
        %v1337 = vld [vmem:[#allocation14 + $0x50] sm:$0xf]
        %v1338 = vld [vmem:[#allocation14 + $0x54] sm:$0xf]
        %v1339 = vld [vmem:[#allocation14 + $0x58] sm:$0xf]
        %v1340 = vld [vmem:[#allocation14 + $0x5c] sm:$0xf]
        %v1341 = vld [vmem:[#allocation14 + $0x60] sm:$0xf]
        %v1342 = vld [vmem:[#allocation14 + $0x64] sm:$0xf]
        %v1343 = vld [vmem:[#allocation14 + $0x68] sm:$0xf]
        %v1344 = vld [vmem:[#allocation14 + $0x6c] sm:$0xf]
        %v1345 = vld [vmem:[#allocation14 + $0x70] sm:$0xf]
        %v1346 = vld [vmem:[#allocation14 + $0x74] sm:$0xf]
        %v1347 = vld [vmem:[#allocation14 + $0x78] sm:$0xf]
        %v1348 = vld [vmem:[#allocation14 + $0x7c] sm:$0xf]
        %v1349 = vld [vmem:[#allocation15] sm:$0x1]
        %v1351 = vlaneseq
        %v1352 = vshrl.u32 %v1351, 7
        %v1353 = vsub.s32 0, %v1352
        %v1354 = vrot.slane %v1349, %v1353
        %v1388 = vunpack.c.l.b16 %v1317
        %v1389 = vunpack.c.l.b16 %v1318
        %v1390 = vunpack.c.l.b16 %v1319
        %v1391 = vunpack.c.l.b16 %v1320
        %v1392 = vunpack.c.l.b16 %v1321
        %v1393 = vunpack.c.l.b16 %v1322
        %v1394 = vunpack.c.l.b16 %v1323
        %v1395 = vunpack.c.l.b16 %v1324
        %v1396 = vunpack.c.l.b16 %v1325
        %v1397 = vunpack.c.l.b16 %v1326
        %v1398 = vunpack.c.l.b16 %v1327
        %v1399 = vunpack.c.l.b16 %v1328
        %v1400 = vunpack.c.l.b16 %v1329
        %v1401 = vunpack.c.l.b16 %v1330
        %v1402 = vunpack.c.l.b16 %v1331
        %v1403 = vunpack.c.l.b16 %v1332
        %v1404 = vunpack.c.l.b16 %v1333
        %v1405 = vunpack.c.l.b16 %v1334
        %v1406 = vunpack.c.l.b16 %v1335
        %v1407 = vunpack.c.l.b16 %v1336
        %v1408 = vunpack.c.l.b16 %v1337
        %v1409 = vunpack.c.l.b16 %v1338
        %v1410 = vunpack.c.l.b16 %v1339
        %v1411 = vunpack.c.l.b16 %v1340
        %v1412 = vunpack.c.l.b16 %v1341
        %v1413 = vunpack.c.l.b16 %v1342
        %v1414 = vunpack.c.l.b16 %v1343
        %v1415 = vunpack.c.l.b16 %v1344
        %v1416 = vunpack.c.l.b16 %v1345
        %v1417 = vunpack.c.l.b16 %v1346
        %v1418 = vunpack.c.l.b16 %v1347
        %v1419 = vunpack.c.l.b16 %v1348
        %v1420 = vpack.c.b16 %v1389, %v1388
        %v1421 = vpack.c.b16 %v1391, %v1390
        %v1422 = vpack.c.b16 %v1393, %v1392
        %v1423 = vpack.c.b16 %v1395, %v1394
        %v1424 = vpack.c.b16 %v1397, %v1396
        %v1425 = vpack.c.b16 %v1399, %v1398
        %v1426 = vpack.c.b16 %v1401, %v1400
        %v1427 = vpack.c.b16 %v1403, %v1402
        %v1428 = vpack.c.b16 %v1405, %v1404
        %v1429 = vpack.c.b16 %v1407, %v1406
        %v1430 = vpack.c.b16 %v1409, %v1408
        %v1431 = vpack.c.b16 %v1411, %v1410
        %v1432 = vpack.c.b16 %v1413, %v1412
        %v1433 = vpack.c.b16 %v1415, %v1414
        %v1434 = vpack.c.b16 %v1417, %v1416
        %v1435 = vpack.c.b16 %v1419, %v1418
        %1452 = vmatprep.subr.bf16.mxu0 0
        %1453 = vmatpush1.bf16.msra.mxu0 %v1420
        %1454 = vmatprep.subr.bf16.mxu0 0
        %1455 = vmatpush1.bf16.msra.mxu0 %v1421
        %1456 = vmatprep.subr.bf16.mxu0 0
        %1457 = vmatpush1.bf16.msra.mxu0 %v1422
        %1458 = vmatprep.subr.bf16.mxu0 0
        %1459 = vmatpush1.bf16.msra.mxu0 %v1423
        %1460 = vmatprep.subr.bf16.mxu0 0
        %1461 = vmatpush1.bf16.msra.mxu0 %v1424
        %1462 = vmatprep.subr.bf16.mxu0 0
        %1463 = vmatpush1.bf16.msra.mxu0 %v1425
        %1464 = vmatprep.subr.bf16.mxu0 0
        %1465 = vmatpush1.bf16.msra.mxu0 %v1426
        %1466 = vmatprep.subr.bf16.mxu0 0
        %1467 = vmatpush1.bf16.msra.mxu0 %v1427
        %1468 = vmatprep.subr.bf16.mxu0 0
        %1469 = vmatpush1.bf16.msra.mxu0 %v1428
        %1470 = vmatprep.subr.bf16.mxu0 0
        %1471 = vmatpush1.bf16.msra.mxu0 %v1429
        %1472 = vmatprep.subr.bf16.mxu0 0
        %1473 = vmatpush1.bf16.msra.mxu0 %v1430
        %1474 = vmatprep.subr.bf16.mxu0 0
        %1475 = vmatpush1.bf16.msra.mxu0 %v1431
        %1476 = vmatprep.subr.bf16.mxu0 0
        %1477 = vmatpush1.bf16.msra.mxu0 %v1432
        %1478 = vmatprep.subr.bf16.mxu0 0
        %1479 = vmatpush1.bf16.msra.mxu0 %v1433
        %1480 = vmatprep.subr.bf16.mxu0 0
        %1481 = vmatpush1.bf16.msra.mxu0 %v1434
        %1482 = vmatprep.subr.bf16.mxu0 0
        %1483 = vmatpush1.bf16.msra.mxu0 %v1435
        %1484 = vmatprep.mubr.bf16.mxu0 %v1304
        %1485 = vmatmul.mubr.bf16.gmra.mrb[0].mxu0 %v1303
        %v1486 = vpop.f32.mrb[0].mxu0
        %v1487 = vadd.f32 %v1354, %v1486
        %v1488 = vpop.f32.mrb[0].mxu0
        %v1489 = vpop.f32.mrb[0].mxu0
        %v1490 = vadd.f32 %v1354, %v1489
        %v1491 = vpop.f32.mrb[0].mxu0
        %1492 = vmatprep.mubr.bf16.mxu0 %v1306
        %1493 = vmatmul.mubr.bf16.gmra.mrb[0].mxu0 %v1305
        %v1494 = vpop.f32.mrb[0].mxu0
        %v1495 = vadd.f32 %v1354, %v1494
        %v1496 = vpop.f32.mrb[0].mxu0
        %v1497 = vpop.f32.mrb[0].mxu0
        %v1498 = vadd.f32 %v1354, %v1497
        %v1499 = vpop.f32.mrb[0].mxu0
        %1500 = vmatprep.mubr.bf16.mxu0 %v1308
        %1501 = vmatmul.mubr.bf16.gmra.mrb[0].mxu0 %v1307
        %v1502 = vpop.f32.mrb[0].mxu0
        %v1503 = vadd.f32 %v1354, %v1502
        %v1504 = vpop.f32.mrb[0].mxu0
        %v1505 = vpop.f32.mrb[0].mxu0
        %v1506 = vadd.f32 %v1354, %v1505
        %v1507 = vpop.f32.mrb[0].mxu0
        %1508 = vmatprep.mubr.bf16.mxu0 %v1310
        %1509 = vmatmul.mubr.bf16.gmra.mrb[0].mxu0 %v1309
        %v1510 = vpop.f32.mrb[0].mxu0
        %v1511 = vadd.f32 %v1354, %v1510
        %v1512 = vpop.f32.mrb[0].mxu0
        %v1513 = vpop.f32.mrb[0].mxu0
        %v1514 = vadd.f32 %v1354, %v1513
        %v1515 = vpop.f32.mrb[0].mxu0
        %1516 = vmatprep.mubr.bf16.mxu0 %v1312
        %1517 = vmatmul.mubr.bf16.gmra.mrb[0].mxu0 %v1311
        %v1518 = vpop.f32.mrb[0].mxu0
        %v1519 = vadd.f32 %v1354, %v1518
        %v1520 = vpop.f32.mrb[0].mxu0
        %v1521 = vpop.f32.mrb[0].mxu0
        %v1522 = vadd.f32 %v1354, %v1521
        %v1523 = vpop.f32.mrb[0].mxu0
        %1524 = vmatprep.mubr.bf16.mxu0 %v1314
        %1525 = vmatmul.mubr.bf16.gmra.mrb[0].mxu0 %v1313
        %v1526 = vpop.f32.mrb[0].mxu0
        %v1527 = vadd.f32 %v1354, %v1526
        %v1528 = vpop.f32.mrb[0].mxu0
        %v1529 = vpop.f32.mrb[0].mxu0
        %v1530 = vadd.f32 %v1354, %v1529
        %v1531 = vpop.f32.mrb[0].mxu0
        %1532 = vmatprep.mubr.bf16.mxu0 %v1316
        %1533 = vmatmul.mubr.bf16.gmra.mrb[0].mxu0 %v1315
        %v1534 = vpop.f32.mrb[0].mxu0
        %v1535 = vadd.f32 %v1354, %v1534
        %v1536 = vpop.f32.mrb[0].mxu0
        %v1537 = vpop.f32.mrb[0].mxu0
        %v1538 = vadd.f32 %v1354, %v1537
        %v1539 = vpop.f32.mrb[0].mxu0
        %1540 = vdwg.mxu0
        %v1541 = vpack.c.bf16 %v1490, %v1487
        %v1542 = vpack.c.bf16 %v1498, %v1495
        %v1543 = vpack.c.bf16 %v1506, %v1503
        %v1544 = vpack.c.bf16 %v1514, %v1511
        %v1545 = vpack.c.bf16 %v1522, %v1519
        %v1546 = vpack.c.bf16 %v1530, %v1527
        %v1547 = vpack.c.bf16 %v1538, %v1535
        %v1548 = vld [vmem:[#allocation17] sm:$0xf]
        %v1549 = vld [vmem:[#allocation17 + $0x4] sm:$0xf]
        %v1550 = vld [vmem:[#allocation17 + $0x8] sm:$0xf]
        %v1551 = vld [vmem:[#allocation17 + $0xc] sm:$0xf]
        %v1552 = vld [vmem:[#allocation17 + $0x10] sm:$0xf]
        %v1553 = vld [vmem:[#allocation17 + $0x14] sm:$0xf]
        %v1554 = vld [vmem:[#allocation17 + $0x18] sm:$0xf]
        %v1555 = vld [vmem:[#allocation17 + $0x1c] sm:$0xf]
        %v1556 = vld [vmem:[#allocation17 + $0x20] sm:$0xf]
        %v1557 = vld [vmem:[#allocation17 + $0x24] sm:$0xf]
        %v1558 = vld [vmem:[#allocation17 + $0x28] sm:$0xf]
        %v1559 = vld [vmem:[#allocation17 + $0x2c] sm:$0xf]
        %v1560 = vld [vmem:[#allocation17 + $0x30] sm:$0xf]
        %v1561 = vld [vmem:[#allocation17 + $0x34] sm:$0xf]
        %v1562 = vld [vmem:[#allocation17 + $0x38] sm:$0xf]
        %v1563 = vld [vmem:[#allocation17 + $0x3c] sm:$0xf]
        %v1564 = vld [vmem:[#allocation18] sm:$0x1]
        %v1566 = vlaneseq
        %v1567 = vshrl.u32 %v1566, 7
        %v1568 = vsub.s32 0, %v1567
        %v1569 = vrot.slane %v1564, %v1568
        %v1587 = vunpack.c.l.b16 %v1548
        %v1588 = vunpack.c.l.b16 %v1549
        %v1589 = vunpack.c.l.b16 %v1550
        %v1590 = vunpack.c.l.b16 %v1551
        %v1591 = vunpack.c.l.b16 %v1552
        %v1592 = vunpack.c.l.b16 %v1553
        %v1593 = vunpack.c.l.b16 %v1554
        %v1594 = vunpack.c.l.b16 %v1555
        %v1595 = vunpack.c.l.b16 %v1556
        %v1596 = vunpack.c.l.b16 %v1557
        %v1597 = vunpack.c.l.b16 %v1558
        %v1598 = vunpack.c.l.b16 %v1559
        %v1599 = vunpack.c.l.b16 %v1560
        %v1600 = vunpack.c.l.b16 %v1561
        %v1601 = vunpack.c.l.b16 %v1562
        %v1602 = vunpack.c.l.b16 %v1563
        %v1603 = vpack.c.b16 %v1588, %v1587
        %v1604 = vpack.c.b16 %v1590, %v1589
        %v1605 = vpack.c.b16 %v1592, %v1591
        %v1606 = vpack.c.b16 %v1594, %v1593
        %v1607 = vpack.c.b16 %v1596, %v1595
        %v1608 = vpack.c.b16 %v1598, %v1597
        %v1609 = vpack.c.b16 %v1600, %v1599
        %v1610 = vpack.c.b16 %v1602, %v1601
        %1619 = vmatprep.subr.bf16.mxu0 0
        %1620 = vmatpush1.bf16.msra.mxu0 %v1603
        %1621 = vmatprep.subr.bf16.mxu0 0
        %1622 = vmatpush1.bf16.msra.mxu0 %v1604
        %1623 = vmatprep.subr.bf16.mxu0 0
        %1624 = vmatpush1.bf16.msra.mxu0 %v1605
        %1625 = vmatprep.subr.bf16.mxu0 0
        %1626 = vmatpush1.bf16.msra.mxu0 %v1606
        %1627 = vmatprep.subr.bf16.mxu0 0
        %1628 = vmatpush1.bf16.msra.mxu0 %v1607
        %1629 = vmatprep.subr.bf16.mxu0 0
        %1630 = vmatpush1.bf16.msra.mxu0 %v1608
        %1631 = vmatprep.subr.bf16.mxu0 0
        %1632 = vmatpush1.bf16.msra.mxu0 %v1609
        %1633 = vmatprep.subr.bf16.mxu0 0
        %1634 = vmatpush1.bf16.msra.mxu0 %v1610
        %1635 = vmatprep.subr.bf16.mxu0 0
        %1636 = vmatpush1.bf16.msra.mxu0 0
        %1637 = vmatprep.subr.bf16.mxu0 0
        %1638 = vmatpush1.bf16.msra.mxu0 0
        %1639 = vmatprep.subr.bf16.mxu0 0
        %1640 = vmatpush1.bf16.msra.mxu0 0
        %1641 = vmatprep.subr.bf16.mxu0 0
        %1642 = vmatpush1.bf16.msra.mxu0 0
        %1643 = vmatprep.subr.bf16.mxu0 0
        %1644 = vmatpush1.bf16.msra.mxu0 0
        %1645 = vmatprep.subr.bf16.mxu0 0
        %1646 = vmatpush1.bf16.msra.mxu0 0
        %1647 = vmatprep.subr.bf16.mxu0 0
        %1648 = vmatpush1.bf16.msra.mxu0 0
        %1649 = vmatprep.subr.bf16.mxu0 0
        %1650 = vmatpush1.bf16.msra.mxu0 0
        %1651 = vmatprep.mubr.bf16.mxu0 0
        %1652 = vmatmul.mubr.bf16.gmra.mrb[0].mxu0 %v1541
        %v1653 = vpop.f32.mrb[0].mxu0
        %v1654 = vadd.f32 %v1569, %v1653
        %v1655 = vpop.f32.mrb[0].mxu0
        %v1656 = vpop.f32.mrb[0].mxu0
        %v1657 = vadd.f32 %v1569, %v1656
        %v1658 = vpop.f32.mrb[0].mxu0
        %1659 = vmatprep.mubr.bf16.mxu0 0
        %1660 = vmatmul.mubr.bf16.gmra.mrb[0].mxu0 %v1542
        %v1661 = vpop.f32.mrb[0].mxu0
        %v1662 = vadd.f32 %v1569, %v1661
        %v1663 = vpop.f32.mrb[0].mxu0
        %v1664 = vpop.f32.mrb[0].mxu0
        %v1665 = vadd.f32 %v1569, %v1664
        %v1666 = vpop.f32.mrb[0].mxu0
        %1667 = vmatprep.mubr.bf16.mxu0 0
        %1668 = vmatmul.mubr.bf16.gmra.mrb[0].mxu0 %v1543
        %v1669 = vpop.f32.mrb[0].mxu0
        %v1670 = vadd.f32 %v1569, %v1669
        %v1671 = vpop.f32.mrb[0].mxu0
        %v1672 = vpop.f32.mrb[0].mxu0
        %v1673 = vadd.f32 %v1569, %v1672
        %v1674 = vpop.f32.mrb[0].mxu0
        %1675 = vmatprep.mubr.bf16.mxu0 0
        %1676 = vmatmul.mubr.bf16.gmra.mrb[0].mxu0 %v1544
        %v1677 = vpop.f32.mrb[0].mxu0
        %v1678 = vadd.f32 %v1569, %v1677
        %v1679 = vpop.f32.mrb[0].mxu0
        %v1680 = vpop.f32.mrb[0].mxu0
        %v1681 = vadd.f32 %v1569, %v1680
        %v1682 = vpop.f32.mrb[0].mxu0
        %1683 = vmatprep.mubr.bf16.mxu0 0
        %1684 = vmatmul.mubr.bf16.gmra.mrb[0].mxu0 %v1545
        %v1685 = vpop.f32.mrb[0].mxu0
        %v1686 = vadd.f32 %v1569, %v1685
        %v1687 = vpop.f32.mrb[0].mxu0
        %v1688 = vpop.f32.mrb[0].mxu0
        %v1689 = vadd.f32 %v1569, %v1688
        %v1690 = vpop.f32.mrb[0].mxu0
        %1691 = vmatprep.mubr.bf16.mxu0 0
        %1692 = vmatmul.mubr.bf16.gmra.mrb[0].mxu0 %v1546
        %v1693 = vpop.f32.mrb[0].mxu0
        %v1694 = vadd.f32 %v1569, %v1693
        %v1695 = vpop.f32.mrb[0].mxu0
        %v1696 = vpop.f32.mrb[0].mxu0
        %v1697 = vadd.f32 %v1569, %v1696
        %v1698 = vpop.f32.mrb[0].mxu0
        %1699 = vmatprep.mubr.bf16.mxu0 0
        %1700 = vmatmul.mubr.bf16.gmra.mrb[0].mxu0 %v1547
        %v1701 = vpop.f32.mrb[0].mxu0
        %v1702 = vadd.f32 %v1569, %v1701
        %v1703 = vpop.f32.mrb[0].mxu0
        %v1704 = vpop.f32.mrb[0].mxu0
        %v1705 = vadd.f32 %v1569, %v1704
        %v1706 = vpop.f32.mrb[0].mxu0
        %1707 = vdwg.mxu0
        %v1708 = vpack.c.bf16 %v1657, %v1654
        %v1709 = vpack.c.bf16 %v1665, %v1662
        %v1710 = vpack.c.bf16 %v1673, %v1670
        %v1711 = vpack.c.bf16 %v1681, %v1678
        %v1712 = vpack.c.bf16 %v1689, %v1686
        %v1713 = vpack.c.bf16 %v1697, %v1694
        %v1714 = vpack.c.bf16 %v1705, %v1702
        %v1715 = vld [vmem:[#allocation20] sm:$0xf]
        %v1716 = vld [vmem:[#allocation20 + $0x4] sm:$0xf]
        %v1717 = vld [vmem:[#allocation20 + $0x8] sm:$0xf]
        %v1718 = vld [vmem:[#allocation20 + $0xc] sm:$0xf]
        %v1719 = vld [vmem:[#allocation20 + $0x10] sm:$0xf]
        %v1720 = vld [vmem:[#allocation20 + $0x14] sm:$0xf]
        %v1721 = vld [vmem:[#allocation20 + $0x18] sm:$0xf]
        %v1722 = vld [vmem:[#allocation20 + $0x1c] sm:$0xf]
        %v1723 = vld [vmem:[#allocation20 + $0x20] sm:$0xf]
        %v1724 = vld [vmem:[#allocation20 + $0x24] sm:$0xf]
        %v1725 = vld [vmem:[#allocation20 + $0x28] sm:$0xf]
        %v1726 = vld [vmem:[#allocation20 + $0x2c] sm:$0xf]
        %v1727 = vld [vmem:[#allocation20 + $0x30] sm:$0xf]
        %v1728 = vld [vmem:[#allocation20 + $0x34] sm:$0xf]
        %v1729 = vld [vmem:[#allocation20 + $0x38] sm:$0xf]
        %v1730 = vld [vmem:[#allocation20 + $0x3c] sm:$0xf]
        %v1731 = vld [vmem:[#allocation21] sm:$0x1]
        %v1733 = vlaneseq
        %v1734 = vshrl.u32 %v1733, 7
        %v1735 = vsub.s32 0, %v1734
        %v1736 = vrot.slane %v1731, %v1735
        %v1754 = vunpack.c.l.b16 %v1715
        %v1755 = vunpack.c.l.b16 %v1716
        %v1756 = vunpack.c.l.b16 %v1717
        %v1757 = vunpack.c.l.b16 %v1718
        %v1758 = vunpack.c.l.b16 %v1719
        %v1759 = vunpack.c.l.b16 %v1720
        %v1760 = vunpack.c.l.b16 %v1721
        %v1761 = vunpack.c.l.b16 %v1722
        %v1762 = vunpack.c.l.b16 %v1723
        %v1763 = vunpack.c.l.b16 %v1724
        %v1764 = vunpack.c.l.b16 %v1725
        %v1765 = vunpack.c.l.b16 %v1726
        %v1766 = vunpack.c.l.b16 %v1727
        %v1767 = vunpack.c.l.b16 %v1728
        %v1768 = vunpack.c.l.b16 %v1729
        %v1769 = vunpack.c.l.b16 %v1730
        %v1770 = vpack.c.b16 %v1755, %v1754
        %v1771 = vpack.c.b16 %v1757, %v1756
        %v1772 = vpack.c.b16 %v1759, %v1758
        %v1773 = vpack.c.b16 %v1761, %v1760
        %v1774 = vpack.c.b16 %v1763, %v1762
        %v1775 = vpack.c.b16 %v1765, %v1764
        %v1776 = vpack.c.b16 %v1767, %v1766
        %v1777 = vpack.c.b16 %v1769, %v1768
        %1786 = vmatprep.subr.bf16.mxu0 0
        %1787 = vmatpush1.bf16.msra.mxu0 %v1770
        %1788 = vmatprep.subr.bf16.mxu0 0
        %1789 = vmatpush1.bf16.msra.mxu0 %v1771
        %1790 = vmatprep.subr.bf16.mxu0 0
        %1791 = vmatpush1.bf16.msra.mxu0 %v1772
        %1792 = vmatprep.subr.bf16.mxu0 0
        %1793 = vmatpush1.bf16.msra.mxu0 %v1773
        %1794 = vmatprep.subr.bf16.mxu0 0
        %1795 = vmatpush1.bf16.msra.mxu0 %v1774
        %1796 = vmatprep.subr.bf16.mxu0 0
        %1797 = vmatpush1.bf16.msra.mxu0 %v1775
        %1798 = vmatprep.subr.bf16.mxu0 0
        %1799 = vmatpush1.bf16.msra.mxu0 %v1776
        %1800 = vmatprep.subr.bf16.mxu0 0
        %1801 = vmatpush1.bf16.msra.mxu0 %v1777
        %1802 = vmatprep.subr.bf16.mxu0 0
        %1803 = vmatpush1.bf16.msra.mxu0 0
        %1804 = vmatprep.subr.bf16.mxu0 0
        %1805 = vmatpush1.bf16.msra.mxu0 0
        %1806 = vmatprep.subr.bf16.mxu0 0
        %1807 = vmatpush1.bf16.msra.mxu0 0
        %1808 = vmatprep.subr.bf16.mxu0 0
        %1809 = vmatpush1.bf16.msra.mxu0 0
        %1810 = vmatprep.subr.bf16.mxu0 0
        %1811 = vmatpush1.bf16.msra.mxu0 0
        %1812 = vmatprep.subr.bf16.mxu0 0
        %1813 = vmatpush1.bf16.msra.mxu0 0
        %1814 = vmatprep.subr.bf16.mxu0 0
        %1815 = vmatpush1.bf16.msra.mxu0 0
        %1816 = vmatprep.subr.bf16.mxu0 0
        %1817 = vmatpush1.bf16.msra.mxu0 0
        %1818 = vmatprep.mubr.bf16.mxu0 0
        %1819 = vmatmul.mubr.bf16.gmra.mrb[0].mxu0 %v1708
        %v1820 = vpop.f32.mrb[0].mxu0
        %v1821 = vadd.f32 %v1736, %v1820
        %v1822 = vpop.f32.mrb[0].mxu0
        %v1823 = vpop.f32.mrb[0].mxu0
        %v1824 = vadd.f32 %v1736, %v1823
        %v1825 = vpop.f32.mrb[0].mxu0
        %1826 = vmatprep.mubr.bf16.mxu0 0
        %1827 = vmatmul.mubr.bf16.gmra.mrb[0].mxu0 %v1709
        %v1828 = vpop.f32.mrb[0].mxu0
        %v1829 = vadd.f32 %v1736, %v1828
        %v1830 = vpop.f32.mrb[0].mxu0
        %v1831 = vpop.f32.mrb[0].mxu0
        %v1832 = vadd.f32 %v1736, %v1831
        %v1833 = vpop.f32.mrb[0].mxu0
        %1834 = vmatprep.mubr.bf16.mxu0 0
        %1835 = vmatmul.mubr.bf16.gmra.mrb[0].mxu0 %v1710
        %v1836 = vpop.f32.mrb[0].mxu0
        %v1837 = vadd.f32 %v1736, %v1836
        %v1838 = vpop.f32.mrb[0].mxu0
        %v1839 = vpop.f32.mrb[0].mxu0
        %v1840 = vadd.f32 %v1736, %v1839
        %v1841 = vpop.f32.mrb[0].mxu0
        %1842 = vmatprep.mubr.bf16.mxu0 0
        %1843 = vmatmul.mubr.bf16.gmra.mrb[0].mxu0 %v1711
        %v1844 = vpop.f32.mrb[0].mxu0
        %v1845 = vadd.f32 %v1736, %v1844
        %v1846 = vpop.f32.mrb[0].mxu0
        %v1847 = vpop.f32.mrb[0].mxu0
        %v1848 = vadd.f32 %v1736, %v1847
        %v1849 = vpop.f32.mrb[0].mxu0
        %1850 = vmatprep.mubr.bf16.mxu0 0
        %1851 = vmatmul.mubr.bf16.gmra.mrb[0].mxu0 %v1712
        %v1852 = vpop.f32.mrb[0].mxu0
        %v1853 = vadd.f32 %v1736, %v1852
        %v1854 = vpop.f32.mrb[0].mxu0
        %v1855 = vpop.f32.mrb[0].mxu0
        %v1856 = vadd.f32 %v1736, %v1855
        %v1857 = vpop.f32.mrb[0].mxu0
        %1858 = vmatprep.mubr.bf16.mxu0 0
        %1859 = vmatmul.mubr.bf16.gmra.mrb[0].mxu0 %v1713
        %v1860 = vpop.f32.mrb[0].mxu0
        %v1861 = vadd.f32 %v1736, %v1860
        %v1862 = vpop.f32.mrb[0].mxu0
        %v1863 = vpop.f32.mrb[0].mxu0
        %v1864 = vadd.f32 %v1736, %v1863
        %v1865 = vpop.f32.mrb[0].mxu0
        %1866 = vmatprep.mubr.bf16.mxu0 0
        %1867 = vmatmul.mubr.bf16.gmra.mrb[0].mxu0 %v1714
        %v1868 = vpop.f32.mrb[0].mxu0
        %v1869 = vadd.f32 %v1736, %v1868
        %v1870 = vpop.f32.mrb[0].mxu0
        %v1871 = vpop.f32.mrb[0].mxu0
        %v1872 = vadd.f32 %v1736, %v1871
        %v1873 = vpop.f32.mrb[0].mxu0
        %1874 = vdwg.mxu0
        %1875 = vst [vmem:[%s779] sm:$0xff] %v1487
        %1876 = vst [vmem:[%s779 + $0x8] sm:$0xff] %v1490
        %1877 = vst [vmem:[%s779 + $0x10] sm:$0xff] %v1495
        %1878 = vst [vmem:[%s779 + $0x18] sm:$0xff] %v1498
        %1879 = vst [vmem:[%s779 + $0x20] sm:$0xff] %v1503
        %1880 = vst [vmem:[%s779 + $0x28] sm:$0xff] %v1506
        %1881 = vst [vmem:[%s779 + $0x30] sm:$0xff] %v1511
        %1882 = vst [vmem:[%s786] sm:$0xff] %v1514
        %1883 = vst [vmem:[%s786 + $0x8] sm:$0xff] %v1519
        %1884 = vst [vmem:[%s786 + $0x10] sm:$0xff] %v1522
        %1885 = vst [vmem:[%s786 + $0x18] sm:$0xff] %v1527
        %1886 = vst [vmem:[%s786 + $0x20] sm:$0xff] %v1530
        %1887 = vst [vmem:[%s786 + $0x28] sm:$0xff] %v1535
        %1888 = vst [vmem:[%s786 + $0x30] sm:$0xff] %v1538
        %1889 = vst [vmem:[%s751] sm:$0xff] %v1654
        %1890 = vst [vmem:[%s751 + $0x8] sm:$0xff] %v1657
        %1891 = vst [vmem:[%s751 + $0x10] sm:$0xff] %v1662
        %1892 = vst [vmem:[%s751 + $0x18] sm:$0xff] %v1665
        %1893 = vst [vmem:[%s751 + $0x20] sm:$0xff] %v1670
        %1894 = vst [vmem:[%s751 + $0x28] sm:$0xff] %v1673
        %1895 = vst [vmem:[%s751 + $0x30] sm:$0xff] %v1678
        %1896 = vst [vmem:[%s758] sm:$0xff] %v1681
        %1897 = vst [vmem:[%s758 + $0x8] sm:$0xff] %v1686
        %1898 = vst [vmem:[%s758 + $0x10] sm:$0xff] %v1689
        %1899 = vst [vmem:[%s758 + $0x18] sm:$0xff] %v1694
        %1900 = vst [vmem:[%s758 + $0x20] sm:$0xff] %v1697
        %1901 = vst [vmem:[%s758 + $0x28] sm:$0xff] %v1702
        %1902 = vst [vmem:[%s758 + $0x30] sm:$0xff] %v1705
        %1903 = vst [vmem:[%s765] sm:$0xff] %v1821
        %1904 = vst [vmem:[%s765 + $0x8] sm:$0xff] %v1824
        %1905 = vst [vmem:[%s765 + $0x10] sm:$0xff] %v1829
        %1906 = vst [vmem:[%s765 + $0x18] sm:$0xff] %v1832
        %1907 = vst [vmem:[%s765 + $0x20] sm:$0xff] %v1837
        %1908 = vst [vmem:[%s765 + $0x28] sm:$0xff] %v1840
        %1909 = vst [vmem:[%s765 + $0x30] sm:$0xff] %v1845
        %1910 = vst [vmem:[%s772] sm:$0xff] %v1848
        %1911 = vst [vmem:[%s772 + $0x8] sm:$0xff] %v1853
        %1912 = vst [vmem:[%s772 + $0x10] sm:$0xff] %v1856
        %1913 = vst [vmem:[%s772 + $0x18] sm:$0xff] %v1861
        %1914 = vst [vmem:[%s772 + $0x20] sm:$0xff] %v1864
        %1915 = vst [vmem:[%s772 + $0x28] sm:$0xff] %v1869
        %1916 = vst [vmem:[%s772 + $0x30] sm:$0xff] %v1872
        %s1917 = sand.u32 %s322, 1
        %s1918 = scalar_lea.sflag [#allocation5], %s1917
        %s1919 = sand.u32 %s322, 1
        %s1920 = smul.addr %s1919, 56
        %s1921 = scalar_lea.vmem [#allocation23], %s1920
        %s1922 = sand.u32 %s52, 1
        %s1923 = scalar_lea.sflag [#allocation25], %s1922
        %s1924 = sand.u32 %s348, 1
        %s1925 = smul.addr %s1924, 56
        %s1926 = scalar_lea.vmem [#allocation24], %s1925
        %s1927 = sand.u32 %s52, 1
        %s1928 = scalar_lea.sflag [#allocation25], %s1927
        %s1929 = sand.u32 %s374, 1
        %s1930 = smul.addr %s1929, 56
        %s1931 = scalar_lea.vmem [#allocation26], %s1930
        %s1932 = sand.u32 %s52, 1
        %s1933 = scalar_lea.sflag [#allocation28], %s1932
        %s1934 = sand.u32 %s400, 1
        %s1935 = smul.addr %s1934, 56
        %s1936 = scalar_lea.vmem [#allocation27], %s1935
        %s1937 = sand.u32 %s52, 1
        %s1938 = scalar_lea.sflag [#allocation28], %s1937
        %s1939 = sand.u32 %s426, 1
        %s1940 = smul.addr %s1939, 56
        %s1941 = scalar_lea.vmem [#allocation29], %s1940
        %s1942 = sand.u32 %s452, 1
        %s1943 = scalar_lea.sflag [#allocation31], %s1942
        %s1944 = sand.u32 %s452, 1
        %s1945 = smul.addr %s1944, 56
        %s1946 = scalar_lea.vmem [#allocation30], %s1945
        // Predicated region
        $region117: #{drsc_nn_forward.1} parent=67 // pred_check
          %p1947 = pneg %p332
        $region118: #{drsc_nn_forward.1} parent=67 // pred_check_branch
          %1949 = sbr.rel (%p1947) target = $region120
        $region119: #{drsc_nn_forward.1} parent=67 // pred_region
          %s1950 = smul.u32 7, %s52
          %s1952 = ssub.s32 896, 896
          %1953 = vsyncadd %s1918, %s1952
          %s1954 = smul.addr %s1950, 128
          %s1955 = scalar_lea.hbm %s12, %s1954
          %s1956 = sshll.u32 %s1921, 4
          %s1957 = int_to_ptr.vmem [resolvable:$true] %s1956
          %1962 = dma.vmem_to_hbm [thread:$0]  %s1957, 896, %s1955, %s1918, 128, 128, 8
        $region120: #{drsc_nn_forward.1} parent=67 // pred_fallthru
          _
        // Predicated region
        $region121: #{drsc_nn_forward.1} parent=67 // pred_check
          %p1963 = pneg %p358
        $region122: #{drsc_nn_forward.1} parent=67 // pred_check_branch
          %1965 = sbr.rel (%p1963) target = $region124
        $region123: #{drsc_nn_forward.1} parent=67 // pred_region
          %s1966 = smul.u32 7, %s52
          %s1968 = ssub.s32 896, 896
          %1969 = vsyncadd %s1923, %s1968
          %s1970 = smul.addr %s1966, 128
          %s1971 = scalar_lea.hbm %s13, %s1970
          %s1972 = sshll.u32 %s1926, 4
          %s1973 = int_to_ptr.vmem [resolvable:$true] %s1972
          %1978 = dma.vmem_to_hbm [thread:$0]  %s1973, 896, %s1971, %s1923, 128, 128, 8
        $region124: #{drsc_nn_forward.1} parent=67 // pred_fallthru
          _
        // Predicated region
        $region125: #{drsc_nn_forward.1} parent=67 // pred_check
          %p1979 = pneg %p384
        $region126: #{drsc_nn_forward.1} parent=67 // pred_check_branch
          %1981 = sbr.rel (%p1979) target = $region128
        $region127: #{drsc_nn_forward.1} parent=67 // pred_region
          %s1982 = smul.u32 7, %s52
          %s1984 = ssub.s32 896, 896
          %1985 = vsyncadd %s1928, %s1984
          %s1986 = smul.addr %s1982, 128
          %s1987 = scalar_lea.hbm %s14, %s1986
          %s1988 = sshll.u32 %s1931, 4
          %s1989 = int_to_ptr.vmem [resolvable:$true] %s1988
          %1994 = dma.vmem_to_hbm [thread:$0]  %s1989, 896, %s1987, %s1928, 128, 128, 8
        $region128: #{drsc_nn_forward.1} parent=67 // pred_fallthru
          _
        // Predicated region
        $region129: #{drsc_nn_forward.1} parent=67 // pred_check
          %p1995 = pneg %p410
        $region130: #{drsc_nn_forward.1} parent=67 // pred_check_branch
          %1997 = sbr.rel (%p1995) target = $region132
        $region131: #{drsc_nn_forward.1} parent=67 // pred_region
          %s1998 = smul.u32 7, %s52
          %s2000 = ssub.s32 896, 896
          %2001 = vsyncadd %s1933, %s2000
          %s2002 = smul.addr %s1998, 128
          %s2003 = scalar_lea.hbm %s15, %s2002
          %s2004 = sshll.u32 %s1936, 4
          %s2005 = int_to_ptr.vmem [resolvable:$true] %s2004
          %2010 = dma.vmem_to_hbm [thread:$0]  %s2005, 896, %s2003, %s1933, 128, 128, 8
        $region132: #{drsc_nn_forward.1} parent=67 // pred_fallthru
          _
        // Predicated region
        $region133: #{drsc_nn_forward.1} parent=67 // pred_check
          %p2011 = pneg %p436
        $region134: #{drsc_nn_forward.1} parent=67 // pred_check_branch
          %2013 = sbr.rel (%p2011) target = $region136
        $region135: #{drsc_nn_forward.1} parent=67 // pred_region
          %s2014 = smul.u32 7, %s52
          %s2016 = ssub.s32 896, 896
          %2017 = vsyncadd %s1938, %s2016
          %s2018 = smul.addr %s2014, 128
          %s2019 = scalar_lea.hbm %s16, %s2018
          %s2020 = sshll.u32 %s1941, 4
          %s2021 = int_to_ptr.vmem [resolvable:$true] %s2020
          %2026 = dma.vmem_to_hbm [thread:$0]  %s2021, 896, %s2019, %s1938, 128, 128, 8
        $region136: #{drsc_nn_forward.1} parent=67 // pred_fallthru
          _
        // Predicated region
        $region137: #{drsc_nn_forward.1} parent=67 // pred_check
          %p2027 = pneg %p462
        $region138: #{drsc_nn_forward.1} parent=67 // pred_check_branch
          %2029 = sbr.rel (%p2027) target = $region140
        $region139: #{drsc_nn_forward.1} parent=67 // pred_region
          %s2030 = smul.u32 7, %s52
          %s2032 = ssub.s32 896, 896
          %2033 = vsyncadd %s1943, %s2032
          %s2034 = smul.addr %s2030, 128
          %s2035 = scalar_lea.hbm %s17, %s2034
          %s2036 = sshll.u32 %s1946, 4
          %s2037 = int_to_ptr.vmem [resolvable:$true] %s2036
          %2042 = dma.vmem_to_hbm [thread:$0]  %s2037, 896, %s2035, %s1943, 128, 128, 8
        $region140: #{drsc_nn_forward.1} parent=67 // pred_fallthru
          _
      $region68: #{drsc_nn_forward.1} parent=5 // pred_fallthru
        _
      %p2043 = scmp.le.s32.totalorder 2, %s47
      // Predicated region
      $region141: #{drsc_nn_forward.1} parent=5 // pred_check
        %p2044 = pneg %p2043
      $region142: #{drsc_nn_forward.1} parent=5 // pred_check_branch
        %2046 = sbr.rel (%p2044) target = $region144
      $region143: #{drsc_nn_forward.1} parent=5 // pred_region
        %s2047 = ssub.s32 %s47, 2
        // Predicated region
        $region145: #{drsc_nn_forward.1} parent=143 // pred_check
          %p2048 = pneg %p338
        $region146: #{drsc_nn_forward.1} parent=143 // pred_check_branch
          %2050 = sbr.rel (%p2048) target = $region148
        $region147: #{drsc_nn_forward.1} parent=143 // pred_region
          %s2051 = sand.u32 %s323, 1
          %s2052 = scalar_lea.sflag [#allocation5], %s2051
          %s2053 = sand.u32 %s323, 1
          %s2054 = smul.addr %s2053, 56
          %s2055 = scalar_lea.vmem [#allocation23], %s2054
          %2056 = dma.done %s2052, 896
        $region148: #{drsc_nn_forward.1} parent=143 // pred_fallthru
          _
        // Predicated region
        $region149: #{drsc_nn_forward.1} parent=143 // pred_check
          %p2057 = pneg %p364
        $region150: #{drsc_nn_forward.1} parent=143 // pred_check_branch
          %2059 = sbr.rel (%p2057) target = $region152
        $region151: #{drsc_nn_forward.1} parent=143 // pred_region
          %s2060 = sand.u32 %s53, 1
          %s2061 = scalar_lea.sflag [#allocation25], %s2060
          %s2062 = sand.u32 %s349, 1
          %s2063 = smul.addr %s2062, 56
          %s2064 = scalar_lea.vmem [#allocation24], %s2063
          %2065 = dma.done %s2061, 896
        $region152: #{drsc_nn_forward.1} parent=143 // pred_fallthru
          _
        // Predicated region
        $region153: #{drsc_nn_forward.1} parent=143 // pred_check
          %p2066 = pneg %p390
        $region154: #{drsc_nn_forward.1} parent=143 // pred_check_branch
          %2068 = sbr.rel (%p2066) target = $region156
        $region155: #{drsc_nn_forward.1} parent=143 // pred_region
          %s2069 = sand.u32 %s53, 1
          %s2070 = scalar_lea.sflag [#allocation25], %s2069
          %s2071 = sand.u32 %s375, 1
          %s2072 = smul.addr %s2071, 56
          %s2073 = scalar_lea.vmem [#allocation26], %s2072
          %2074 = dma.done %s2070, 896
        $region156: #{drsc_nn_forward.1} parent=143 // pred_fallthru
          _
        // Predicated region
        $region157: #{drsc_nn_forward.1} parent=143 // pred_check
          %p2075 = pneg %p416
        $region158: #{drsc_nn_forward.1} parent=143 // pred_check_branch
          %2077 = sbr.rel (%p2075) target = $region160
        $region159: #{drsc_nn_forward.1} parent=143 // pred_region
          %s2078 = sand.u32 %s53, 1
          %s2079 = scalar_lea.sflag [#allocation28], %s2078
          %s2080 = sand.u32 %s401, 1
          %s2081 = smul.addr %s2080, 56
          %s2082 = scalar_lea.vmem [#allocation27], %s2081
          %2083 = dma.done %s2079, 896
        $region160: #{drsc_nn_forward.1} parent=143 // pred_fallthru
          _
        // Predicated region
        $region161: #{drsc_nn_forward.1} parent=143 // pred_check
          %p2084 = pneg %p442
        $region162: #{drsc_nn_forward.1} parent=143 // pred_check_branch
          %2086 = sbr.rel (%p2084) target = $region164
        $region163: #{drsc_nn_forward.1} parent=143 // pred_region
          %s2087 = sand.u32 %s53, 1
          %s2088 = scalar_lea.sflag [#allocation28], %s2087
          %s2089 = sand.u32 %s427, 1
          %s2090 = smul.addr %s2089, 56
          %s2091 = scalar_lea.vmem [#allocation29], %s2090
          %2092 = dma.done %s2088, 896
        $region164: #{drsc_nn_forward.1} parent=143 // pred_fallthru
          _
        // Predicated region
        $region165: #{drsc_nn_forward.1} parent=143 // pred_check
          %p2093 = pneg %p468
        $region166: #{drsc_nn_forward.1} parent=143 // pred_check_branch
          %2095 = sbr.rel (%p2093) target = $region168
        $region167: #{drsc_nn_forward.1} parent=143 // pred_region
          %s2096 = sand.u32 %s453, 1
          %s2097 = scalar_lea.sflag [#allocation31], %s2096
          %s2098 = sand.u32 %s453, 1
          %s2099 = smul.addr %s2098, 56
          %s2100 = scalar_lea.vmem [#allocation30], %s2099
          %2101 = dma.done %s2097, 896
        $region168: #{drsc_nn_forward.1} parent=143 // pred_fallthru
          _
      $region144: #{drsc_nn_forward.1} parent=5 // pred_fallthru
        _
    $region6: #{drsc_nn_forward.1} parent=1 // loop_footer
      %s51 = sadd.s32 1, %s47
    $region7: #{drsc_nn_forward.1} parent=1 // loop_footer_branch
      %46 = sbr.rel target = $region3
    $region8: #{drsc_nn_forward.1} parent=1 // loop_exit
      _
    %2102 = vsyncpa [#allocation4], 1
    %s2103 = scalar_lea.sflag [#allocation4], 1
    %2104 = vsyncpa %s2103, 1
    %2105 = vsyncpa [#allocation7], 1
    %s2106 = scalar_lea.sflag [#allocation7], 1
    %2107 = vsyncpa %s2106, 1
    %2108 = vsyncpa [#allocation10], 1
    %2109 = vsyncpa [#allocation13], 1
    %2110 = vsyncpa [#allocation16], 1
    %2111 = vsyncpa [#allocation19], 1
    %2112 = vsyncpa [#allocation22], 1
    %2113 = vsyncpa [#allocation5], 1
    %s2114 = scalar_lea.sflag [#allocation5], 1
    %2115 = vsyncpa %s2114, 1
    %2116 = vsyncpa [#allocation25], 1
    %s2117 = scalar_lea.sflag [#allocation25], 1
    %2118 = vsyncpa %s2117, 1
    %2119 = vsyncpa [#allocation28], 1
    %s2120 = scalar_lea.sflag [#allocation28], 1
    %2121 = vsyncpa %s2120, 1
    %2122 = vsyncpa [#allocation31], 1
    %s2123 = scalar_lea.sflag [#allocation31], 1
    %2124 = vsyncpa %s2123, 1

// kernel: drsc_nn_forward.1
$region0: #{drsc_nn_forward.1}
  #allocation0 [shape = 'u32[]', space=smem, size = 0x4, offset = 0x4, fixed_abs, tag = 'smem constant byte address 0x4 - core index']
  #allocation1 [shape = 'u32[144,128]{1,0:T(1,128)}', space=vmem, size = 0x12000, scoped, tag = 'internal scratch']
  #allocation2 [shape = 'bf16[112,256]{1,0:T(16,128)(2,1)}', space=vmem, size = 0xe000, scoped, tag = 'scratch operand']
  %s0 = inlined_call_operand.hbm [shape: bf16[224,128], index: 0, kind: input, shape index: {}]
  %s1 = inlined_call_operand.hbm [shape: bf16[224,128], index: 1, kind: input, shape index: {}]
  %s2 = inlined_call_operand.hbm [shape: bf16[128,256], index: 2, kind: input, shape index: {}]
  %s3 = inlined_call_operand.hbm [shape: f32[1,256], index: 3, kind: input, shape index: {}]
  %s4 = inlined_call_operand.hbm [shape: bf16[128,256], index: 4, kind: input, shape index: {}]
  %s5 = inlined_call_operand.hbm [shape: f32[1,256], index: 5, kind: input, shape index: {}]
  %s6 = inlined_call_operand.hbm [shape: bf16[256,128], index: 6, kind: input, shape index: {}]
  %s7 = inlined_call_operand.hbm [shape: f32[1,128], index: 7, kind: input, shape index: {}]
  %s8 = inlined_call_operand.hbm [shape: bf16[128,128], index: 8, kind: input, shape index: {}]
  %s9 = inlined_call_operand.hbm [shape: f32[1,128], index: 9, kind: input, shape index: {}]
  %s10 = inlined_call_operand.hbm [shape: bf16[128,128], index: 10, kind: input, shape index: {}]
  %s11 = inlined_call_operand.hbm [shape: f32[1,128], index: 11, kind: input, shape index: {}]
  %s12 = inlined_call_operand.hbm [shape: f32[224,128], index: 12, kind: output, shape index: {0}]
  %s13 = inlined_call_operand.hbm [shape: f32[224,128], index: 13, kind: output, shape index: {1}]
  %s14 = inlined_call_operand.hbm [shape: f32[224,128], index: 14, kind: output, shape index: {2}]
  %s15 = inlined_call_operand.hbm [shape: f32[224,128], index: 15, kind: output, shape index: {3}]
  %s16 = inlined_call_operand.hbm [shape: f32[224,128], index: 16, kind: output, shape index: {4}]
  %s17 = inlined_call_operand.hbm [shape: f32[224,128], index: 17, kind: output, shape index: {5}]
  %18 = xla_tuple %s12, %s13, %s14, %s15, %s16, %s17
  %s19 = sld [smem:[#allocation0]]
  $region169: #{drsc_nn_forward.1} parent=0
    _
  %s21 = ssub.s32 1, %s19
  %s22 = scalar_select 0, %s21, %s19
  $region1: #{drsc_nn_forward.1} parent=0
    #allocation3 [shape = 'u8[28672]{0}', space=vmem, size = 0x7000, scoped, tag = 'input window, operand 0']
    #allocation4 [shape = 's32[2]{0}', space=sflag, size = 0x8, scoped, tag = 'scoped memory for drsc_nn_forward.1']
    #allocation5 [shape = 's32[2]{0}', space=sflag, size = 0x8, scoped, tag = 'scoped memory for drsc_nn_forward.1']
    #allocation6 [shape = 'u8[28672]{0}', space=vmem, size = 0x7000, scoped, tag = 'input window, operand 1']
    #allocation7 [shape = 's32[2]{0}', space=sflag, size = 0x8, scoped, tag = 'scoped memory for drsc_nn_forward.1']
    #allocation8 [shape = 'u8[65536]{0}', space=vmem, size = 0x10000, scoped, tag = 'input window, operand 2, single buffered']
    #allocation9 [shape = 'u8[1024]{0}', space=vmem, size = 0x400, scoped, tag = 'input window, operand 3, single buffered']
    #allocation10 [shape = 's32[1]{0}', space=sflag, size = 0x4, scoped, tag = 'scoped memory for drsc_nn_forward.1']
    #allocation11 [shape = 'u8[65536]{0}', space=vmem, size = 0x10000, scoped, tag = 'input window, operand 4, single buffered']
    #allocation12 [shape = 'u8[1024]{0}', space=vmem, size = 0x400, scoped, tag = 'input window, operand 5, single buffered']
    #allocation13 [shape = 's32[1]{0}', space=sflag, size = 0x4, scoped, tag = 'scoped memory for drsc_nn_forward.1']
    #allocation14 [shape = 'u8[65536]{0}', space=vmem, size = 0x10000, scoped, tag = 'input window, operand 6, single buffered']
    #allocation15 [shape = 'u8[512]{0}', space=vmem, size = 0x400, scoped, tag = 'input window, operand 7, single buffered']
    #allocation16 [shape = 's32[1]{0}', space=sflag, size = 0x4, scoped, tag = 'scoped memory for drsc_nn_forward.1']
    #allocation17 [shape = 'u8[32768]{0}', space=vmem, size = 0x8000, scoped, tag = 'input window, operand 8, single buffered']
    #allocation18 [shape = 'u8[512]{0}', space=vmem, size = 0x400, scoped, tag = 'input window, operand 9, single buffered']
    #allocation19 [shape = 's32[1]{0}', space=sflag, size = 0x4, scoped, tag = 'scoped memory for drsc_nn_forward.1']
    #allocation20 [shape = 'u8[32768]{0}', space=vmem, size = 0x8000, scoped, tag = 'input window, operand 10, single buffered']
    #allocation21 [shape = 'u8[512]{0}', space=vmem, size = 0x400, scoped, tag = 'input window, operand 11, single buffered']
    #allocation22 [shape = 's32[1]{0}', space=sflag, size = 0x4, scoped, tag = 'scoped memory for drsc_nn_forward.1']
    #allocation23 [shape = 'u8[57344]{0}', space=vmem, size = 0xe000, scoped, tag = 'output window, operand 0']
    #allocation24 [shape = 'u8[57344]{0}', space=vmem, size = 0xe000, scoped, tag = 'output window, operand 1']
    #allocation25 [shape = 's32[2]{0}', space=sflag, size = 0x8, scoped, tag = 'scoped memory for drsc_nn_forward.1']
    #allocation26 [shape = 'u8[57344]{0}', space=vmem, size = 0xe000, scoped, tag = 'output window, operand 2']
    #allocation27 [shape = 'u8[57344]{0}', space=vmem, size = 0xe000, scoped, tag = 'output window, operand 3']
    #allocation28 [shape = 's32[2]{0}', space=sflag, size = 0x8, scoped, tag = 'scoped memory for drsc_nn_forward.1']
    #allocation29 [shape = 'u8[57344]{0}', space=vmem, size = 0xe000, scoped, tag = 'output window, operand 4']
    #allocation30 [shape = 'u8[57344]{0}', space=vmem, size = 0xe000, scoped, tag = 'output window, operand 5']
    #allocation31 [shape = 's32[2]{0}', space=sflag, size = 0x8, scoped, tag = 'scoped memory for drsc_nn_forward.1']
    %23 = vsyncpa [#allocation4], 0
    %s24 = scalar_lea.sflag [#allocation4], 1
    %25 = vsyncpa %s24, 0
    %26 = vsyncpa [#allocation7], 0
    %s27 = scalar_lea.sflag [#allocation7], 1
    %28 = vsyncpa %s27, 0
    %29 = vsyncpa [#allocation10], 0
    %30 = vsyncpa [#allocation13], 0
    %31 = vsyncpa [#allocation16], 0
    %32 = vsyncpa [#allocation19], 0
    %33 = vsyncpa [#allocation22], 0
    %34 = vsyncpa [#allocation5], 0
    %s35 = scalar_lea.sflag [#allocation5], 1
    %36 = vsyncpa %s35, 0
    %37 = vsyncpa [#allocation25], 0
    %s38 = scalar_lea.sflag [#allocation25], 1
    %39 = vsyncpa %s38, 0
    %40 = vsyncpa [#allocation28], 0
    %s41 = scalar_lea.sflag [#allocation28], 1
    %42 = vsyncpa %s41, 0
    %43 = vsyncpa [#allocation31], 0
    %s44 = scalar_lea.sflag [#allocation31], 1
    %45 = vsyncpa %s44, 0
    loop: start=0, step=1, limit=6
    $region2: #{drsc_nn_forward.1} parent=1 // loop_pre_header
      _
    $region3: #{drsc_nn_forward.1} parent=1 // loop_header
      %s47 = sphi 0, %s51
      %p48 = scmp.ge.s32.totalorder %s47, 6
      %s57 = sphi 0, %s59
      %s60 = sphi 0, %s57
      %s61 = sphi 0, %s60
      %s77 = sphi 0, %s61
      %s83 = sphi 0, %s85
      %s86 = sphi 0, %s83
      %s87 = sphi 0, %s86
      %s103 = sphi 0, %s87
      %s107 = sphi 0, %s107
      %s109 = sphi 0, %s107
      %s110 = sphi 0, %s109
      %s124 = sphi 0, %s110
      %s128 = sphi 0, %s128
      %s130 = sphi 0, %s128
      %s131 = sphi 0, %s130
      %s145 = sphi 0, %s131
      %s149 = sphi 0, %s149
      %s151 = sphi 0, %s149
      %s152 = sphi 0, %s151
      %s166 = sphi 0, %s152
      %s170 = sphi 0, %s170
      %s172 = sphi 0, %s170
      %s173 = sphi 0, %s172
      %s187 = sphi 0, %s173
      %s191 = sphi 0, %s191
      %s193 = sphi 0, %s191
      %s194 = sphi 0, %s193
      %s208 = sphi 0, %s194
      %s212 = sphi 0, %s212
      %s214 = sphi 0, %s212
      %s215 = sphi 0, %s214
      %s229 = sphi 0, %s215
      %s233 = sphi 0, %s233
      %s235 = sphi 0, %s233
      %s236 = sphi 0, %s235
      %s250 = sphi 0, %s236
      %s254 = sphi 0, %s254
      %s256 = sphi 0, %s254
      %s257 = sphi 0, %s256
      %s271 = sphi 0, %s257
      %s275 = sphi 0, %s275
      %s277 = sphi 0, %s275
      %s278 = sphi 0, %s277
      %s292 = sphi 0, %s278
      %s296 = sphi 0, %s296
      %s298 = sphi 0, %s296
      %s299 = sphi 0, %s298
      %s313 = sphi 0, %s299
      %s319 = sphi 0, %s321
      %s322 = sphi 0, %s319
      %s323 = sphi 0, %s322
      %s339 = sphi 0, %s323
      %s345 = sphi 0, %s347
      %s348 = sphi 0, %s345
      %s349 = sphi 0, %s348
      %s365 = sphi 0, %s349
      %s371 = sphi 0, %s373
      %s374 = sphi 0, %s371
      %s375 = sphi 0, %s374
      %s391 = sphi 0, %s375
      %s397 = sphi 0, %s399
      %s400 = sphi 0, %s397
      %s401 = sphi 0, %s400
      %s417 = sphi 0, %s401
      %s423 = sphi 0, %s425
      %s426 = sphi 0, %s423
      %s427 = sphi 0, %s426
      %s443 = sphi 0, %s427
      %s449 = sphi 0, %s451
      %s452 = sphi 0, %s449
      %s453 = sphi 0, %s452
      %s469 = sphi 0, %s453
    $region4: #{drsc_nn_forward.1} parent=1 // loop_header_branch
      %50 = sbr.rel (%p48) target = $region8
    $region5: #{drsc_nn_forward.1} parent=1 // loop_body
      %s52 = ssub.s32 %s47, 1
      %s53 = ssub.s32 %s47, 2
      %s54 = sadd.s32 %s47, 1
      %s55 = ssub.s32 %s47, %s54
      %p56 = scmp.eq.s32.totalorder %s55, 0
      %s58 = sadd.s32 %s57, 1
      %s59 = scalar_select %p56, %s57, %s58
      %p62 = pneg %p56
      %p63 = scmp.eq.s32.totalorder %s47, 3
      %p64 = por %p62, %p63
      %p65 = scmp.ne.s32.totalorder %s57, %s60
      %p66 = scmp.eq.s32.totalorder %s47, 0
      %p67 = por %p65, %p66
      %p68 = scmp.ne.s32.totalorder %s57, %s60
      %p69 = scmp.eq.s32.totalorder %s52, 3
      %p70 = por %p68, %p69
      %p71 = scmp.ne.s32.totalorder %s60, %s61
      %p72 = scmp.eq.s32.totalorder %s52, 0
      %p73 = por %p71, %p72
      %p74 = scmp.ne.s32.totalorder %s60, %s61
      %p75 = scmp.eq.s32.totalorder %s53, 3
      %p76 = por %p74, %p75
      %p78 = scmp.ne.s32.totalorder %s61, %s77
      %p79 = scmp.eq.s32.totalorder %s53, 0
      %p80 = por %p78, %p79
      %s81 = ssub.s32 %s47, %s54
      %p82 = scmp.eq.s32.totalorder %s81, 0
      %s84 = sadd.s32 %s83, 1
      %s85 = scalar_select %p82, %s83, %s84
      %p88 = pneg %p82
      %p89 = scmp.eq.s32.totalorder %s47, 3
      %p90 = por %p88, %p89
      %p91 = scmp.ne.s32.totalorder %s83, %s86
      %p92 = scmp.eq.s32.totalorder %s47, 0
      %p93 = por %p91, %p92
      %p94 = scmp.ne.s32.totalorder %s83, %s86
      %p95 = scmp.eq.s32.totalorder %s52, 3
      %p96 = por %p94, %p95
      %p97 = scmp.ne.s32.totalorder %s86, %s87
      %p98 = scmp.eq.s32.totalorder %s52, 0
      %p99 = por %p97, %p98
      %p100 = scmp.ne.s32.totalorder %s86, %s87
      %p101 = scmp.eq.s32.totalorder %s53, 3
      %p102 = por %p100, %p101
      %p104 = scmp.ne.s32.totalorder %s87, %s103
      %p105 = scmp.eq.s32.totalorder %s53, 0
      %p106 = por %p104, %p105
      %s108 = sadd.s32 %s107, 1
      %p111 = scmp.eq.s32.totalorder %s47, 3
      %p112 = scmp.ne.s32.totalorder %s107, %s109
      %p113 = scmp.eq.s32.totalorder %s47, 0
      %p114 = por %p112, %p113
      %p115 = scmp.ne.s32.totalorder %s107, %s109
      %p116 = scmp.eq.s32.totalorder %s52, 3
      %p117 = por %p115, %p116
      %p118 = scmp.ne.s32.totalorder %s109, %s110
      %p119 = scmp.eq.s32.totalorder %s52, 0
      %p120 = por %p118, %p119
      %p121 = scmp.ne.s32.totalorder %s109, %s110
      %p122 = scmp.eq.s32.totalorder %s53, 3
      %p123 = por %p121, %p122
      %p125 = scmp.ne.s32.totalorder %s110, %s124
      %p126 = scmp.eq.s32.totalorder %s53, 0
      %p127 = por %p125, %p126
      %s129 = sadd.s32 %s128, 1
      %p132 = scmp.eq.s32.totalorder %s47, 3
      %p133 = scmp.ne.s32.totalorder %s128, %s130
      %p134 = scmp.eq.s32.totalorder %s47, 0
      %p135 = por %p133, %p134
      %p136 = scmp.ne.s32.totalorder %s128, %s130
      %p137 = scmp.eq.s32.totalorder %s52, 3
      %p138 = por %p136, %p137
      %p139 = scmp.ne.s32.totalorder %s130, %s131
      %p140 = scmp.eq.s32.totalorder %s52, 0
      %p141 = por %p139, %p140
      %p142 = scmp.ne.s32.totalorder %s130, %s131
      %p143 = scmp.eq.s32.totalorder %s53, 3
      %p144 = por %p142, %p143
      %p146 = scmp.ne.s32.totalorder %s131, %s145
      %p147 = scmp.eq.s32.totalorder %s53, 0
      %p148 = por %p146, %p147
      %s150 = sadd.s32 %s149, 1
      %p153 = scmp.eq.s32.totalorder %s47, 3
      %p154 = scmp.ne.s32.totalorder %s149, %s151
      %p155 = scmp.eq.s32.totalorder %s47, 0
      %p156 = por %p154, %p155
      %p157 = scmp.ne.s32.totalorder %s149, %s151
      %p158 = scmp.eq.s32.totalorder %s52, 3
      %p159 = por %p157, %p158
      %p160 = scmp.ne.s32.totalorder %s151, %s152
      %p161 = scmp.eq.s32.totalorder %s52, 0
      %p162 = por %p160, %p161
      %p163 = scmp.ne.s32.totalorder %s151, %s152
      %p164 = scmp.eq.s32.totalorder %s53, 3
      %p165 = por %p163, %p164
      %p167 = scmp.ne.s32.totalorder %s152, %s166
      %p168 = scmp.eq.s32.totalorder %s53, 0
      %p169 = por %p167, %p168
      %s171 = sadd.s32 %s170, 1
      %p174 = scmp.eq.s32.totalorder %s47, 3
      %p175 = scmp.ne.s32.totalorder %s170, %s172
      %p176 = scmp.eq.s32.totalorder %s47, 0
      %p177 = por %p175, %p176
      %p178 = scmp.ne.s32.totalorder %s170, %s172
      %p179 = scmp.eq.s32.totalorder %s52, 3
      %p180 = por %p178, %p179
      %p181 = scmp.ne.s32.totalorder %s172, %s173
      %p182 = scmp.eq.s32.totalorder %s52, 0
      %p183 = por %p181, %p182
      %p184 = scmp.ne.s32.totalorder %s172, %s173
      %p185 = scmp.eq.s32.totalorder %s53, 3
      %p186 = por %p184, %p185
      %p188 = scmp.ne.s32.totalorder %s173, %s187
      %p189 = scmp.eq.s32.totalorder %s53, 0
      %p190 = por %p188, %p189
      %s192 = sadd.s32 %s191, 1
      %p195 = scmp.eq.s32.totalorder %s47, 3
      %p196 = scmp.ne.s32.totalorder %s191, %s193
      %p197 = scmp.eq.s32.totalorder %s47, 0
      %p198 = por %p196, %p197
      %p199 = scmp.ne.s32.totalorder %s191, %s193
      %p200 = scmp.eq.s32.totalorder %s52, 3
      %p201 = por %p199, %p200
      %p202 = scmp.ne.s32.totalorder %s193, %s194
      %p203 = scmp.eq.s32.totalorder %s52, 0
      %p204 = por %p202, %p203
      %p205 = scmp.ne.s32.totalorder %s193, %s194
      %p206 = scmp.eq.s32.totalorder %s53, 3
      %p207 = por %p205, %p206
      %p209 = scmp.ne.s32.totalorder %s194, %s208
      %p210 = scmp.eq.s32.totalorder %s53, 0
      %p211 = por %p209, %p210
      %s213 = sadd.s32 %s212, 1
      %p216 = scmp.eq.s32.totalorder %s47, 3
      %p217 = scmp.ne.s32.totalorder %s212, %s214
      %p218 = scmp.eq.s32.totalorder %s47, 0
      %p219 = por %p217, %p218
      %p220 = scmp.ne.s32.totalorder %s212, %s214
      %p221 = scmp.eq.s32.totalorder %s52, 3
      %p222 = por %p220, %p221
      %p223 = scmp.ne.s32.totalorder %s214, %s215
      %p224 = scmp.eq.s32.totalorder %s52, 0
      %p225 = por %p223, %p224
      %p226 = scmp.ne.s32.totalorder %s214, %s215
      %p227 = scmp.eq.s32.totalorder %s53, 3
      %p228 = por %p226, %p227
      %p230 = scmp.ne.s32.totalorder %s215, %s229
      %p231 = scmp.eq.s32.totalorder %s53, 0
      %p232 = por %p230, %p231
      %s234 = sadd.s32 %s233, 1
      %p237 = scmp.eq.s32.totalorder %s47, 3
      %p238 = scmp.ne.s32.totalorder %s233, %s235
      %p239 = scmp.eq.s32.totalorder %s47, 0
      %p240 = por %p238, %p239
      %p241 = scmp.ne.s32.totalorder %s233, %s235
      %p242 = scmp.eq.s32.totalorder %s52, 3
      %p243 = por %p241, %p242
      %p244 = scmp.ne.s32.totalorder %s235, %s236
      %p245 = scmp.eq.s32.totalorder %s52, 0
      %p246 = por %p244, %p245
      %p247 = scmp.ne.s32.totalorder %s235, %s236
      %p248 = scmp.eq.s32.totalorder %s53, 3
      %p249 = por %p247, %p248
      %p251 = scmp.ne.s32.totalorder %s236, %s250
      %p252 = scmp.eq.s32.totalorder %s53, 0
      %p253 = por %p251, %p252
      %s255 = sadd.s32 %s254, 1
      %p258 = scmp.eq.s32.totalorder %s47, 3
      %p259 = scmp.ne.s32.totalorder %s254, %s256
      %p260 = scmp.eq.s32.totalorder %s47, 0
      %p261 = por %p259, %p260
      %p262 = scmp.ne.s32.totalorder %s254, %s256
      %p263 = scmp.eq.s32.totalorder %s52, 3
      %p264 = por %p262, %p263
      %p265 = scmp.ne.s32.totalorder %s256, %s257
      %p266 = scmp.eq.s32.totalorder %s52, 0
      %p267 = por %p265, %p266
      %p268 = scmp.ne.s32.totalorder %s256, %s257
      %p269 = scmp.eq.s32.totalorder %s53, 3
      %p270 = por %p268, %p269
      %p272 = scmp.ne.s32.totalorder %s257, %s271
      %p273 = scmp.eq.s32.totalorder %s53, 0
      %p274 = por %p272, %p273
      %s276 = sadd.s32 %s275, 1
      %p279 = scmp.eq.s32.totalorder %s47, 3
      %p280 = scmp.ne.s32.totalorder %s275, %s277
      %p281 = scmp.eq.s32.totalorder %s47, 0
      %p282 = por %p280, %p281
      %p283 = scmp.ne.s32.totalorder %s275, %s277
      %p284 = scmp.eq.s32.totalorder %s52, 3
      %p285 = por %p283, %p284
      %p286 = scmp.ne.s32.totalorder %s277, %s278
      %p287 = scmp.eq.s32.totalorder %s52, 0
      %p288 = por %p286, %p287
      %p289 = scmp.ne.s32.totalorder %s277, %s278
      %p290 = scmp.eq.s32.totalorder %s53, 3
      %p291 = por %p289, %p290
      %p293 = scmp.ne.s32.totalorder %s278, %s292
      %p294 = scmp.eq.s32.totalorder %s53, 0
      %p295 = por %p293, %p294
      %s297 = sadd.s32 %s296, 1
      %p300 = scmp.eq.s32.totalorder %s47, 3
      %p301 = scmp.ne.s32.totalorder %s296, %s298
      %p302 = scmp.eq.s32.totalorder %s47, 0
      %p303 = por %p301, %p302
      %p304 = scmp.ne.s32.totalorder %s296, %s298
      %p305 = scmp.eq.s32.totalorder %s52, 3
      %p306 = por %p304, %p305
      %p307 = scmp.ne.s32.totalorder %s298, %s299
      %p308 = scmp.eq.s32.totalorder %s52, 0
      %p309 = por %p307, %p308
      %p310 = scmp.ne.s32.totalorder %s298, %s299
      %p311 = scmp.eq.s32.totalorder %s53, 3
      %p312 = por %p310, %p311
      %p314 = scmp.ne.s32.totalorder %s299, %s313
      %p315 = scmp.eq.s32.totalorder %s53, 0
      %p316 = por %p314, %p315
      %s317 = ssub.s32 %s47, %s54
      %p318 = scmp.eq.s32.totalorder %s317, 0
      %s320 = sadd.s32 %s319, 1
      %s321 = scalar_select %p318, %s319, %s320
      %p324 = pneg %p318
      %p325 = scmp.eq.s32.totalorder %s47, 3
      %p326 = por %p324, %p325
      %p327 = scmp.ne.s32.totalorder %s319, %s322
      %p328 = scmp.eq.s32.totalorder %s47, 0
      %p329 = por %p327, %p328
      %p330 = scmp.ne.s32.totalorder %s319, %s322
      %p331 = scmp.eq.s32.totalorder %s52, 3
      %p332 = por %p330, %p331
      %p333 = scmp.ne.s32.totalorder %s322, %s323
      %p334 = scmp.eq.s32.totalorder %s52, 0
      %p335 = por %p333, %p334
      %p336 = scmp.ne.s32.totalorder %s322, %s323
      %p337 = scmp.eq.s32.totalorder %s53, 3
      %p338 = por %p336, %p337
      %p340 = scmp.ne.s32.totalorder %s323, %s339
      %p341 = scmp.eq.s32.totalorder %s53, 0
      %p342 = por %p340, %p341
      %s343 = ssub.s32 %s47, %s54
      %p344 = scmp.eq.s32.totalorder %s343, 0
      %s346 = sadd.s32 %s345, 1
      %s347 = scalar_select %p344, %s345, %s346
      %p350 = pneg %p344
      %p351 = scmp.eq.s32.totalorder %s47, 3
      %p352 = por %p350, %p351
      %p353 = scmp.ne.s32.totalorder %s345, %s348
      %p354 = scmp.eq.s32.totalorder %s47, 0
      %p355 = por %p353, %p354
      %p356 = scmp.ne.s32.totalorder %s345, %s348
      %p357 = scmp.eq.s32.totalorder %s52, 3
      %p358 = por %p356, %p357
      %p359 = scmp.ne.s32.totalorder %s348, %s349
      %p360 = scmp.eq.s32.totalorder %s52, 0
      %p361 = por %p359, %p360
      %p362 = scmp.ne.s32.totalorder %s348, %s349
      %p363 = scmp.eq.s32.totalorder %s53, 3
      %p364 = por %p362, %p363
      %p366 = scmp.ne.s32.totalorder %s349, %s365
      %p367 = scmp.eq.s32.totalorder %s53, 0
      %p368 = por %p366, %p367
      %s369 = ssub.s32 %s47, %s54
      %p370 = scmp.eq.s32.totalorder %s369, 0
      %s372 = sadd.s32 %s371, 1
      %s373 = scalar_select %p370, %s371, %s372
      %p376 = pneg %p370
      %p377 = scmp.eq.s32.totalorder %s47, 3
      %p378 = por %p376, %p377
      %p379 = scmp.ne.s32.totalorder %s371, %s374
      %p380 = scmp.eq.s32.totalorder %s47, 0
      %p381 = por %p379, %p380
      %p382 = scmp.ne.s32.totalorder %s371, %s374
      %p383 = scmp.eq.s32.totalorder %s52, 3
      %p384 = por %p382, %p383
      %p385 = scmp.ne.s32.totalorder %s374, %s375
      %p386 = scmp.eq.s32.totalorder %s52, 0
      %p387 = por %p385, %p386
      %p388 = scmp.ne.s32.totalorder %s374, %s375
      %p389 = scmp.eq.s32.totalorder %s53, 3
      %p390 = por %p388, %p389
      %p392 = scmp.ne.s32.totalorder %s375, %s391
      %p393 = scmp.eq.s32.totalorder %s53, 0
      %p394 = por %p392, %p393
      %s395 = ssub.s32 %s47, %s54
      %p396 = scmp.eq.s32.totalorder %s395, 0
      %s398 = sadd.s32 %s397, 1
      %s399 = scalar_select %p396, %s397, %s398
      %p402 = pneg %p396
      %p403 = scmp.eq.s32.totalorder %s47, 3
      %p404 = por %p402, %p403
      %p405 = scmp.ne.s32.totalorder %s397, %s400
      %p406 = scmp.eq.s32.totalorder %s47, 0
      %p407 = por %p405, %p406
      %p408 = scmp.ne.s32.totalorder %s397, %s400
      %p409 = scmp.eq.s32.totalorder %s52, 3
      %p410 = por %p408, %p409
      %p411 = scmp.ne.s32.totalorder %s400, %s401
      %p412 = scmp.eq.s32.totalorder %s52, 0
      %p413 = por %p411, %p412
      %p414 = scmp.ne.s32.totalorder %s400, %s401
      %p415 = scmp.eq.s32.totalorder %s53, 3
      %p416 = por %p414, %p415
      %p418 = scmp.ne.s32.totalorder %s401, %s417
      %p419 = scmp.eq.s32.totalorder %s53, 0
      %p420 = por %p418, %p419
      %s421 = ssub.s32 %s47, %s54
      %p422 = scmp.eq.s32.totalorder %s421, 0
      %s424 = sadd.s32 %s423, 1
      %s425 = scalar_select %p422, %s423, %s424
      %p428 = pneg %p422
      %p429 = scmp.eq.s32.totalorder %s47, 3
      %p430 = por %p428, %p429
      %p431 = scmp.ne.s32.totalorder %s423, %s426
      %p432 = scmp.eq.s32.totalorder %s47, 0
      %p433 = por %p431, %p432
      %p434 = scmp.ne.s32.totalorder %s423, %s426
      %p435 = scmp.eq.s32.totalorder %s52, 3
      %p436 = por %p434, %p435
      %p437 = scmp.ne.s32.totalorder %s426, %s427
      %p438 = scmp.eq.s32.totalorder %s52, 0
      %p439 = por %p437, %p438
      %p440 = scmp.ne.s32.totalorder %s426, %s427
      %p441 = scmp.eq.s32.totalorder %s53, 3
      %p442 = por %p440, %p441
      %p444 = scmp.ne.s32.totalorder %s427, %s443
      %p445 = scmp.eq.s32.totalorder %s53, 0
      %p446 = por %p444, %p445
      %s447 = ssub.s32 %s47, %s54
      %p448 = scmp.eq.s32.totalorder %s447, 0
      %s450 = sadd.s32 %s449, 1
      %s451 = scalar_select %p448, %s449, %s450
      %p454 = pneg %p448
      %p455 = scmp.eq.s32.totalorder %s47, 3
      %p456 = por %p454, %p455
      %p457 = scmp.ne.s32.totalorder %s449, %s452
      %p458 = scmp.eq.s32.totalorder %s47, 0
      %p459 = por %p457, %p458
      %p460 = scmp.ne.s32.totalorder %s449, %s452
      %p461 = scmp.eq.s32.totalorder %s52, 3
      %p462 = por %p460, %p461
      %p463 = scmp.ne.s32.totalorder %s452, %s453
      %p464 = scmp.eq.s32.totalorder %s52, 0
      %p465 = por %p463, %p464
      %p466 = scmp.ne.s32.totalorder %s452, %s453
      %p467 = scmp.eq.s32.totalorder %s53, 3
      %p468 = por %p466, %p467
      %p470 = scmp.ne.s32.totalorder %s453, %s469
      %p471 = scmp.eq.s32.totalorder %s53, 0
      %p472 = por %p470, %p471
      %p473 = scmp.le.s32.totalorder 1, %s47
      %p474 = scmp.lt.s32.totalorder %s47, 5
      %p475 = pnand %p473, %p474
      %p476 = pneg %p475
      // Predicated region
      $region9: #{drsc_nn_forward.1} parent=5 // pred_check
        _
      $region10: #{drsc_nn_forward.1} parent=5 // pred_check_branch
        %478 = sbr.rel (%p475) target = $region12
      $region11: #{drsc_nn_forward.1} parent=5 // pred_region
        %s479 = ssub.s32 %s47, 1
        // Predicated region
        $region13: #{drsc_nn_forward.1} parent=11 // pred_check
          %p480 = pneg %p120
        $region14: #{drsc_nn_forward.1} parent=11 // pred_check_branch
          %482 = sbr.rel (%p480) target = $region16
        $region15: #{drsc_nn_forward.1} parent=11 // pred_region
          %s484 = ssub.s32 2048, 2048
          %485 = vsyncadd [#allocation7], %s484
          %s486 = sshll.u32 [#allocation8], 4
          %s487 = int_to_ptr.vmem [resolvable:$true] %s486
          %492 = dma.hbm_to_vmem [thread:$0]  %s2, 2048, %s487, [#allocation7], 128, 128, 8
        $region16: #{drsc_nn_forward.1} parent=11 // pred_fallthru
          _
        // Predicated region
        $region17: #{drsc_nn_forward.1} parent=11 // pred_check
          %p493 = pneg %p141
        $region18: #{drsc_nn_forward.1} parent=11 // pred_check_branch
          %495 = sbr.rel (%p493) target = $region20
        $region19: #{drsc_nn_forward.1} parent=11 // pred_region
          %s497 = ssub.s32 32, 32
          %498 = vsyncadd [#allocation10], %s497
          %s500 = sshll.u32 [#allocation9], 4
          %s501 = int_to_ptr.vmem [resolvable:$true] %s500
          %503 = dma.hbm_to_vmem [thread:$0]  %s3, 32, %s501, [#allocation10]
        $region20: #{drsc_nn_forward.1} parent=11 // pred_fallthru
          _
        // Predicated region
        $region21: #{drsc_nn_forward.1} parent=11 // pred_check
          %p504 = pneg %p162
        $region22: #{drsc_nn_forward.1} parent=11 // pred_check_branch
          %506 = sbr.rel (%p504) target = $region24
        $region23: #{drsc_nn_forward.1} parent=11 // pred_region
          %s508 = ssub.s32 2048, 2048
          %509 = vsyncadd [#allocation10], %s508
          %s510 = sshll.u32 [#allocation11], 4
          %s511 = int_to_ptr.vmem [resolvable:$true] %s510
          %516 = dma.hbm_to_vmem [thread:$0]  %s4, 2048, %s511, [#allocation10], 128, 128, 8
        $region24: #{drsc_nn_forward.1} parent=11 // pred_fallthru
          _
        // Predicated region
        $region25: #{drsc_nn_forward.1} parent=11 // pred_check
          %p517 = pneg %p183
        $region26: #{drsc_nn_forward.1} parent=11 // pred_check_branch
          %519 = sbr.rel (%p517) target = $region28
        $region27: #{drsc_nn_forward.1} parent=11 // pred_region
          %s521 = ssub.s32 32, 32
          %522 = vsyncadd [#allocation13], %s521
          %s524 = sshll.u32 [#allocation12], 4
          %s525 = int_to_ptr.vmem [resolvable:$true] %s524
          %527 = dma.hbm_to_vmem [thread:$0]  %s5, 32, %s525, [#allocation13]
        $region28: #{drsc_nn_forward.1} parent=11 // pred_fallthru
          _
        // Predicated region
        $region29: #{drsc_nn_forward.1} parent=11 // pred_check
          %p528 = pneg %p204
        $region30: #{drsc_nn_forward.1} parent=11 // pred_check_branch
          %530 = sbr.rel (%p528) target = $region32
        $region31: #{drsc_nn_forward.1} parent=11 // pred_region
          %s532 = ssub.s32 2048, 2048
          %533 = vsyncadd [#allocation13], %s532
          %s534 = sshll.u32 [#allocation14], 4
          %s535 = int_to_ptr.vmem [resolvable:$true] %s534
          %540 = dma.hbm_to_vmem [thread:$0]  %s6, 2048, %s535, [#allocation13], 64, 64, 4
        $region32: #{drsc_nn_forward.1} parent=11 // pred_fallthru
          _
        // Predicated region
        $region33: #{drsc_nn_forward.1} parent=11 // pred_check
          %p541 = pneg %p225
        $region34: #{drsc_nn_forward.1} parent=11 // pred_check_branch
          %543 = sbr.rel (%p541) target = $region36
        $region35: #{drsc_nn_forward.1} parent=11 // pred_region
          %s545 = ssub.s32 16, 16
          %546 = vsyncadd [#allocation16], %s545
          %s548 = sshll.u32 [#allocation15], 4
          %s549 = int_to_ptr.vmem [resolvable:$true] %s548
          %551 = dma.hbm_to_vmem [thread:$0]  %s7, 16, %s549, [#allocation16]
        $region36: #{drsc_nn_forward.1} parent=11 // pred_fallthru
          _
        // Predicated region
        $region37: #{drsc_nn_forward.1} parent=11 // pred_check
          %p552 = pneg %p246
        $region38: #{drsc_nn_forward.1} parent=11 // pred_check_branch
          %554 = sbr.rel (%p552) target = $region40
        $region39: #{drsc_nn_forward.1} parent=11 // pred_region
          %s556 = ssub.s32 1024, 1024
          %557 = vsyncadd [#allocation16], %s556
          %s558 = sshll.u32 [#allocation17], 4
          %s559 = int_to_ptr.vmem [resolvable:$true] %s558
          %564 = dma.hbm_to_vmem [thread:$0]  %s8, 1024, %s559, [#allocation16], 64, 64, 4
        $region40: #{drsc_nn_forward.1} parent=11 // pred_fallthru
          _
        // Predicated region
        $region41: #{drsc_nn_forward.1} parent=11 // pred_check
          %p565 = pneg %p267
        $region42: #{drsc_nn_forward.1} parent=11 // pred_check_branch
          %567 = sbr.rel (%p565) target = $region44
        $region43: #{drsc_nn_forward.1} parent=11 // pred_region
          %s569 = ssub.s32 16, 16
          %570 = vsyncadd [#allocation19], %s569
          %s572 = sshll.u32 [#allocation18], 4
          %s573 = int_to_ptr.vmem [resolvable:$true] %s572
          %575 = dma.hbm_to_vmem [thread:$0]  %s9, 16, %s573, [#allocation19]
        $region44: #{drsc_nn_forward.1} parent=11 // pred_fallthru
          _
        // Predicated region
        $region45: #{drsc_nn_forward.1} parent=11 // pred_check
          %p576 = pneg %p288
        $region46: #{drsc_nn_forward.1} parent=11 // pred_check_branch
          %578 = sbr.rel (%p576) target = $region48
        $region47: #{drsc_nn_forward.1} parent=11 // pred_region
          %s580 = ssub.s32 1024, 1024
          %581 = vsyncadd [#allocation19], %s580
          %s582 = sshll.u32 [#allocation20], 4
          %s583 = int_to_ptr.vmem [resolvable:$true] %s582
          %588 = dma.hbm_to_vmem [thread:$0]  %s10, 1024, %s583, [#allocation19], 64, 64, 4
        $region48: #{drsc_nn_forward.1} parent=11 // pred_fallthru
          _
        // Predicated region
        $region49: #{drsc_nn_forward.1} parent=11 // pred_check
          %p589 = pneg %p309
        $region50: #{drsc_nn_forward.1} parent=11 // pred_check_branch
          %591 = sbr.rel (%p589) target = $region52
        $region51: #{drsc_nn_forward.1} parent=11 // pred_region
          %s593 = ssub.s32 16, 16
          %594 = vsyncadd [#allocation22], %s593
          %s596 = sshll.u32 [#allocation21], 4
          %s597 = int_to_ptr.vmem [resolvable:$true] %s596
          %599 = dma.hbm_to_vmem [thread:$0]  %s11, 16, %s597, [#allocation22]
        $region52: #{drsc_nn_forward.1} parent=11 // pred_fallthru
          _
      $region12: #{drsc_nn_forward.1} parent=5 // pred_fallthru
        _
      %p600 = scmp.lt.s32.totalorder %s47, 4
      // Predicated region
      $region53: #{drsc_nn_forward.1} parent=5 // pred_check
        %p601 = pneg %p600
      $region54: #{drsc_nn_forward.1} parent=5 // pred_check_branch
        %603 = sbr.rel (%p601) target = $region56
      $region55: #{drsc_nn_forward.1} parent=5 // pred_region
        // Predicated region
        $region57: #{drsc_nn_forward.1} parent=55 // pred_check
          %p604 = pneg %p67
        $region58: #{drsc_nn_forward.1} parent=55 // pred_check_branch
          %606 = sbr.rel (%p604) target = $region60
        $region59: #{drsc_nn_forward.1} parent=55 // pred_region
          %s607 = sand.u32 %s57, 1
          %s608 = scalar_lea.sflag [#allocation4], %s607
          %s609 = sand.u32 %s57, 1
          %s610 = smul.addr %s609, 28
          %s611 = scalar_lea.vmem [#allocation3], %s610
          %s612 = smul.u32 7, %s47
          %s614 = ssub.s32 448, 448
          %615 = vsyncadd %s608, %s614
          %s616 = smul.addr %s612, 64
          %s617 = scalar_lea.hbm %s0, %s616
          %s618 = sshll.u32 %s611, 4
          %s619 = int_to_ptr.vmem [resolvable:$true] %s618
          %624 = dma.hbm_to_vmem [thread:$0]  %s617, 448, %s619, %s608, 64, 64, 4
        $region60: #{drsc_nn_forward.1} parent=55 // pred_fallthru
          _
        // Predicated region
        $region61: #{drsc_nn_forward.1} parent=55 // pred_check
          %p625 = pneg %p93
        $region62: #{drsc_nn_forward.1} parent=55 // pred_check_branch
          %627 = sbr.rel (%p625) target = $region64
        $region63: #{drsc_nn_forward.1} parent=55 // pred_region
          %s628 = sand.u32 %s47, 1
          %s629 = scalar_lea.sflag [#allocation7], %s628
          %s630 = sand.u32 %s83, 1
          %s631 = smul.addr %s630, 28
          %s632 = scalar_lea.vmem [#allocation6], %s631
          %s633 = smul.u32 7, %s47
          %s635 = ssub.s32 448, 448
          %636 = vsyncadd %s629, %s635
          %s637 = smul.addr %s633, 64
          %s638 = scalar_lea.hbm %s1, %s637
          %s639 = sshll.u32 %s632, 4
          %s640 = int_to_ptr.vmem [resolvable:$true] %s639
          %645 = dma.hbm_to_vmem [thread:$0]  %s638, 448, %s640, %s629, 64, 64, 4
        $region64: #{drsc_nn_forward.1} parent=55 // pred_fallthru
          _
      $region56: #{drsc_nn_forward.1} parent=5 // pred_fallthru
        _
      %p646 = scmp.le.s32.totalorder 1, %s47
      %p647 = scmp.lt.s32.totalorder %s47, 5
      %p648 = pnand %p646, %p647
      %p649 = pneg %p648
      // Predicated region
      $region65: #{drsc_nn_forward.1} parent=5 // pred_check
        _
      $region66: #{drsc_nn_forward.1} parent=5 // pred_check_branch
        %651 = sbr.rel (%p648) target = $region68
      $region67: #{drsc_nn_forward.1} parent=5 // pred_region
        %s652 = ssub.s32 %s47, 1
        %s653 = sand.u32 %s60, 1
        %s654 = scalar_lea.sflag [#allocation4], %s653
        %s655 = sand.u32 %s60, 1
        %s656 = smul.addr %s655, 28
        %s657 = scalar_lea.vmem [#allocation3], %s656
        // Predicated region
        $region69: #{drsc_nn_forward.1} parent=67 // pred_check
          %p658 = pneg %p73
        $region70: #{drsc_nn_forward.1} parent=67 // pred_check_branch
          %660 = sbr.rel (%p658) target = $region72
        $region71: #{drsc_nn_forward.1} parent=67 // pred_region
          %661 = dma.done %s654, 448
        $region72: #{drsc_nn_forward.1} parent=67 // pred_fallthru
          _
        %s662 = sand.u32 %s52, 1
        %s663 = scalar_lea.sflag [#allocation7], %s662
        %s664 = sand.u32 %s86, 1
        %s665 = smul.addr %s664, 28
        %s666 = scalar_lea.vmem [#allocation6], %s665
        // Predicated region
        $region73: #{drsc_nn_forward.1} parent=67 // pred_check
          %p667 = pneg %p99
        $region74: #{drsc_nn_forward.1} parent=67 // pred_check_branch
          %669 = sbr.rel (%p667) target = $region76
        $region75: #{drsc_nn_forward.1} parent=67 // pred_region
          %670 = dma.done %s663, 448
        $region76: #{drsc_nn_forward.1} parent=67 // pred_fallthru
          _
        // Predicated region
        $region77: #{drsc_nn_forward.1} parent=67 // pred_check
          %p671 = pneg %p120
        $region78: #{drsc_nn_forward.1} parent=67 // pred_check_branch
          %673 = sbr.rel (%p671) target = $region80
        $region79: #{drsc_nn_forward.1} parent=67 // pred_region
          %674 = dma.done [#allocation7], 2048
        $region80: #{drsc_nn_forward.1} parent=67 // pred_fallthru
          _
        // Predicated region
        $region81: #{drsc_nn_forward.1} parent=67 // pred_check
          %p675 = pneg %p141
        $region82: #{drsc_nn_forward.1} parent=67 // pred_check_branch
          %677 = sbr.rel (%p675) target = $region84
        $region83: #{drsc_nn_forward.1} parent=67 // pred_region
          %678 = dma.done [#allocation10], 32
        $region84: #{drsc_nn_forward.1} parent=67 // pred_fallthru
          _
        // Predicated region
        $region85: #{drsc_nn_forward.1} parent=67 // pred_check
          %p679 = pneg %p162
        $region86: #{drsc_nn_forward.1} parent=67 // pred_check_branch
          %681 = sbr.rel (%p679) target = $region88
        $region87: #{drsc_nn_forward.1} parent=67 // pred_region
          %682 = dma.done [#allocation10], 2048
        $region88: #{drsc_nn_forward.1} parent=67 // pred_fallthru
          _
        // Predicated region
        $region89: #{drsc_nn_forward.1} parent=67 // pred_check
          %p683 = pneg %p183
        $region90: #{drsc_nn_forward.1} parent=67 // pred_check_branch
          %685 = sbr.rel (%p683) target = $region92
        $region91: #{drsc_nn_forward.1} parent=67 // pred_region
          %686 = dma.done [#allocation13], 32
        $region92: #{drsc_nn_forward.1} parent=67 // pred_fallthru
          _
        // Predicated region
        $region93: #{drsc_nn_forward.1} parent=67 // pred_check
          %p687 = pneg %p204
        $region94: #{drsc_nn_forward.1} parent=67 // pred_check_branch
          %689 = sbr.rel (%p687) target = $region96
        $region95: #{drsc_nn_forward.1} parent=67 // pred_region
          %690 = dma.done [#allocation13], 2048
        $region96: #{drsc_nn_forward.1} parent=67 // pred_fallthru
          _
        // Predicated region
        $region97: #{drsc_nn_forward.1} parent=67 // pred_check
          %p691 = pneg %p225
        $region98: #{drsc_nn_forward.1} parent=67 // pred_check_branch
          %693 = sbr.rel (%p691) target = $region100
        $region99: #{drsc_nn_forward.1} parent=67 // pred_region
          %694 = dma.done [#allocation16], 16
        $region100: #{drsc_nn_forward.1} parent=67 // pred_fallthru
          _
        // Predicated region
        $region101: #{drsc_nn_forward.1} parent=67 // pred_check
          %p695 = pneg %p246
        $region102: #{drsc_nn_forward.1} parent=67 // pred_check_branch
          %697 = sbr.rel (%p695) target = $region104
        $region103: #{drsc_nn_forward.1} parent=67 // pred_region
          %698 = dma.done [#allocation16], 1024
        $region104: #{drsc_nn_forward.1} parent=67 // pred_fallthru
          _
        // Predicated region
        $region105: #{drsc_nn_forward.1} parent=67 // pred_check
          %p699 = pneg %p267
        $region106: #{drsc_nn_forward.1} parent=67 // pred_check_branch
          %701 = sbr.rel (%p699) target = $region108
        $region107: #{drsc_nn_forward.1} parent=67 // pred_region
          %702 = dma.done [#allocation19], 16
        $region108: #{drsc_nn_forward.1} parent=67 // pred_fallthru
          _
        // Predicated region
        $region109: #{drsc_nn_forward.1} parent=67 // pred_check
          %p703 = pneg %p288
        $region110: #{drsc_nn_forward.1} parent=67 // pred_check_branch
          %705 = sbr.rel (%p703) target = $region112
        $region111: #{drsc_nn_forward.1} parent=67 // pred_region
          %706 = dma.done [#allocation19], 1024
        $region112: #{drsc_nn_forward.1} parent=67 // pred_fallthru
          _
        // Predicated region
        $region113: #{drsc_nn_forward.1} parent=67 // pred_check
          %p707 = pneg %p309
        $region114: #{drsc_nn_forward.1} parent=67 // pred_check_branch
          %709 = sbr.rel (%p707) target = $region116
        $region115: #{drsc_nn_forward.1} parent=67 // pred_region
          %710 = dma.done [#allocation22], 16
        $region116: #{drsc_nn_forward.1} parent=67 // pred_fallthru
          _
        %s711 = sand.u32 %s60, 1
        %s712 = scalar_lea.sflag [#allocation4], %s711
        %s713 = sand.u32 %s60, 1
        %s714 = smul.addr %s713, 28
        %s715 = scalar_lea.vmem [#allocation3], %s714
        %p716 = pneg %p73
        %p717 = pneg %p70
        %s718 = sand.u32 %s52, 1
        %s719 = scalar_lea.sflag [#allocation7], %s718
        %s720 = sand.u32 %s86, 1
        %s721 = smul.addr %s720, 28
        %s722 = scalar_lea.vmem [#allocation6], %s721
        %p723 = pneg %p99
        %p724 = pneg %p96
        %p725 = pneg %p120
        %p726 = pneg %p117
        %p727 = pneg %p141
        %p728 = pneg %p138
        %p729 = pneg %p162
        %p730 = pneg %p159
        %p731 = pneg %p183
        %p732 = pneg %p180
        %p733 = pneg %p204
        %p734 = pneg %p201
        %p735 = pneg %p225
        %p736 = pneg %p222
        %p737 = pneg %p246
        %p738 = pneg %p243
        %p739 = pneg %p267
        %p740 = pneg %p264
        %p741 = pneg %p288
        %p742 = pneg %p285
        %p743 = pneg %p309
        %p744 = pneg %p306
        %p745 = pneg %p335
        %p746 = pneg %p332
        %s747 = sand.u32 %s322, 1
        %s748 = scalar_lea.sflag [#allocation5], %s747
        %s749 = sand.u32 %s322, 1
        %s750 = smul.addr %s749, 56
        %s751 = scalar_lea.vmem [#allocation23], %s750
        %p752 = pneg %p361
        %p753 = pneg %p358
        %s754 = sand.u32 %s52, 1
        %s755 = scalar_lea.sflag [#allocation25], %s754
        %s756 = sand.u32 %s348, 1
        %s757 = smul.addr %s756, 56
        %s758 = scalar_lea.vmem [#allocation24], %s757
        %p759 = pneg %p387
        %p760 = pneg %p384
        %s761 = sand.u32 %s52, 1
        %s762 = scalar_lea.sflag [#allocation25], %s761
        %s763 = sand.u32 %s374, 1
        %s764 = smul.addr %s763, 56
        %s765 = scalar_lea.vmem [#allocation26], %s764
        %p766 = pneg %p413
        %p767 = pneg %p410
        %s768 = sand.u32 %s52, 1
        %s769 = scalar_lea.sflag [#allocation28], %s768
        %s770 = sand.u32 %s400, 1
        %s771 = smul.addr %s770, 56
        %s772 = scalar_lea.vmem [#allocation27], %s771
        %p773 = pneg %p439
        %p774 = pneg %p436
        %s775 = sand.u32 %s52, 1
        %s776 = scalar_lea.sflag [#allocation28], %s775
        %s777 = sand.u32 %s426, 1
        %s778 = smul.addr %s777, 56
        %s779 = scalar_lea.vmem [#allocation29], %s778
        %p780 = pneg %p465
        %p781 = pneg %p462
        %s782 = sand.u32 %s452, 1
        %s783 = scalar_lea.sflag [#allocation31], %s782
        %s784 = sand.u32 %s452, 1
        %s785 = smul.addr %s784, 56
        %s786 = scalar_lea.vmem [#allocation30], %s785
        %s787 = smul.u32 7, %s52
        %s788 = smul.u32 7, %s52
        %s789 = smul.u32 7, %s52
        %s790 = smul.u32 7, %s52
        %s791 = smul.u32 7, %s52
        %s792 = smul.u32 7, %s52
        %s793 = smul.u32 7, %s52
        %s794 = smul.u32 7, %s52
        %v796 = vld [vmem:[%s657] sm:$0xf]
        %v797 = vld [vmem:[%s657 + $0x4] sm:$0xf]
        %v798 = vld [vmem:[%s657 + $0x8] sm:$0xf]
        %v799 = vld [vmem:[%s657 + $0xc] sm:$0xf]
        %v800 = vld [vmem:[%s657 + $0x10] sm:$0xf]
        %v801 = vld [vmem:[%s657 + $0x14] sm:$0xf]
        %v802 = vld [vmem:[%s657 + $0x18] sm:$0xf]
        %v803 = vld [vmem:[#allocation8] sm:$0xff]
        %v804 = vld [vmem:[#allocation8 + $0x8] sm:$0xff]
        %v805 = vld [vmem:[#allocation8 + $0x10] sm:$0xff]
        %v806 = vld [vmem:[#allocation8 + $0x18] sm:$0xff]
        %v807 = vld [vmem:[#allocation8 + $0x20] sm:$0xff]
        %v808 = vld [vmem:[#allocation8 + $0x28] sm:$0xff]
        %v809 = vld [vmem:[#allocation8 + $0x30] sm:$0xff]
        %v810 = vld [vmem:[#allocation8 + $0x38] sm:$0xff]
        %v811 = vld [vmem:[#allocation8 + $0x40] sm:$0xff]
        %v812 = vld [vmem:[#allocation8 + $0x48] sm:$0xff]
        %v813 = vld [vmem:[#allocation8 + $0x50] sm:$0xff]
        %v814 = vld [vmem:[#allocation8 + $0x58] sm:$0xff]
        %v815 = vld [vmem:[#allocation8 + $0x60] sm:$0xff]
        %v816 = vld [vmem:[#allocation8 + $0x68] sm:$0xff]
        %v817 = vld [vmem:[#allocation8 + $0x70] sm:$0xff]
        %v818 = vld [vmem:[#allocation8 + $0x78] sm:$0xff]
        %v819 = vld [vmem:[#allocation9] sm:$0x3]
        %v821 = vlaneseq
        %v822 = vshrl.u32 %v821, 7
        %v823 = vsub.s32 0, %v822
        %v824 = vrot.slane %v819, %v823
        %v825 = vlaneseq
        %v826 = vshrl.u32 %v825, 7
        %v827 = vsub.s32 1, %v826
        %v828 = vrot.slane %v819, %v827
        %v838 = vunpack.c.l.b16 %v796
        %v839 = vunpack.c.l.b16 %v797
        %v840 = vunpack.c.l.b16 %v798
        %v841 = vunpack.c.l.b16 %v799
        %v842 = vunpack.c.l.b16 %v800
        %v843 = vunpack.c.l.b16 %v801
        %v844 = vunpack.c.l.b16 %v802
        %v845 = vpack.c.b16 %v839, %v838
        %v846 = vpack.c.b16 %v841, %v840
        %v847 = vpack.c.b16 %v843, %v842
        %v848 = vpack.c.b16 %v844, %v844
        %v869 = vunpack.c.l.b16 %v803
        %v870 = vunpack.c.h.b16 %v803
        %v871 = vunpack.c.l.b16 %v804
        %v872 = vunpack.c.h.b16 %v804
        %v873 = vunpack.c.l.b16 %v805
        %v874 = vunpack.c.h.b16 %v805
        %v875 = vunpack.c.l.b16 %v806
        %v876 = vunpack.c.h.b16 %v806
        %v877 = vunpack.c.l.b16 %v807
        %v878 = vunpack.c.h.b16 %v807
        %v879 = vunpack.c.l.b16 %v808
        %v880 = vunpack.c.h.b16 %v808
        %v881 = vunpack.c.l.b16 %v809
        %v882 = vunpack.c.h.b16 %v809
        %v883 = vunpack.c.l.b16 %v810
        %v884 = vunpack.c.h.b16 %v810
        %v885 = vunpack.c.l.b16 %v811
        %v886 = vunpack.c.h.b16 %v811
        %v887 = vunpack.c.l.b16 %v812
        %v888 = vunpack.c.h.b16 %v812
        %v889 = vunpack.c.l.b16 %v813
        %v890 = vunpack.c.h.b16 %v813
        %v891 = vunpack.c.l.b16 %v814
        %v892 = vunpack.c.h.b16 %v814
        %v893 = vunpack.c.l.b16 %v815
        %v894 = vunpack.c.h.b16 %v815
        %v895 = vunpack.c.l.b16 %v816
        %v896 = vunpack.c.h.b16 %v816
        %v897 = vunpack.c.l.b16 %v817
        %v898 = vunpack.c.h.b16 %v817
        %v899 = vunpack.c.l.b16 %v818
        %v900 = vunpack.c.h.b16 %v818
        %v901 = vpack.c.b16 %v871, %v869
        %v902 = vpack.c.b16 %v872, %v870
        %v903 = vpack.c.b16 %v875, %v873
        %v904 = vpack.c.b16 %v876, %v874
        %v905 = vpack.c.b16 %v879, %v877
        %v906 = vpack.c.b16 %v880, %v878
        %v907 = vpack.c.b16 %v883, %v881
        %v908 = vpack.c.b16 %v884, %v882
        %v909 = vpack.c.b16 %v887, %v885
        %v910 = vpack.c.b16 %v888, %v886
        %v911 = vpack.c.b16 %v891, %v889
        %v912 = vpack.c.b16 %v892, %v890
        %v913 = vpack.c.b16 %v895, %v893
        %v914 = vpack.c.b16 %v896, %v894
        %v915 = vpack.c.b16 %v899, %v897
        %v916 = vpack.c.b16 %v900, %v898
        %933 = vmatprep.subr.bf16.mxu0 %v902
        %934 = vmatpush1.bf16.msra.mxu0 %v901
        %935 = vmatprep.subr.bf16.mxu0 %v904
        %936 = vmatpush1.bf16.msra.mxu0 %v903
        %937 = vmatprep.subr.bf16.mxu0 %v906
        %938 = vmatpush1.bf16.msra.mxu0 %v905
        %939 = vmatprep.subr.bf16.mxu0 %v908
        %940 = vmatpush1.bf16.msra.mxu0 %v907
        %941 = vmatprep.subr.bf16.mxu0 %v910
        %942 = vmatpush1.bf16.msra.mxu0 %v909
        %943 = vmatprep.subr.bf16.mxu0 %v912
        %944 = vmatpush1.bf16.msra.mxu0 %v911
        %945 = vmatprep.subr.bf16.mxu0 %v914
        %946 = vmatpush1.bf16.msra.mxu0 %v913
        %947 = vmatprep.subr.bf16.mxu0 %v916
        %948 = vmatpush1.bf16.msra.mxu0 %v915
        %949 = vmatprep.subr.bf16.mxu0 0
        %950 = vmatpush1.bf16.msra.mxu0 0
        %951 = vmatprep.subr.bf16.mxu0 0
        %952 = vmatpush1.bf16.msra.mxu0 0
        %953 = vmatprep.subr.bf16.mxu0 0
        %954 = vmatpush1.bf16.msra.mxu0 0
        %955 = vmatprep.subr.bf16.mxu0 0
        %956 = vmatpush1.bf16.msra.mxu0 0
        %957 = vmatprep.subr.bf16.mxu0 0
        %958 = vmatpush1.bf16.msra.mxu0 0
        %959 = vmatprep.subr.bf16.mxu0 0
        %960 = vmatpush1.bf16.msra.mxu0 0
        %961 = vmatprep.subr.bf16.mxu0 0
        %962 = vmatpush1.bf16.msra.mxu0 0
        %963 = vmatprep.subr.bf16.mxu0 0
        %964 = vmatpush1.bf16.msra.mxu0 0
        %965 = vmatprep.mubr.bf16.mxu0 0
        %966 = vmatmul.mubr.bf16.gmra.mrb[0].mxu0 %v845
        %v967 = vpop.f32.mrb[0].mxu0
        %v968 = vadd.f32 %v824, %v967
        %v969 = vpop.f32.mrb[0].mxu0
        %v970 = vadd.f32 %v828, %v969
        %v971 = vpop.f32.mrb[0].mxu0
        %v972 = vadd.f32 %v824, %v971
        %v973 = vpop.f32.mrb[0].mxu0
        %v974 = vadd.f32 %v828, %v973
        %975 = vmatprep.mubr.bf16.mxu0 0
        %976 = vmatmul.mubr.bf16.gmra.mrb[0].mxu0 %v846
        %v977 = vpop.f32.mrb[0].mxu0
        %v978 = vadd.f32 %v824, %v977
        %v979 = vpop.f32.mrb[0].mxu0
        %v980 = vadd.f32 %v828, %v979
        %v981 = vpop.f32.mrb[0].mxu0
        %v982 = vadd.f32 %v824, %v981
        %v983 = vpop.f32.mrb[0].mxu0
        %v984 = vadd.f32 %v828, %v983
        %985 = vmatprep.mubr.bf16.mxu0 0
        %986 = vmatmul.mubr.bf16.gmra.mrb[0].mxu0 %v847
        %v987 = vpop.f32.mrb[0].mxu0
        %v988 = vadd.f32 %v824, %v987
        %v989 = vpop.f32.mrb[0].mxu0
        %v990 = vadd.f32 %v828, %v989
        %v991 = vpop.f32.mrb[0].mxu0
        %v992 = vadd.f32 %v824, %v991
        %v993 = vpop.f32.mrb[0].mxu0
        %v994 = vadd.f32 %v828, %v993
        %995 = vmatprep.mubr.bf16.mxu0 0
        %996 = vmatmul.mubr.bf16.gmra.mrb[0].mxu0 %v848
        %v997 = vpop.f32.mrb[0].mxu0
        %v998 = vadd.f32 %v824, %v997
        %v999 = vpop.f32.mrb[0].mxu0
        %v1000 = vadd.f32 %v828, %v999
        %v1001 = vpop.f32.mrb[0].mxu0
        %v1002 = vpop.f32.mrb[0].mxu0
        %1003 = vdwg.mxu0
        %v1004 = vmax.f32 %v968, 0.0
        %v1005 = vmax.f32 %v970, 0.0
        %v1006 = vmax.f32 %v972, 0.0
        %v1007 = vmax.f32 %v974, 0.0
        %v1008 = vmax.f32 %v978, 0.0
        %v1009 = vmax.f32 %v980, 0.0
        %v1010 = vmax.f32 %v982, 0.0
        %v1011 = vmax.f32 %v984, 0.0
        %v1012 = vmax.f32 %v988, 0.0
        %v1013 = vmax.f32 %v990, 0.0
        %v1014 = vmax.f32 %v992, 0.0
        %v1015 = vmax.f32 %v994, 0.0
        %v1016 = vmax.f32 %v998, 0.0
        %v1017 = vmax.f32 %v1000, 0.0
        %v1018 = vpack.c.bf16 %v1006, %v1004
        %v1019 = vpack.c.bf16 %v1007, %v1005
        %v1020 = vpack.c.bf16 %v1010, %v1008
        %v1021 = vpack.c.bf16 %v1011, %v1009
        %v1022 = vpack.c.bf16 %v1014, %v1012
        %v1023 = vpack.c.bf16 %v1015, %v1013
        %v1024 = vpack.c.bf16 %v1016, %v1016
        %v1025 = vpack.c.bf16 %v1017, %v1017
        %1026 = vst [vmem:[#allocation2] sm:$0xff] %v1018
        %1027 = vst [vmem:[#allocation2 + $0x8] sm:$0xff] %v1019
        %1028 = vst [vmem:[#allocation2 + $0x10] sm:$0xff] %v1020
        %1029 = vst [vmem:[#allocation2 + $0x18] sm:$0xff] %v1021
        %1030 = vst [vmem:[#allocation2 + $0x20] sm:$0xff] %v1022
        %1031 = vst [vmem:[#allocation2 + $0x28] sm:$0xff] %v1023
        %1032 = vst [vmem:[#allocation2 + $0x30] sm:$0xf] %v1024
        %1033 = vst [vmem:[#allocation2 + $0x38] sm:$0xf] %v1025
        %v1034 = vld [vmem:[%s666] sm:$0xf]
        %v1035 = vld [vmem:[%s666 + $0x4] sm:$0xf]
        %v1036 = vld [vmem:[%s666 + $0x8] sm:$0xf]
        %v1037 = vld [vmem:[%s666 + $0xc] sm:$0xf]
        %v1038 = vld [vmem:[%s666 + $0x10] sm:$0xf]
        %v1039 = vld [vmem:[%s666 + $0x14] sm:$0xf]
        %v1040 = vld [vmem:[%s666 + $0x18] sm:$0xf]
        %v1041 = vld [vmem:[#allocation11] sm:$0xff]
        %v1042 = vld [vmem:[#allocation11 + $0x8] sm:$0xff]
        %v1043 = vld [vmem:[#allocation11 + $0x10] sm:$0xff]
        %v1044 = vld [vmem:[#allocation11 + $0x18] sm:$0xff]
        %v1045 = vld [vmem:[#allocation11 + $0x20] sm:$0xff]
        %v1046 = vld [vmem:[#allocation11 + $0x28] sm:$0xff]
        %v1047 = vld [vmem:[#allocation11 + $0x30] sm:$0xff]
        %v1048 = vld [vmem:[#allocation11 + $0x38] sm:$0xff]
        %v1049 = vld [vmem:[#allocation11 + $0x40] sm:$0xff]
        %v1050 = vld [vmem:[#allocation11 + $0x48] sm:$0xff]
        %v1051 = vld [vmem:[#allocation11 + $0x50] sm:$0xff]
        %v1052 = vld [vmem:[#allocation11 + $0x58] sm:$0xff]
        %v1053 = vld [vmem:[#allocation11 + $0x60] sm:$0xff]
        %v1054 = vld [vmem:[#allocation11 + $0x68] sm:$0xff]
        %v1055 = vld [vmem:[#allocation11 + $0x70] sm:$0xff]
        %v1056 = vld [vmem:[#allocation11 + $0x78] sm:$0xff]
        %v1057 = vld [vmem:[#allocation12] sm:$0x3]
        %v1059 = vlaneseq
        %v1060 = vshrl.u32 %v1059, 7
        %v1061 = vsub.s32 0, %v1060
        %v1062 = vrot.slane %v1057, %v1061
        %v1063 = vlaneseq
        %v1064 = vshrl.u32 %v1063, 7
        %v1065 = vsub.s32 1, %v1064
        %v1066 = vrot.slane %v1057, %v1065
        %v1076 = vunpack.c.l.b16 %v1034
        %v1077 = vunpack.c.l.b16 %v1035
        %v1078 = vunpack.c.l.b16 %v1036
        %v1079 = vunpack.c.l.b16 %v1037
        %v1080 = vunpack.c.l.b16 %v1038
        %v1081 = vunpack.c.l.b16 %v1039
        %v1082 = vunpack.c.l.b16 %v1040
        %v1083 = vpack.c.b16 %v1077, %v1076
        %v1084 = vpack.c.b16 %v1079, %v1078
        %v1085 = vpack.c.b16 %v1081, %v1080
        %v1086 = vpack.c.b16 %v1082, %v1082
        %v1107 = vunpack.c.l.b16 %v1041
        %v1108 = vunpack.c.h.b16 %v1041
        %v1109 = vunpack.c.l.b16 %v1042
        %v1110 = vunpack.c.h.b16 %v1042
        %v1111 = vunpack.c.l.b16 %v1043
        %v1112 = vunpack.c.h.b16 %v1043
        %v1113 = vunpack.c.l.b16 %v1044
        %v1114 = vunpack.c.h.b16 %v1044
        %v1115 = vunpack.c.l.b16 %v1045
        %v1116 = vunpack.c.h.b16 %v1045
        %v1117 = vunpack.c.l.b16 %v1046
        %v1118 = vunpack.c.h.b16 %v1046
        %v1119 = vunpack.c.l.b16 %v1047
        %v1120 = vunpack.c.h.b16 %v1047
        %v1121 = vunpack.c.l.b16 %v1048
        %v1122 = vunpack.c.h.b16 %v1048
        %v1123 = vunpack.c.l.b16 %v1049
        %v1124 = vunpack.c.h.b16 %v1049
        %v1125 = vunpack.c.l.b16 %v1050
        %v1126 = vunpack.c.h.b16 %v1050
        %v1127 = vunpack.c.l.b16 %v1051
        %v1128 = vunpack.c.h.b16 %v1051
        %v1129 = vunpack.c.l.b16 %v1052
        %v1130 = vunpack.c.h.b16 %v1052
        %v1131 = vunpack.c.l.b16 %v1053
        %v1132 = vunpack.c.h.b16 %v1053
        %v1133 = vunpack.c.l.b16 %v1054
        %v1134 = vunpack.c.h.b16 %v1054
        %v1135 = vunpack.c.l.b16 %v1055
        %v1136 = vunpack.c.h.b16 %v1055
        %v1137 = vunpack.c.l.b16 %v1056
        %v1138 = vunpack.c.h.b16 %v1056
        %v1139 = vpack.c.b16 %v1109, %v1107
        %v1140 = vpack.c.b16 %v1110, %v1108
        %v1141 = vpack.c.b16 %v1113, %v1111
        %v1142 = vpack.c.b16 %v1114, %v1112
        %v1143 = vpack.c.b16 %v1117, %v1115
        %v1144 = vpack.c.b16 %v1118, %v1116
        %v1145 = vpack.c.b16 %v1121, %v1119
        %v1146 = vpack.c.b16 %v1122, %v1120
        %v1147 = vpack.c.b16 %v1125, %v1123
        %v1148 = vpack.c.b16 %v1126, %v1124
        %v1149 = vpack.c.b16 %v1129, %v1127
        %v1150 = vpack.c.b16 %v1130, %v1128
        %v1151 = vpack.c.b16 %v1133, %v1131
        %v1152 = vpack.c.b16 %v1134, %v1132
        %v1153 = vpack.c.b16 %v1137, %v1135
        %v1154 = vpack.c.b16 %v1138, %v1136
        %1171 = vmatprep.subr.bf16.mxu0 %v1140
        %1172 = vmatpush1.bf16.msra.mxu0 %v1139
        %1173 = vmatprep.subr.bf16.mxu0 %v1142
        %1174 = vmatpush1.bf16.msra.mxu0 %v1141
        %1175 = vmatprep.subr.bf16.mxu0 %v1144
        %1176 = vmatpush1.bf16.msra.mxu0 %v1143
        %1177 = vmatprep.subr.bf16.mxu0 %v1146
        %1178 = vmatpush1.bf16.msra.mxu0 %v1145
        %1179 = vmatprep.subr.bf16.mxu0 %v1148
        %1180 = vmatpush1.bf16.msra.mxu0 %v1147
        %1181 = vmatprep.subr.bf16.mxu0 %v1150
        %1182 = vmatpush1.bf16.msra.mxu0 %v1149
        %1183 = vmatprep.subr.bf16.mxu0 %v1152
        %1184 = vmatpush1.bf16.msra.mxu0 %v1151
        %1185 = vmatprep.subr.bf16.mxu0 %v1154
        %1186 = vmatpush1.bf16.msra.mxu0 %v1153
        %1187 = vmatprep.subr.bf16.mxu0 0
        %1188 = vmatpush1.bf16.msra.mxu0 0
        %1189 = vmatprep.subr.bf16.mxu0 0
        %1190 = vmatpush1.bf16.msra.mxu0 0
        %1191 = vmatprep.subr.bf16.mxu0 0
        %1192 = vmatpush1.bf16.msra.mxu0 0
        %1193 = vmatprep.subr.bf16.mxu0 0
        %1194 = vmatpush1.bf16.msra.mxu0 0
        %1195 = vmatprep.subr.bf16.mxu0 0
        %1196 = vmatpush1.bf16.msra.mxu0 0
        %1197 = vmatprep.subr.bf16.mxu0 0
        %1198 = vmatpush1.bf16.msra.mxu0 0
        %1199 = vmatprep.subr.bf16.mxu0 0
        %1200 = vmatpush1.bf16.msra.mxu0 0
        %1201 = vmatprep.subr.bf16.mxu0 0
        %1202 = vmatpush1.bf16.msra.mxu0 0
        %1203 = vmatprep.mubr.bf16.mxu0 0
        %1204 = vmatmul.mubr.bf16.gmra.mrb[0].mxu0 %v1083
        %v1205 = vpop.f32.mrb[0].mxu0
        %v1206 = vadd.f32 %v1062, %v1205
        %v1207 = vpop.f32.mrb[0].mxu0
        %v1208 = vadd.f32 %v1066, %v1207
        %v1209 = vpop.f32.mrb[0].mxu0
        %v1210 = vadd.f32 %v1062, %v1209
        %v1211 = vpop.f32.mrb[0].mxu0
        %v1212 = vadd.f32 %v1066, %v1211
        %1213 = vmatprep.mubr.bf16.mxu0 0
        %1214 = vmatmul.mubr.bf16.gmra.mrb[0].mxu0 %v1084
        %v1215 = vpop.f32.mrb[0].mxu0
        %v1216 = vadd.f32 %v1062, %v1215
        %v1217 = vpop.f32.mrb[0].mxu0
        %v1218 = vadd.f32 %v1066, %v1217
        %v1219 = vpop.f32.mrb[0].mxu0
        %v1220 = vadd.f32 %v1062, %v1219
        %v1221 = vpop.f32.mrb[0].mxu0
        %v1222 = vadd.f32 %v1066, %v1221
        %1223 = vmatprep.mubr.bf16.mxu0 0
        %1224 = vmatmul.mubr.bf16.gmra.mrb[0].mxu0 %v1085
        %v1225 = vpop.f32.mrb[0].mxu0
        %v1226 = vadd.f32 %v1062, %v1225
        %v1227 = vpop.f32.mrb[0].mxu0
        %v1228 = vadd.f32 %v1066, %v1227
        %v1229 = vpop.f32.mrb[0].mxu0
        %v1230 = vadd.f32 %v1062, %v1229
        %v1231 = vpop.f32.mrb[0].mxu0
        %v1232 = vadd.f32 %v1066, %v1231
        %1233 = vmatprep.mubr.bf16.mxu0 0
        %1234 = vmatmul.mubr.bf16.gmra.mrb[0].mxu0 %v1086
        %v1235 = vpop.f32.mrb[0].mxu0
        %v1236 = vadd.f32 %v1062, %v1235
        %v1237 = vpop.f32.mrb[0].mxu0
        %v1238 = vadd.f32 %v1066, %v1237
        %v1239 = vpop.f32.mrb[0].mxu0
        %v1240 = vpop.f32.mrb[0].mxu0
        %1241 = vdwg.mxu0
        %v1242 = vmax.f32 %v1206, 0.0
        %v1243 = vmax.f32 %v1208, 0.0
        %v1244 = vmax.f32 %v1210, 0.0
        %v1245 = vmax.f32 %v1212, 0.0
        %v1246 = vmax.f32 %v1216, 0.0
        %v1247 = vmax.f32 %v1218, 0.0
        %v1248 = vmax.f32 %v1220, 0.0
        %v1249 = vmax.f32 %v1222, 0.0
        %v1250 = vmax.f32 %v1226, 0.0
        %v1251 = vmax.f32 %v1228, 0.0
        %v1252 = vmax.f32 %v1230, 0.0
        %v1253 = vmax.f32 %v1232, 0.0
        %v1254 = vmax.f32 %v1236, 0.0
        %v1255 = vmax.f32 %v1238, 0.0
        %v1256 = vpack.c.bf16 %v1244, %v1242
        %v1257 = vpack.c.bf16 %v1245, %v1243
        %v1258 = vpack.c.bf16 %v1248, %v1246
        %v1259 = vpack.c.bf16 %v1249, %v1247
        %v1260 = vpack.c.bf16 %v1252, %v1250
        %v1261 = vpack.c.bf16 %v1253, %v1251
        %v1262 = vpack.c.bf16 %v1254, %v1254
        %v1263 = vpack.c.bf16 %v1255, %v1255
        %vm1272 = vcmask 1043456
        %v1273 = vrot.slane %v1256, 4
        %v1274 = vrot.slane %v1257, 4
        %v1275 = vrot.slane %v1258, 4
        %v1276 = vsel %vm1272, %v1273, %v1275
        %v1277 = vrot.slane %v1259, 4
        %v1278 = vsel %vm1272, %v1274, %v1277
        %v1279 = vrot.slane %v1260, 4
        %v1280 = vsel %vm1272, %v1275, %v1279
        %v1281 = vrot.slane %v1261, 4
        %v1282 = vsel %vm1272, %v1277, %v1281
        %v1283 = vrot.slane %v1262, 4
        %v1284 = vsel %vm1272, %v1279, %v1283
        %v1285 = vrot.slane %v1263, 4
        %v1286 = vsel %vm1272, %v1281, %v1285
        %1295 = vst [vmem:[#allocation2 + $0x30] sm:$0xf0] %v1273
        %1296 = vst [vmem:[#allocation2 + $0x38] sm:$0xf0] %v1274
        %1297 = vst [vmem:[#allocation2 + $0x40] sm:$0xff] %v1276
        %1298 = vst [vmem:[#allocation2 + $0x48] sm:$0xff] %v1278
        %1299 = vst [vmem:[#allocation2 + $0x50] sm:$0xff] %v1280
        %1300 = vst [vmem:[#allocation2 + $0x58] sm:$0xff] %v1282
        %1301 = vst [vmem:[#allocation2 + $0x60] sm:$0xff] %v1284
        %1302 = vst [vmem:[#allocation2 + $0x68] sm:$0xff] %v1286
        %v1303 = vld [vmem:[#allocation2] sm:$0xff]
        %v1304 = vld [vmem:[#allocation2 + $0x8] sm:$0xff]
        %v1305 = vld [vmem:[#allocation2 + $0x10] sm:$0xff]
        %v1306 = vld [vmem:[#allocation2 + $0x18] sm:$0xff]
        %v1307 = vld [vmem:[#allocation2 + $0x20] sm:$0xff]
        %v1308 = vld [vmem:[#allocation2 + $0x28] sm:$0xff]
        %v1309 = vld [vmem:[#allocation2 + $0x30] sm:$0xff]
        %v1310 = vld [vmem:[#allocation2 + $0x38] sm:$0xff]
        %v1311 = vld [vmem:[#allocation2 + $0x40] sm:$0xff]
        %v1312 = vld [vmem:[#allocation2 + $0x48] sm:$0xff]
        %v1313 = vld [vmem:[#allocation2 + $0x50] sm:$0xff]
        %v1314 = vld [vmem:[#allocation2 + $0x58] sm:$0xff]
        %v1315 = vld [vmem:[#allocation2 + $0x60] sm:$0xff]
        %v1316 = vld [vmem:[#allocation2 + $0x68] sm:$0xff]
        %v1317 = vld [vmem:[#allocation14] sm:$0xf]
        %v1318 = vld [vmem:[#allocation14 + $0x4] sm:$0xf]
        %v1319 = vld [vmem:[#allocation14 + $0x8] sm:$0xf]
        %v1320 = vld [vmem:[#allocation14 + $0xc] sm:$0xf]
        %v1321 = vld [vmem:[#allocation14 + $0x10] sm:$0xf]
        %v1322 = vld [vmem:[#allocation14 + $0x14] sm:$0xf]
        %v1323 = vld [vmem:[#allocation14 + $0x18] sm:$0xf]
        %v1324 = vld [vmem:[#allocation14 + $0x1c] sm:$0xf]
        %v1325 = vld [vmem:[#allocation14 + $0x20] sm:$0xf]
        %v1326 = vld [vmem:[#allocation14 + $0x24] sm:$0xf]
        %v1327 = vld [vmem:[#allocation14 + $0x28] sm:$0xf]
        %v1328 = vld [vmem:[#allocation14 + $0x2c] sm:$0xf]
        %v1329 = vld [vmem:[#allocation14 + $0x30] sm:$0xf]
        %v1330 = vld [vmem:[#allocation14 + $0x34] sm:$0xf]
        %v1331 = vld [vmem:[#allocation14 + $0x38] sm:$0xf]
        %v1332 = vld [vmem:[#allocation14 + $0x3c] sm:$0xf]
        %v1333 = vld [vmem:[#allocation14 + $0x40] sm:$0xf]
        %v1334 = vld [vmem:[#allocation14 + $0x44] sm:$0xf]
        %v1335 = vld [vmem:[#allocation14 + $0x48] sm:$0xf]
        %v1336 = vld [vmem:[#allocation14 + $0x4c] sm:$0xf]
        %v1337 = vld [vmem:[#allocation14 + $0x50] sm:$0xf]
        %v1338 = vld [vmem:[#allocation14 + $0x54] sm:$0xf]
        %v1339 = vld [vmem:[#allocation14 + $0x58] sm:$0xf]
        %v1340 = vld [vmem:[#allocation14 + $0x5c] sm:$0xf]
        %v1341 = vld [vmem:[#allocation14 + $0x60] sm:$0xf]
        %v1342 = vld [vmem:[#allocation14 + $0x64] sm:$0xf]
        %v1343 = vld [vmem:[#allocation14 + $0x68] sm:$0xf]
        %v1344 = vld [vmem:[#allocation14 + $0x6c] sm:$0xf]
        %v1345 = vld [vmem:[#allocation14 + $0x70] sm:$0xf]
        %v1346 = vld [vmem:[#allocation14 + $0x74] sm:$0xf]
        %v1347 = vld [vmem:[#allocation14 + $0x78] sm:$0xf]
        %v1348 = vld [vmem:[#allocation14 + $0x7c] sm:$0xf]
        %v1349 = vld [vmem:[#allocation15] sm:$0x1]
        %v1351 = vlaneseq
        %v1352 = vshrl.u32 %v1351, 7
        %v1353 = vsub.s32 0, %v1352
        %v1354 = vrot.slane %v1349, %v1353
        %v1388 = vunpack.c.l.b16 %v1317
        %v1389 = vunpack.c.l.b16 %v1318
        %v1390 = vunpack.c.l.b16 %v1319
        %v1391 = vunpack.c.l.b16 %v1320
        %v1392 = vunpack.c.l.b16 %v1321
        %v1393 = vunpack.c.l.b16 %v1322
        %v1394 = vunpack.c.l.b16 %v1323
        %v1395 = vunpack.c.l.b16 %v1324
        %v1396 = vunpack.c.l.b16 %v1325
        %v1397 = vunpack.c.l.b16 %v1326
        %v1398 = vunpack.c.l.b16 %v1327
        %v1399 = vunpack.c.l.b16 %v1328
        %v1400 = vunpack.c.l.b16 %v1329
        %v1401 = vunpack.c.l.b16 %v1330
        %v1402 = vunpack.c.l.b16 %v1331
        %v1403 = vunpack.c.l.b16 %v1332
        %v1404 = vunpack.c.l.b16 %v1333
        %v1405 = vunpack.c.l.b16 %v1334
        %v1406 = vunpack.c.l.b16 %v1335
        %v1407 = vunpack.c.l.b16 %v1336
        %v1408 = vunpack.c.l.b16 %v1337
        %v1409 = vunpack.c.l.b16 %v1338
        %v1410 = vunpack.c.l.b16 %v1339
        %v1411 = vunpack.c.l.b16 %v1340
        %v1412 = vunpack.c.l.b16 %v1341
        %v1413 = vunpack.c.l.b16 %v1342
        %v1414 = vunpack.c.l.b16 %v1343
        %v1415 = vunpack.c.l.b16 %v1344
        %v1416 = vunpack.c.l.b16 %v1345
        %v1417 = vunpack.c.l.b16 %v1346
        %v1418 = vunpack.c.l.b16 %v1347
        %v1419 = vunpack.c.l.b16 %v1348
        %v1420 = vpack.c.b16 %v1389, %v1388
        %v1421 = vpack.c.b16 %v1391, %v1390
        %v1422 = vpack.c.b16 %v1393, %v1392
        %v1423 = vpack.c.b16 %v1395, %v1394
        %v1424 = vpack.c.b16 %v1397, %v1396
        %v1425 = vpack.c.b16 %v1399, %v1398
        %v1426 = vpack.c.b16 %v1401, %v1400
        %v1427 = vpack.c.b16 %v1403, %v1402
        %v1428 = vpack.c.b16 %v1405, %v1404
        %v1429 = vpack.c.b16 %v1407, %v1406
        %v1430 = vpack.c.b16 %v1409, %v1408
        %v1431 = vpack.c.b16 %v1411, %v1410
        %v1432 = vpack.c.b16 %v1413, %v1412
        %v1433 = vpack.c.b16 %v1415, %v1414
        %v1434 = vpack.c.b16 %v1417, %v1416
        %v1435 = vpack.c.b16 %v1419, %v1418
        %1452 = vmatprep.subr.bf16.mxu0 0
        %1453 = vmatpush1.bf16.msra.mxu0 %v1420
        %1454 = vmatprep.subr.bf16.mxu0 0
        %1455 = vmatpush1.bf16.msra.mxu0 %v1421
        %1456 = vmatprep.subr.bf16.mxu0 0
        %1457 = vmatpush1.bf16.msra.mxu0 %v1422
        %1458 = vmatprep.subr.bf16.mxu0 0
        %1459 = vmatpush1.bf16.msra.mxu0 %v1423
        %1460 = vmatprep.subr.bf16.mxu0 0
        %1461 = vmatpush1.bf16.msra.mxu0 %v1424
        %1462 = vmatprep.subr.bf16.mxu0 0
        %1463 = vmatpush1.bf16.msra.mxu0 %v1425
        %1464 = vmatprep.subr.bf16.mxu0 0
        %1465 = vmatpush1.bf16.msra.mxu0 %v1426
        %1466 = vmatprep.subr.bf16.mxu0 0
        %1467 = vmatpush1.bf16.msra.mxu0 %v1427
        %1468 = vmatprep.subr.bf16.mxu0 0
        %1469 = vmatpush1.bf16.msra.mxu0 %v1428
        %1470 = vmatprep.subr.bf16.mxu0 0
        %1471 = vmatpush1.bf16.msra.mxu0 %v1429
        %1472 = vmatprep.subr.bf16.mxu0 0
        %1473 = vmatpush1.bf16.msra.mxu0 %v1430
        %1474 = vmatprep.subr.bf16.mxu0 0
        %1475 = vmatpush1.bf16.msra.mxu0 %v1431
        %1476 = vmatprep.subr.bf16.mxu0 0
        %1477 = vmatpush1.bf16.msra.mxu0 %v1432
        %1478 = vmatprep.subr.bf16.mxu0 0
        %1479 = vmatpush1.bf16.msra.mxu0 %v1433
        %1480 = vmatprep.subr.bf16.mxu0 0
        %1481 = vmatpush1.bf16.msra.mxu0 %v1434
        %1482 = vmatprep.subr.bf16.mxu0 0
        %1483 = vmatpush1.bf16.msra.mxu0 %v1435
        %1484 = vmatprep.mubr.bf16.mxu0 %v1304
        %1485 = vmatmul.mubr.bf16.gmra.mrb[0].mxu0 %v1303
        %v1486 = vpop.f32.mrb[0].mxu0
        %v1487 = vadd.f32 %v1354, %v1486
        %v1488 = vpop.f32.mrb[0].mxu0
        %v1489 = vpop.f32.mrb[0].mxu0
        %v1490 = vadd.f32 %v1354, %v1489
        %v1491 = vpop.f32.mrb[0].mxu0
        %1492 = vmatprep.mubr.bf16.mxu0 %v1306
        %1493 = vmatmul.mubr.bf16.gmra.mrb[0].mxu0 %v1305
        %v1494 = vpop.f32.mrb[0].mxu0
        %v1495 = vadd.f32 %v1354, %v1494
        %v1496 = vpop.f32.mrb[0].mxu0
        %v1497 = vpop.f32.mrb[0].mxu0
        %v1498 = vadd.f32 %v1354, %v1497
        %v1499 = vpop.f32.mrb[0].mxu0
        %1500 = vmatprep.mubr.bf16.mxu0 %v1308
        %1501 = vmatmul.mubr.bf16.gmra.mrb[0].mxu0 %v1307
        %v1502 = vpop.f32.mrb[0].mxu0
        %v1503 = vadd.f32 %v1354, %v1502
        %v1504 = vpop.f32.mrb[0].mxu0
        %v1505 = vpop.f32.mrb[0].mxu0
        %v1506 = vadd.f32 %v1354, %v1505
        %v1507 = vpop.f32.mrb[0].mxu0
        %1508 = vmatprep.mubr.bf16.mxu0 %v1310
        %1509 = vmatmul.mubr.bf16.gmra.mrb[0].mxu0 %v1309
        %v1510 = vpop.f32.mrb[0].mxu0
        %v1511 = vadd.f32 %v1354, %v1510
        %v1512 = vpop.f32.mrb[0].mxu0
        %v1513 = vpop.f32.mrb[0].mxu0
        %v1514 = vadd.f32 %v1354, %v1513
        %v1515 = vpop.f32.mrb[0].mxu0
        %1516 = vmatprep.mubr.bf16.mxu0 %v1312
        %1517 = vmatmul.mubr.bf16.gmra.mrb[0].mxu0 %v1311
        %v1518 = vpop.f32.mrb[0].mxu0
        %v1519 = vadd.f32 %v1354, %v1518
        %v1520 = vpop.f32.mrb[0].mxu0
        %v1521 = vpop.f32.mrb[0].mxu0
        %v1522 = vadd.f32 %v1354, %v1521
        %v1523 = vpop.f32.mrb[0].mxu0
        %1524 = vmatprep.mubr.bf16.mxu0 %v1314
        %1525 = vmatmul.mubr.bf16.gmra.mrb[0].mxu0 %v1313
        %v1526 = vpop.f32.mrb[0].mxu0
        %v1527 = vadd.f32 %v1354, %v1526
        %v1528 = vpop.f32.mrb[0].mxu0
        %v1529 = vpop.f32.mrb[0].mxu0
        %v1530 = vadd.f32 %v1354, %v1529
        %v1531 = vpop.f32.mrb[0].mxu0
        %1532 = vmatprep.mubr.bf16.mxu0 %v1316
        %1533 = vmatmul.mubr.bf16.gmra.mrb[0].mxu0 %v1315
        %v1534 = vpop.f32.mrb[0].mxu0
        %v1535 = vadd.f32 %v1354, %v1534
        %v1536 = vpop.f32.mrb[0].mxu0
        %v1537 = vpop.f32.mrb[0].mxu0
        %v1538 = vadd.f32 %v1354, %v1537
        %v1539 = vpop.f32.mrb[0].mxu0
        %1540 = vdwg.mxu0
        %v1541 = vpack.c.bf16 %v1490, %v1487
        %v1542 = vpack.c.bf16 %v1498, %v1495
        %v1543 = vpack.c.bf16 %v1506, %v1503
        %v1544 = vpack.c.bf16 %v1514, %v1511
        %v1545 = vpack.c.bf16 %v1522, %v1519
        %v1546 = vpack.c.bf16 %v1530, %v1527
        %v1547 = vpack.c.bf16 %v1538, %v1535
        %v1548 = vld [vmem:[#allocation17] sm:$0xf]
        %v1549 = vld [vmem:[#allocation17 + $0x4] sm:$0xf]
        %v1550 = vld [vmem:[#allocation17 + $0x8] sm:$0xf]
        %v1551 = vld [vmem:[#allocation17 + $0xc] sm:$0xf]
        %v1552 = vld [vmem:[#allocation17 + $0x10] sm:$0xf]
        %v1553 = vld [vmem:[#allocation17 + $0x14] sm:$0xf]
        %v1554 = vld [vmem:[#allocation17 + $0x18] sm:$0xf]
        %v1555 = vld [vmem:[#allocation17 + $0x1c] sm:$0xf]
        %v1556 = vld [vmem:[#allocation17 + $0x20] sm:$0xf]
        %v1557 = vld [vmem:[#allocation17 + $0x24] sm:$0xf]
        %v1558 = vld [vmem:[#allocation17 + $0x28] sm:$0xf]
        %v1559 = vld [vmem:[#allocation17 + $0x2c] sm:$0xf]
        %v1560 = vld [vmem:[#allocation17 + $0x30] sm:$0xf]
        %v1561 = vld [vmem:[#allocation17 + $0x34] sm:$0xf]
        %v1562 = vld [vmem:[#allocation17 + $0x38] sm:$0xf]
        %v1563 = vld [vmem:[#allocation17 + $0x3c] sm:$0xf]
        %v1564 = vld [vmem:[#allocation18] sm:$0x1]
        %v1566 = vlaneseq
        %v1567 = vshrl.u32 %v1566, 7
        %v1568 = vsub.s32 0, %v1567
        %v1569 = vrot.slane %v1564, %v1568
        %v1587 = vunpack.c.l.b16 %v1548
        %v1588 = vunpack.c.l.b16 %v1549
        %v1589 = vunpack.c.l.b16 %v1550
        %v1590 = vunpack.c.l.b16 %v1551
        %v1591 = vunpack.c.l.b16 %v1552
        %v1592 = vunpack.c.l.b16 %v1553
        %v1593 = vunpack.c.l.b16 %v1554
        %v1594 = vunpack.c.l.b16 %v1555
        %v1595 = vunpack.c.l.b16 %v1556
        %v1596 = vunpack.c.l.b16 %v1557
        %v1597 = vunpack.c.l.b16 %v1558
        %v1598 = vunpack.c.l.b16 %v1559
        %v1599 = vunpack.c.l.b16 %v1560
        %v1600 = vunpack.c.l.b16 %v1561
        %v1601 = vunpack.c.l.b16 %v1562
        %v1602 = vunpack.c.l.b16 %v1563
        %v1603 = vpack.c.b16 %v1588, %v1587
        %v1604 = vpack.c.b16 %v1590, %v1589
        %v1605 = vpack.c.b16 %v1592, %v1591
        %v1606 = vpack.c.b16 %v1594, %v1593
        %v1607 = vpack.c.b16 %v1596, %v1595
        %v1608 = vpack.c.b16 %v1598, %v1597
        %v1609 = vpack.c.b16 %v1600, %v1599
        %v1610 = vpack.c.b16 %v1602, %v1601
        %1619 = vmatprep.subr.bf16.mxu0 0
        %1620 = vmatpush1.bf16.msra.mxu0 %v1603
        %1621 = vmatprep.subr.bf16.mxu0 0
        %1622 = vmatpush1.bf16.msra.mxu0 %v1604
        %1623 = vmatprep.subr.bf16.mxu0 0
        %1624 = vmatpush1.bf16.msra.mxu0 %v1605
        %1625 = vmatprep.subr.bf16.mxu0 0
        %1626 = vmatpush1.bf16.msra.mxu0 %v1606
        %1627 = vmatprep.subr.bf16.mxu0 0
        %1628 = vmatpush1.bf16.msra.mxu0 %v1607
        %1629 = vmatprep.subr.bf16.mxu0 0
        %1630 = vmatpush1.bf16.msra.mxu0 %v1608
        %1631 = vmatprep.subr.bf16.mxu0 0
        %1632 = vmatpush1.bf16.msra.mxu0 %v1609
        %1633 = vmatprep.subr.bf16.mxu0 0
        %1634 = vmatpush1.bf16.msra.mxu0 %v1610
        %1635 = vmatprep.subr.bf16.mxu0 0
        %1636 = vmatpush1.bf16.msra.mxu0 0
        %1637 = vmatprep.subr.bf16.mxu0 0
        %1638 = vmatpush1.bf16.msra.mxu0 0
        %1639 = vmatprep.subr.bf16.mxu0 0
        %1640 = vmatpush1.bf16.msra.mxu0 0
        %1641 = vmatprep.subr.bf16.mxu0 0
        %1642 = vmatpush1.bf16.msra.mxu0 0
        %1643 = vmatprep.subr.bf16.mxu0 0
        %1644 = vmatpush1.bf16.msra.mxu0 0
        %1645 = vmatprep.subr.bf16.mxu0 0
        %1646 = vmatpush1.bf16.msra.mxu0 0
        %1647 = vmatprep.subr.bf16.mxu0 0
        %1648 = vmatpush1.bf16.msra.mxu0 0
        %1649 = vmatprep.subr.bf16.mxu0 0
        %1650 = vmatpush1.bf16.msra.mxu0 0
        %1651 = vmatprep.mubr.bf16.mxu0 0
        %1652 = vmatmul.mubr.bf16.gmra.mrb[0].mxu0 %v1541
        %v1653 = vpop.f32.mrb[0].mxu0
        %v1654 = vadd.f32 %v1569, %v1653
        %v1655 = vpop.f32.mrb[0].mxu0
        %v1656 = vpop.f32.mrb[0].mxu0
        %v1657 = vadd.f32 %v1569, %v1656
        %v1658 = vpop.f32.mrb[0].mxu0
        %1659 = vmatprep.mubr.bf16.mxu0 0
        %1660 = vmatmul.mubr.bf16.gmra.mrb[0].mxu0 %v1542
        %v1661 = vpop.f32.mrb[0].mxu0
        %v1662 = vadd.f32 %v1569, %v1661
        %v1663 = vpop.f32.mrb[0].mxu0
        %v1664 = vpop.f32.mrb[0].mxu0
        %v1665 = vadd.f32 %v1569, %v1664
        %v1666 = vpop.f32.mrb[0].mxu0
        %1667 = vmatprep.mubr.bf16.mxu0 0
        %1668 = vmatmul.mubr.bf16.gmra.mrb[0].mxu0 %v1543
        %v1669 = vpop.f32.mrb[0].mxu0
        %v1670 = vadd.f32 %v1569, %v1669
        %v1671 = vpop.f32.mrb[0].mxu0
        %v1672 = vpop.f32.mrb[0].mxu0
        %v1673 = vadd.f32 %v1569, %v1672
        %v1674 = vpop.f32.mrb[0].mxu0
        %1675 = vmatprep.mubr.bf16.mxu0 0
        %1676 = vmatmul.mubr.bf16.gmra.mrb[0].mxu0 %v1544
        %v1677 = vpop.f32.mrb[0].mxu0
        %v1678 = vadd.f32 %v1569, %v1677
        %v1679 = vpop.f32.mrb[0].mxu0
        %v1680 = vpop.f32.mrb[0].mxu0
        %v1681 = vadd.f32 %v1569, %v1680
        %v1682 = vpop.f32.mrb[0].mxu0
        %1683 = vmatprep.mubr.bf16.mxu0 0
        %1684 = vmatmul.mubr.bf16.gmra.mrb[0].mxu0 %v1545
        %v1685 = vpop.f32.mrb[0].mxu0
        %v1686 = vadd.f32 %v1569, %v1685
        %v1687 = vpop.f32.mrb[0].mxu0
        %v1688 = vpop.f32.mrb[0].mxu0
        %v1689 = vadd.f32 %v1569, %v1688
        %v1690 = vpop.f32.mrb[0].mxu0
        %1691 = vmatprep.mubr.bf16.mxu0 0
        %1692 = vmatmul.mubr.bf16.gmra.mrb[0].mxu0 %v1546
        %v1693 = vpop.f32.mrb[0].mxu0
        %v1694 = vadd.f32 %v1569, %v1693
        %v1695 = vpop.f32.mrb[0].mxu0
        %v1696 = vpop.f32.mrb[0].mxu0
        %v1697 = vadd.f32 %v1569, %v1696
        %v1698 = vpop.f32.mrb[0].mxu0
        %1699 = vmatprep.mubr.bf16.mxu0 0
        %1700 = vmatmul.mubr.bf16.gmra.mrb[0].mxu0 %v1547
        %v1701 = vpop.f32.mrb[0].mxu0
        %v1702 = vadd.f32 %v1569, %v1701
        %v1703 = vpop.f32.mrb[0].mxu0
        %v1704 = vpop.f32.mrb[0].mxu0
        %v1705 = vadd.f32 %v1569, %v1704
        %v1706 = vpop.f32.mrb[0].mxu0
        %1707 = vdwg.mxu0
        %v1708 = vpack.c.bf16 %v1657, %v1654
        %v1709 = vpack.c.bf16 %v1665, %v1662
        %v1710 = vpack.c.bf16 %v1673, %v1670
        %v1711 = vpack.c.bf16 %v1681, %v1678
        %v1712 = vpack.c.bf16 %v1689, %v1686
        %v1713 = vpack.c.bf16 %v1697, %v1694
        %v1714 = vpack.c.bf16 %v1705, %v1702
        %v1715 = vld [vmem:[#allocation20] sm:$0xf]
        %v1716 = vld [vmem:[#allocation20 + $0x4] sm:$0xf]
        %v1717 = vld [vmem:[#allocation20 + $0x8] sm:$0xf]
        %v1718 = vld [vmem:[#allocation20 + $0xc] sm:$0xf]
        %v1719 = vld [vmem:[#allocation20 + $0x10] sm:$0xf]
        %v1720 = vld [vmem:[#allocation20 + $0x14] sm:$0xf]
        %v1721 = vld [vmem:[#allocation20 + $0x18] sm:$0xf]
        %v1722 = vld [vmem:[#allocation20 + $0x1c] sm:$0xf]
        %v1723 = vld [vmem:[#allocation20 + $0x20] sm:$0xf]
        %v1724 = vld [vmem:[#allocation20 + $0x24] sm:$0xf]
        %v1725 = vld [vmem:[#allocation20 + $0x28] sm:$0xf]
        %v1726 = vld [vmem:[#allocation20 + $0x2c] sm:$0xf]
        %v1727 = vld [vmem:[#allocation20 + $0x30] sm:$0xf]
        %v1728 = vld [vmem:[#allocation20 + $0x34] sm:$0xf]
        %v1729 = vld [vmem:[#allocation20 + $0x38] sm:$0xf]
        %v1730 = vld [vmem:[#allocation20 + $0x3c] sm:$0xf]
        %v1731 = vld [vmem:[#allocation21] sm:$0x1]
        %v1733 = vlaneseq
        %v1734 = vshrl.u32 %v1733, 7
        %v1735 = vsub.s32 0, %v1734
        %v1736 = vrot.slane %v1731, %v1735
        %v1754 = vunpack.c.l.b16 %v1715
        %v1755 = vunpack.c.l.b16 %v1716
        %v1756 = vunpack.c.l.b16 %v1717
        %v1757 = vunpack.c.l.b16 %v1718
        %v1758 = vunpack.c.l.b16 %v1719
        %v1759 = vunpack.c.l.b16 %v1720
        %v1760 = vunpack.c.l.b16 %v1721
        %v1761 = vunpack.c.l.b16 %v1722
        %v1762 = vunpack.c.l.b16 %v1723
        %v1763 = vunpack.c.l.b16 %v1724
        %v1764 = vunpack.c.l.b16 %v1725
        %v1765 = vunpack.c.l.b16 %v1726
        %v1766 = vunpack.c.l.b16 %v1727
        %v1767 = vunpack.c.l.b16 %v1728
        %v1768 = vunpack.c.l.b16 %v1729
        %v1769 = vunpack.c.l.b16 %v1730
        %v1770 = vpack.c.b16 %v1755, %v1754
        %v1771 = vpack.c.b16 %v1757, %v1756
        %v1772 = vpack.c.b16 %v1759, %v1758
        %v1773 = vpack.c.b16 %v1761, %v1760
        %v1774 = vpack.c.b16 %v1763, %v1762
        %v1775 = vpack.c.b16 %v1765, %v1764
        %v1776 = vpack.c.b16 %v1767, %v1766
        %v1777 = vpack.c.b16 %v1769, %v1768
        %1786 = vmatprep.subr.bf16.mxu0 0
        %1787 = vmatpush1.bf16.msra.mxu0 %v1770
        %1788 = vmatprep.subr.bf16.mxu0 0
        %1789 = vmatpush1.bf16.msra.mxu0 %v1771
        %1790 = vmatprep.subr.bf16.mxu0 0
        %1791 = vmatpush1.bf16.msra.mxu0 %v1772
        %1792 = vmatprep.subr.bf16.mxu0 0
        %1793 = vmatpush1.bf16.msra.mxu0 %v1773
        %1794 = vmatprep.subr.bf16.mxu0 0
        %1795 = vmatpush1.bf16.msra.mxu0 %v1774
        %1796 = vmatprep.subr.bf16.mxu0 0
        %1797 = vmatpush1.bf16.msra.mxu0 %v1775
        %1798 = vmatprep.subr.bf16.mxu0 0
        %1799 = vmatpush1.bf16.msra.mxu0 %v1776
        %1800 = vmatprep.subr.bf16.mxu0 0
        %1801 = vmatpush1.bf16.msra.mxu0 %v1777
        %1802 = vmatprep.subr.bf16.mxu0 0
        %1803 = vmatpush1.bf16.msra.mxu0 0
        %1804 = vmatprep.subr.bf16.mxu0 0
        %1805 = vmatpush1.bf16.msra.mxu0 0
        %1806 = vmatprep.subr.bf16.mxu0 0
        %1807 = vmatpush1.bf16.msra.mxu0 0
        %1808 = vmatprep.subr.bf16.mxu0 0
        %1809 = vmatpush1.bf16.msra.mxu0 0
        %1810 = vmatprep.subr.bf16.mxu0 0
        %1811 = vmatpush1.bf16.msra.mxu0 0
        %1812 = vmatprep.subr.bf16.mxu0 0
        %1813 = vmatpush1.bf16.msra.mxu0 0
        %1814 = vmatprep.subr.bf16.mxu0 0
        %1815 = vmatpush1.bf16.msra.mxu0 0
        %1816 = vmatprep.subr.bf16.mxu0 0
        %1817 = vmatpush1.bf16.msra.mxu0 0
        %1818 = vmatprep.mubr.bf16.mxu0 0
        %1819 = vmatmul.mubr.bf16.gmra.mrb[0].mxu0 %v1708
        %v1820 = vpop.f32.mrb[0].mxu0
        %v1821 = vadd.f32 %v1736, %v1820
        %v1822 = vpop.f32.mrb[0].mxu0
        %v1823 = vpop.f32.mrb[0].mxu0
        %v1824 = vadd.f32 %v1736, %v1823
        %v1825 = vpop.f32.mrb[0].mxu0
        %1826 = vmatprep.mubr.bf16.mxu0 0
        %1827 = vmatmul.mubr.bf16.gmra.mrb[0].mxu0 %v1709
        %v1828 = vpop.f32.mrb[0].mxu0
        %v1829 = vadd.f32 %v1736, %v1828
        %v1830 = vpop.f32.mrb[0].mxu0
        %v1831 = vpop.f32.mrb[0].mxu0
        %v1832 = vadd.f32 %v1736, %v1831
        %v1833 = vpop.f32.mrb[0].mxu0
        %1834 = vmatprep.mubr.bf16.mxu0 0
        %1835 = vmatmul.mubr.bf16.gmra.mrb[0].mxu0 %v1710
        %v1836 = vpop.f32.mrb[0].mxu0
        %v1837 = vadd.f32 %v1736, %v1836
        %v1838 = vpop.f32.mrb[0].mxu0
        %v1839 = vpop.f32.mrb[0].mxu0
        %v1840 = vadd.f32 %v1736, %v1839
        %v1841 = vpop.f32.mrb[0].mxu0
        %1842 = vmatprep.mubr.bf16.mxu0 0
        %1843 = vmatmul.mubr.bf16.gmra.mrb[0].mxu0 %v1711
        %v1844 = vpop.f32.mrb[0].mxu0
        %v1845 = vadd.f32 %v1736, %v1844
        %v1846 = vpop.f32.mrb[0].mxu0
        %v1847 = vpop.f32.mrb[0].mxu0
        %v1848 = vadd.f32 %v1736, %v1847
        %v1849 = vpop.f32.mrb[0].mxu0
        %1850 = vmatprep.mubr.bf16.mxu0 0
        %1851 = vmatmul.mubr.bf16.gmra.mrb[0].mxu0 %v1712
        %v1852 = vpop.f32.mrb[0].mxu0
        %v1853 = vadd.f32 %v1736, %v1852
        %v1854 = vpop.f32.mrb[0].mxu0
        %v1855 = vpop.f32.mrb[0].mxu0
        %v1856 = vadd.f32 %v1736, %v1855
        %v1857 = vpop.f32.mrb[0].mxu0
        %1858 = vmatprep.mubr.bf16.mxu0 0
        %1859 = vmatmul.mubr.bf16.gmra.mrb[0].mxu0 %v1713
        %v1860 = vpop.f32.mrb[0].mxu0
        %v1861 = vadd.f32 %v1736, %v1860
        %v1862 = vpop.f32.mrb[0].mxu0
        %v1863 = vpop.f32.mrb[0].mxu0
        %v1864 = vadd.f32 %v1736, %v1863
        %v1865 = vpop.f32.mrb[0].mxu0
        %1866 = vmatprep.mubr.bf16.mxu0 0
        %1867 = vmatmul.mubr.bf16.gmra.mrb[0].mxu0 %v1714
        %v1868 = vpop.f32.mrb[0].mxu0
        %v1869 = vadd.f32 %v1736, %v1868
        %v1870 = vpop.f32.mrb[0].mxu0
        %v1871 = vpop.f32.mrb[0].mxu0
        %v1872 = vadd.f32 %v1736, %v1871
        %v1873 = vpop.f32.mrb[0].mxu0
        %1874 = vdwg.mxu0
        %1875 = vst [vmem:[%s779] sm:$0xff] %v1487
        %1876 = vst [vmem:[%s779 + $0x8] sm:$0xff] %v1490
        %1877 = vst [vmem:[%s779 + $0x10] sm:$0xff] %v1495
        %1878 = vst [vmem:[%s779 + $0x18] sm:$0xff] %v1498
        %1879 = vst [vmem:[%s779 + $0x20] sm:$0xff] %v1503
        %1880 = vst [vmem:[%s779 + $0x28] sm:$0xff] %v1506
        %1881 = vst [vmem:[%s779 + $0x30] sm:$0xff] %v1511
        %1882 = vst [vmem:[%s786] sm:$0xff] %v1514
        %1883 = vst [vmem:[%s786 + $0x8] sm:$0xff] %v1519
        %1884 = vst [vmem:[%s786 + $0x10] sm:$0xff] %v1522
        %1885 = vst [vmem:[%s786 + $0x18] sm:$0xff] %v1527
        %1886 = vst [vmem:[%s786 + $0x20] sm:$0xff] %v1530
        %1887 = vst [vmem:[%s786 + $0x28] sm:$0xff] %v1535
        %1888 = vst [vmem:[%s786 + $0x30] sm:$0xff] %v1538
        %1889 = vst [vmem:[%s751] sm:$0xff] %v1654
        %1890 = vst [vmem:[%s751 + $0x8] sm:$0xff] %v1657
        %1891 = vst [vmem:[%s751 + $0x10] sm:$0xff] %v1662
        %1892 = vst [vmem:[%s751 + $0x18] sm:$0xff] %v1665
        %1893 = vst [vmem:[%s751 + $0x20] sm:$0xff] %v1670
        %1894 = vst [vmem:[%s751 + $0x28] sm:$0xff] %v1673
        %1895 = vst [vmem:[%s751 + $0x30] sm:$0xff] %v1678
        %1896 = vst [vmem:[%s758] sm:$0xff] %v1681
        %1897 = vst [vmem:[%s758 + $0x8] sm:$0xff] %v1686
        %1898 = vst [vmem:[%s758 + $0x10] sm:$0xff] %v1689
        %1899 = vst [vmem:[%s758 + $0x18] sm:$0xff] %v1694
        %1900 = vst [vmem:[%s758 + $0x20] sm:$0xff] %v1697
        %1901 = vst [vmem:[%s758 + $0x28] sm:$0xff] %v1702
        %1902 = vst [vmem:[%s758 + $0x30] sm:$0xff] %v1705
        %1903 = vst [vmem:[%s765] sm:$0xff] %v1821
        %1904 = vst [vmem:[%s765 + $0x8] sm:$0xff] %v1824
        %1905 = vst [vmem:[%s765 + $0x10] sm:$0xff] %v1829
        %1906 = vst [vmem:[%s765 + $0x18] sm:$0xff] %v1832
        %1907 = vst [vmem:[%s765 + $0x20] sm:$0xff] %v1837
        %1908 = vst [vmem:[%s765 + $0x28] sm:$0xff] %v1840
        %1909 = vst [vmem:[%s765 + $0x30] sm:$0xff] %v1845
        %1910 = vst [vmem:[%s772] sm:$0xff] %v1848
        %1911 = vst [vmem:[%s772 + $0x8] sm:$0xff] %v1853
        %1912 = vst [vmem:[%s772 + $0x10] sm:$0xff] %v1856
        %1913 = vst [vmem:[%s772 + $0x18] sm:$0xff] %v1861
        %1914 = vst [vmem:[%s772 + $0x20] sm:$0xff] %v1864
        %1915 = vst [vmem:[%s772 + $0x28] sm:$0xff] %v1869
        %1916 = vst [vmem:[%s772 + $0x30] sm:$0xff] %v1872
        %s1917 = sand.u32 %s322, 1
        %s1918 = scalar_lea.sflag [#allocation5], %s1917
        %s1919 = sand.u32 %s322, 1
        %s1920 = smul.addr %s1919, 56
        %s1921 = scalar_lea.vmem [#allocation23], %s1920
        %s1922 = sand.u32 %s52, 1
        %s1923 = scalar_lea.sflag [#allocation25], %s1922
        %s1924 = sand.u32 %s348, 1
        %s1925 = smul.addr %s1924, 56
        %s1926 = scalar_lea.vmem [#allocation24], %s1925
        %s1927 = sand.u32 %s52, 1
        %s1928 = scalar_lea.sflag [#allocation25], %s1927
        %s1929 = sand.u32 %s374, 1
        %s1930 = smul.addr %s1929, 56
        %s1931 = scalar_lea.vmem [#allocation26], %s1930
        %s1932 = sand.u32 %s52, 1
        %s1933 = scalar_lea.sflag [#allocation28], %s1932
        %s1934 = sand.u32 %s400, 1
        %s1935 = smul.addr %s1934, 56
        %s1936 = scalar_lea.vmem [#allocation27], %s1935
        %s1937 = sand.u32 %s52, 1
        %s1938 = scalar_lea.sflag [#allocation28], %s1937
        %s1939 = sand.u32 %s426, 1
        %s1940 = smul.addr %s1939, 56
        %s1941 = scalar_lea.vmem [#allocation29], %s1940
        %s1942 = sand.u32 %s452, 1
        %s1943 = scalar_lea.sflag [#allocation31], %s1942
        %s1944 = sand.u32 %s452, 1
        %s1945 = smul.addr %s1944, 56
        %s1946 = scalar_lea.vmem [#allocation30], %s1945
        // Predicated region
        $region117: #{drsc_nn_forward.1} parent=67 // pred_check
          %p1947 = pneg %p332
        $region118: #{drsc_nn_forward.1} parent=67 // pred_check_branch
          %1949 = sbr.rel (%p1947) target = $region120
        $region119: #{drsc_nn_forward.1} parent=67 // pred_region
          %s1950 = smul.u32 7, %s52
          %s1952 = ssub.s32 896, 896
          %1953 = vsyncadd %s1918, %s1952
          %s1954 = smul.addr %s1950, 128
          %s1955 = scalar_lea.hbm %s12, %s1954
          %s1956 = sshll.u32 %s1921, 4
          %s1957 = int_to_ptr.vmem [resolvable:$true] %s1956
          %1962 = dma.vmem_to_hbm [thread:$0]  %s1957, 896, %s1955, %s1918, 128, 128, 8
        $region120: #{drsc_nn_forward.1} parent=67 // pred_fallthru
          _
        // Predicated region
        $region121: #{drsc_nn_forward.1} parent=67 // pred_check
          %p1963 = pneg %p358
        $region122: #{drsc_nn_forward.1} parent=67 // pred_check_branch
          %1965 = sbr.rel (%p1963) target = $region124
        $region123: #{drsc_nn_forward.1} parent=67 // pred_region
          %s1966 = smul.u32 7, %s52
          %s1968 = ssub.s32 896, 896
          %1969 = vsyncadd %s1923, %s1968
          %s1970 = smul.addr %s1966, 128
          %s1971 = scalar_lea.hbm %s13, %s1970
          %s1972 = sshll.u32 %s1926, 4
          %s1973 = int_to_ptr.vmem [resolvable:$true] %s1972
          %1978 = dma.vmem_to_hbm [thread:$0]  %s1973, 896, %s1971, %s1923, 128, 128, 8
        $region124: #{drsc_nn_forward.1} parent=67 // pred_fallthru
          _
        // Predicated region
        $region125: #{drsc_nn_forward.1} parent=67 // pred_check
          %p1979 = pneg %p384
        $region126: #{drsc_nn_forward.1} parent=67 // pred_check_branch
          %1981 = sbr.rel (%p1979) target = $region128
        $region127: #{drsc_nn_forward.1} parent=67 // pred_region
          %s1982 = smul.u32 7, %s52
          %s1984 = ssub.s32 896, 896
          %1985 = vsyncadd %s1928, %s1984
          %s1986 = smul.addr %s1982, 128
          %s1987 = scalar_lea.hbm %s14, %s1986
          %s1988 = sshll.u32 %s1931, 4
          %s1989 = int_to_ptr.vmem [resolvable:$true] %s1988
          %1994 = dma.vmem_to_hbm [thread:$0]  %s1989, 896, %s1987, %s1928, 128, 128, 8
        $region128: #{drsc_nn_forward.1} parent=67 // pred_fallthru
          _
        // Predicated region
        $region129: #{drsc_nn_forward.1} parent=67 // pred_check
          %p1995 = pneg %p410
        $region130: #{drsc_nn_forward.1} parent=67 // pred_check_branch
          %1997 = sbr.rel (%p1995) target = $region132
        $region131: #{drsc_nn_forward.1} parent=67 // pred_region
          %s1998 = smul.u32 7, %s52
          %s2000 = ssub.s32 896, 896
          %2001 = vsyncadd %s1933, %s2000
          %s2002 = smul.addr %s1998, 128
          %s2003 = scalar_lea.hbm %s15, %s2002
          %s2004 = sshll.u32 %s1936, 4
          %s2005 = int_to_ptr.vmem [resolvable:$true] %s2004
          %2010 = dma.vmem_to_hbm [thread:$0]  %s2005, 896, %s2003, %s1933, 128, 128, 8
        $region132: #{drsc_nn_forward.1} parent=67 // pred_fallthru
          _
        // Predicated region
        $region133: #{drsc_nn_forward.1} parent=67 // pred_check
          %p2011 = pneg %p436
        $region134: #{drsc_nn_forward.1} parent=67 // pred_check_branch
          %2013 = sbr.rel (%p2011) target = $region136
        $region135: #{drsc_nn_forward.1} parent=67 // pred_region
          %s2014 = smul.u32 7, %s52
          %s2016 = ssub.s32 896, 896
          %2017 = vsyncadd %s1938, %s2016
          %s2018 = smul.addr %s2014, 128
          %s2019 = scalar_lea.hbm %s16, %s2018
          %s2020 = sshll.u32 %s1941, 4
          %s2021 = int_to_ptr.vmem [resolvable:$true] %s2020
          %2026 = dma.vmem_to_hbm [thread:$0]  %s2021, 896, %s2019, %s1938, 128, 128, 8
        $region136: #{drsc_nn_forward.1} parent=67 // pred_fallthru
          _
        // Predicated region
        $region137: #{drsc_nn_forward.1} parent=67 // pred_check
          %p2027 = pneg %p462
        $region138: #{drsc_nn_forward.1} parent=67 // pred_check_branch
          %2029 = sbr.rel (%p2027) target = $region140
        $region139: #{drsc_nn_forward.1} parent=67 // pred_region
          %s2030 = smul.u32 7, %s52
          %s2032 = ssub.s32 896, 896
          %2033 = vsyncadd %s1943, %s2032
          %s2034 = smul.addr %s2030, 128
          %s2035 = scalar_lea.hbm %s17, %s2034
          %s2036 = sshll.u32 %s1946, 4
          %s2037 = int_to_ptr.vmem [resolvable:$true] %s2036
          %2042 = dma.vmem_to_hbm [thread:$0]  %s2037, 896, %s2035, %s1943, 128, 128, 8
        $region140: #{drsc_nn_forward.1} parent=67 // pred_fallthru
          _
      $region68: #{drsc_nn_forward.1} parent=5 // pred_fallthru
        _
      %p2043 = scmp.le.s32.totalorder 2, %s47
      // Predicated region
      $region141: #{drsc_nn_forward.1} parent=5 // pred_check
        %p2044 = pneg %p2043
      $region142: #{drsc_nn_forward.1} parent=5 // pred_check_branch
        %2046 = sbr.rel (%p2044) target = $region144
      $region143: #{drsc_nn_forward.1} parent=5 // pred_region
        %s2047 = ssub.s32 %s47, 2
        // Predicated region
        $region145: #{drsc_nn_forward.1} parent=143 // pred_check
          %p2048 = pneg %p338
        $region146: #{drsc_nn_forward.1} parent=143 // pred_check_branch
          %2050 = sbr.rel (%p2048) target = $region148
        $region147: #{drsc_nn_forward.1} parent=143 // pred_region
          %s2051 = sand.u32 %s323, 1
          %s2052 = scalar_lea.sflag [#allocation5], %s2051
          %s2053 = sand.u32 %s323, 1
          %s2054 = smul.addr %s2053, 56
          %s2055 = scalar_lea.vmem [#allocation23], %s2054
          %2056 = dma.done %s2052, 896
        $region148: #{drsc_nn_forward.1} parent=143 // pred_fallthru
          _
        // Predicated region
        $region149: #{drsc_nn_forward.1} parent=143 // pred_check
          %p2057 = pneg %p364
        $region150: #{drsc_nn_forward.1} parent=143 // pred_check_branch
          %2059 = sbr.rel (%p2057) target = $region152
        $region151: #{drsc_nn_forward.1} parent=143 // pred_region
          %s2060 = sand.u32 %s53, 1
          %s2061 = scalar_lea.sflag [#allocation25], %s2060
          %s2062 = sand.u32 %s349, 1
          %s2063 = smul.addr %s2062, 56
          %s2064 = scalar_lea.vmem [#allocation24], %s2063
          %2065 = dma.done %s2061, 896
        $region152: #{drsc_nn_forward.1} parent=143 // pred_fallthru
          _
        // Predicated region
        $region153: #{drsc_nn_forward.1} parent=143 // pred_check
          %p2066 = pneg %p390
        $region154: #{drsc_nn_forward.1} parent=143 // pred_check_branch
          %2068 = sbr.rel (%p2066) target = $region156
        $region155: #{drsc_nn_forward.1} parent=143 // pred_region
          %s2069 = sand.u32 %s53, 1
          %s2070 = scalar_lea.sflag [#allocation25], %s2069
          %s2071 = sand.u32 %s375, 1
          %s2072 = smul.addr %s2071, 56
          %s2073 = scalar_lea.vmem [#allocation26], %s2072
          %2074 = dma.done %s2070, 896
        $region156: #{drsc_nn_forward.1} parent=143 // pred_fallthru
          _
        // Predicated region
        $region157: #{drsc_nn_forward.1} parent=143 // pred_check
          %p2075 = pneg %p416
        $region158: #{drsc_nn_forward.1} parent=143 // pred_check_branch
          %2077 = sbr.rel (%p2075) target = $region160
        $region159: #{drsc_nn_forward.1} parent=143 // pred_region
          %s2078 = sand.u32 %s53, 1
          %s2079 = scalar_lea.sflag [#allocation28], %s2078
          %s2080 = sand.u32 %s401, 1
          %s2081 = smul.addr %s2080, 56
          %s2082 = scalar_lea.vmem [#allocation27], %s2081
          %2083 = dma.done %s2079, 896
        $region160: #{drsc_nn_forward.1} parent=143 // pred_fallthru
          _
        // Predicated region
        $region161: #{drsc_nn_forward.1} parent=143 // pred_check
          %p2084 = pneg %p442
        $region162: #{drsc_nn_forward.1} parent=143 // pred_check_branch
          %2086 = sbr.rel (%p2084) target = $region164
        $region163: #{drsc_nn_forward.1} parent=143 // pred_region
          %s2087 = sand.u32 %s53, 1
          %s2088 = scalar_lea.sflag [#allocation28], %s2087
          %s2089 = sand.u32 %s427, 1
          %s2090 = smul.addr %s2089, 56
          %s2091 = scalar_lea.vmem [#allocation29], %s2090
          %2092 = dma.done %s2088, 896
        $region164: #{drsc_nn_forward.1} parent=143 // pred_fallthru
          _
        // Predicated region
        $region165: #{drsc_nn_forward.1} parent=143 // pred_check
          %p2093 = pneg %p468
        $region166: #{drsc_nn_forward.1} parent=143 // pred_check_branch
          %2095 = sbr.rel (%p2093) target = $region168
        $region167: #{drsc_nn_forward.1} parent=143 // pred_region
          %s2096 = sand.u32 %s453, 1
          %s2097 = scalar_lea.sflag [#allocation31], %s2096
          %s2098 = sand.u32 %s453, 1
          %s2099 = smul.addr %s2098, 56
          %s2100 = scalar_lea.vmem [#allocation30], %s2099
          %2101 = dma.done %s2097, 896
        $region168: #{drsc_nn_forward.1} parent=143 // pred_fallthru
          _
      $region144: #{drsc_nn_forward.1} parent=5 // pred_fallthru
        _
    $region6: #{drsc_nn_forward.1} parent=1 // loop_footer
      %s51 = sadd.s32 1, %s47
    $region7: #{drsc_nn_forward.1} parent=1 // loop_footer_branch
      %46 = sbr.rel target = $region3
    $region8: #{drsc_nn_forward.1} parent=1 // loop_exit
      _
    %2102 = vsyncpa [#allocation4], 1
    %s2103 = scalar_lea.sflag [#allocation4], 1
    %2104 = vsyncpa %s2103, 1
    %2105 = vsyncpa [#allocation7], 1
    %s2106 = scalar_lea.sflag [#allocation7], 1
    %2107 = vsyncpa %s2106, 1
    %2108 = vsyncpa [#allocation10], 1
    %2109 = vsyncpa [#allocation13], 1
    %2110 = vsyncpa [#allocation16], 1
    %2111 = vsyncpa [#allocation19], 1
    %2112 = vsyncpa [#allocation22], 1
    %2113 = vsyncpa [#allocation5], 1
    %s2114 = scalar_lea.sflag [#allocation5], 1
    %2115 = vsyncpa %s2114, 1
    %2116 = vsyncpa [#allocation25], 1
    %s2117 = scalar_lea.sflag [#allocation25], 1
    %2118 = vsyncpa %s2117, 1
    %2119 = vsyncpa [#allocation28], 1
    %s2120 = scalar_lea.sflag [#allocation28], 1
    %2121 = vsyncpa %s2120, 1
    %2122 = vsyncpa [#allocation31], 1
    %s2123 = scalar_lea.sflag [#allocation31], 1
    %2124 = vsyncpa %s2123, 1

</llo_original>
